<compile_context>
chip_gen: v5e
topology: v5e:2x2
jax: 0.10.0
libtpu: 0.0.40
codegen_flags: <defaults>
</compile_context>

<pallas_src>
import jax
import jax.numpy as jnp
from jax import lax
from jax.experimental import pallas as pl
from jax.experimental.pallas import tpu as pltpu


def _make_kernel(W_real, approximate_gelu):
    inv_sqrt2 = 0.7071067811865476

    def kernel(xc_ref, xt_ref, xb_ref,
               w_in_g_ref, w_in_x_ref, b_in_g_ref, b_in_x_ref,
               w_dw_g_ref, w_dw_x_ref, b_dw_g_ref, b_dw_x_ref,
               w_out_ref, b_out_ref, o_ref):
        # xc_ref: (1, TH, Wp, C) bf16 -- current row band
        # xt_ref: (1, 1, Wp, C)  bf16 -- row above the band (clamped at edges)
        # xb_ref: (1, 1, Wp, C)  bf16 -- row below the band (clamped at edges)
        _, TH, Wp, C = xc_ref.shape
        hidden = w_in_g_ref.shape[1]
        dim = w_out_ref.shape[1]
        total = (TH + 2) * Wp

        h = pl.program_id(1)
        nh = pl.num_programs(1)

        # ---- assemble band + 1-row halos, flatten H*W for the MXU ---------
        x_full = jnp.concatenate([xt_ref[0], xc_ref[0], xb_ref[0]], axis=0)
        x2d = x_full.reshape(total, C)                    # bf16, layout-preserving

        # ---- masks (built once, shared by both gating halves) -------------
        # Row mask: zero halo rows outside the image (dwconv zero-pad in H).
        flat = lax.broadcasted_iota(jnp.int32, (total, 1), 0)
        row_ok = jnp.logical_and(
            jnp.logical_or(flat >= Wp, h > 0),               # top halo valid?
            jnp.logical_or(flat < (TH + 1) * Wp, h < nh - 1))  # bottom halo valid?
        row_keep = row_ok.astype(jnp.float32)                # (total, 1)

        # Column masks (applied pre-roll so the rolled-in element is zero):
        colv = lax.broadcasted_iota(jnp.int32, (Wp, 1), 0)   # (Wp, 1)
        m_shift_l = (colv < Wp - 1).astype(jnp.float32)      # kill last col before roll(+1)
        m_shift_r = (colv > 0).astype(jnp.float32)           # kill first col before roll(-1)
        m_real = (colv < W_real).astype(jnp.float32)         # real (unpadded) columns

        # Hoist dwconv weights/biases (loaded once, indexed as values).
        w_dw_g = w_dw_g_ref[...]
        w_dw_x = w_dw_x_ref[...]
        b_dw_g = b_dw_g_ref[...]
        b_dw_x = b_dw_x_ref[...]

        def half(w_in_ref, b_in_ref, w_dw, b_dw):
            # project_in (this half): 1x1 conv == matmul, bf16 in / f32 acc.
            y2d = jnp.dot(x2d, w_in_ref[...], preferred_element_type=jnp.float32)
            y2d = (y2d + b_in_ref[...]) * row_keep           # zero invalid halo rows
            y = y2d.reshape(TH + 2, Wp, hidden)
            if W_real != Wp:
                y = y * m_real                               # zero padded columns

            # W-shifted slabs via sublane roll (XLU); edge columns pre-zeroed.
            yl = (y * m_shift_l).reshape(total, hidden)
            yr = (y * m_shift_r).reshape(total, hidden)
            y_l = pltpu.roll(yl, shift=1, axis=0).reshape(TH + 2, Wp, hidden)
            y_r = pltpu.roll(yr, shift=total - 1, axis=0).reshape(TH + 2, Wp, hidden)

            # depthwise 3x3: reuse the three shifted slabs across the dy taps.
            acc = None
            for dy in range(3):
                for slab, dx in ((y_l, 0), (y, 1), (y_r, 2)):
                    t = slab[dy:dy + TH] * w_dw[dy, dx]
                    acc = t if acc is None else acc + t
            return acc + b_dw                                # (TH, Wp, hidden) f32

        a1 = half(w_in_g_ref, b_in_g_ref, w_dw_g, b_dw_g)    # gelu branch
        a2 = half(w_in_x_ref, b_in_x_ref, w_dw_x, b_dw_x)    # gate branch

        # ---- gated GELU -----------------------------------------------------
        if approximate_gelu:
            z = jax.nn.gelu(a1, approximate=True) * a2       # tanh form -> EUP
        else:
            z = 0.5 * a1 * (1.0 + lax.erf(a1 * inv_sqrt2)) * a2   # PyTorch parity

        # ---- project_out: 1x1 conv == matmul (bf16 in, f32 acc) -------------
        out = jnp.dot(z.reshape(TH * Wp, hidden).astype(jnp.bfloat16),
                      w_out_ref[...], preferred_element_type=jnp.float32)
        out = out + b_out_ref[...]
        o_ref[0] = out.reshape(TH, Wp, dim).astype(o_ref.dtype)

    return kernel


def _default_vmem_limit():
    """VMEM limit keyed off the actual chip (v5e/v6e: 128 MiB, v7x: 64 MiB)."""
    cap = 64 * 1024 * 1024
    try:
        info = pltpu.get_tpu_info()
        cap = int(getattr(info, "vmem_capacity_bytes", cap))
    except Exception:
        pass
    if cap >= 128 * 1024 * 1024:
        return 96 * 1024 * 1024
    return min(cap * 5 // 8, 40 * 1024 * 1024)


def _pick_tile_h(N, H, Wp, C, hidden, dim, budget_bytes):
    """Largest divisor of H whose per-step working set fits the budget.

    The estimate now reflects the post-cleanup kernel: per live half keeps
    y, y_l, y_r, acc (f32); plus the carried gelu-branch result, z, the bf16
    input concat, and double-buffered IO blocks.  Prefers an even grid-step
    count so v7x's two TensorCores split the work evenly."""
    def est(th):
        rows = th + 2
        half_live = 4 * rows * Wp * hidden * 4            # y, y_l, y_r, acc
        keep = 2 * th * Wp * hidden * 4                   # a1 carried + z
        xin = rows * Wp * C * 2                           # bf16 input concat
        outb = th * Wp * dim * 4
        io = 2 * (th * Wp * C * 2 + 2 * Wp * C * 2 + th * Wp * dim * 4)
        return half_live + keep + xin + outb + io

    fits = [th for th in range(1, H + 1) if H % th == 0 and est(th) <= budget_bytes]
    if not fits:
        return 1  # TODO(synk): pad H / ragged last band instead of th=1 fallback
    best = max(fits)
    even = [th for th in fits if (N * (H // th)) % 2 == 0]
    if even and max(even) * 2 >= best:
        return max(even)
    return best


def feedforward_pallas_nhwc(x_nhwc, params, *, tile_h=None, approximate_gelu=False,
                            out_dtype=None, vmem_limit_bytes=None):
    """x_nhwc: (N, H, W, C) float32, channels-last.  Returns (N, H, W, C)."""
    w_in, b_in, w_dw, b_dw, w_out, b_out = params
    N, H, W, C = x_nhwc.shape
    C2 = w_in.shape[1]
    hidden = C2 // 2
    dim = w_out.shape[1]
    out_dtype = x_nhwc.dtype if out_dtype is None else out_dtype

    if vmem_limit_bytes is None:
        vmem_limit_bytes = _default_vmem_limit()

    # Pad W up to a multiple of 8 so the H*W flattens in the kernel are
    # layout-preserving; padded columns are zeroed in-kernel and sliced off.
    Wp = ((W + 7) // 8) * 8
    x_bf = x_nhwc.astype(jnp.bfloat16)
    if Wp != W:
        x_bf = jnp.pad(x_bf, ((0, 0), (0, 0), (0, Wp - W), (0, 0)))

    if tile_h is None:
        tile_h = _pick_tile_h(N, H, Wp, C, hidden, dim,
                              budget_bytes=vmem_limit_bytes // 3)
    assert H % tile_h == 0, "H must be divisible by tile_h"
    nh = H // tile_h

    # Split project_in / dwconv weights per gating half so the kernel never
    # slices the lane (channel) axis.  1x1-conv weights feed the MXU in bf16.
    w_in_g = w_in[:, :hidden].astype(jnp.bfloat16)
    w_in_x = w_in[:, hidden:].astype(jnp.bfloat16)
    b_in_g, b_in_x = b_in[:, :hidden], b_in[:, hidden:]
    w_dw_g, w_dw_x = w_dw[:, :, :hidden], w_dw[:, :, hidden:]
    b_dw_g, b_dw_x = b_dw[:, :hidden], b_dw[:, hidden:]
    w_out_bf = w_out.astype(jnp.bfloat16)

    def full_spec(a):
        nd = a.ndim
        return pl.BlockSpec(a.shape, lambda n, h, nd=nd: (0,) * nd)

    kernel = _make_kernel(W, approximate_gelu)

    grid_spec = pltpu.PrefetchScalarGridSpec(
        num_scalar_prefetch=0,
        grid=(N, nh),
        in_specs=[
            # current row band
            pl.BlockSpec((1, tile_h, Wp, C), lambda n, h: (n, h, 0, 0)),
            # 1-row halo above (clamped; zeroed in-kernel when h == 0)
            pl.BlockSpec((1, 1, Wp, C),
                         lambda n, h: (n, jnp.maximum(h * tile_h - 1, 0), 0, 0)),
            # 1-row halo below (clamped; zeroed in-kernel when h == nh - 1)
            pl.BlockSpec((1, 1, Wp, C),
                         lambda n, h: (n, jnp.minimum(h * tile_h + tile_h, H - 1), 0, 0)),
            full_spec(w_in_g), full_spec(w_in_x),
            full_spec(b_in_g), full_spec(b_in_x),
            full_spec(w_dw_g), full_spec(w_dw_x),
            full_spec(b_dw_g), full_spec(b_dw_x),
            full_spec(w_out_bf), full_spec(b_out),
        ],
        out_specs=pl.BlockSpec((1, tile_h, Wp, dim), lambda n, h: (n, h, 0, 0)),
    )

    out = pl.pallas_call(
        kernel,
        out_shape=jax.ShapeDtypeStruct((N, H, Wp, dim), out_dtype),
        grid_spec=grid_spec,
        compiler_params=pltpu.CompilerParams(
            dimension_semantics=("parallel", "parallel"),
            vmem_limit_bytes=vmem_limit_bytes),
    )(x_bf, x_bf, x_bf,
      w_in_g, w_in_x, b_in_g, b_in_x,
      w_dw_g, w_dw_x, b_dw_g, b_dw_x,
      w_out_bf, b_out)

    if Wp != W:
        out = out[:, :, :W, :]
    return out


def feedforward_pallas(x_nchw, params, **kwargs):
    """NCHW wrapper matching the PyTorch module interface.

    If the surrounding model already runs channels-last, call
    `feedforward_pallas_nhwc` directly and skip both boundary transposes."""
    x = jnp.transpose(x_nchw, (0, 2, 3, 1))                 # NCHW -> NHWC
    out = feedforward_pallas_nhwc(x, params, **kwargs)
    return jnp.transpose(out, (0, 3, 1, 2))                 # NHWC -> NCHW


def feedforward_ref(x_nchw, params):
    """Pure-JAX f32 reference (mirrors the PyTorch forward) for verification."""
    w_in, b_in, w_dw, b_dw, w_out, b_out = params
    x = jnp.transpose(x_nchw, (0, 2, 3, 1))                 # NHWC
    y = jnp.einsum("nhwc,cd->nhwd", x, w_in) + b_in[0]
    y = lax.conv_general_dilated(
        y, w_dw.reshape(3, 3, 1, -1), window_strides=(1, 1), padding="SAME",
        dimension_numbers=("NHWC", "HWIO", "NHWC"),
        feature_group_count=y.shape[-1]) + b_dw[0]
    hidden = y.shape[-1] // 2
    z = jax.nn.gelu(y[..., :hidden], approximate=False) * y[..., hidden:]
    out = jnp.einsum("nhwc,cd->nhwd", z, w_out) + b_out[0]
    return jnp.transpose(out, (0, 3, 1, 2))


def make_params(key, dim, ffn_expansion_factor):
    hidden = int(dim * ffn_expansion_factor)
    C2 = hidden * 2
    ks = jax.random.split(key, 6)
    # Conv weights stored pre-transposed for channels-last matmuls:
    #   project_in : (dim, C2)      (torch: (C2, dim, 1, 1))
    #   dwconv     : (3, 3, C2)     (torch: (C2, 1, 3, 3))
    #   project_out: (hidden, dim)  (torch: (dim, hidden, 1, 1))
    w_in = jax.random.normal(ks[0], (dim, C2), jnp.float32) * 0.1
    b_in = jax.random.normal(ks[1], (1, C2), jnp.float32) * 0.1
    w_dw = jax.random.normal(ks[2], (3, 3, C2), jnp.float32) * 0.1
    b_dw = jax.random.normal(ks[3], (1, C2), jnp.float32) * 0.1
    w_out = jax.random.normal(ks[4], (hidden, dim), jnp.float32) * 0.1
    b_out = jax.random.normal(ks[5], (1, dim), jnp.float32) * 0.1
    return (w_in, b_in, w_dw, b_dw, w_out, b_out)


if __name__ == "__main__":
    key = jax.random.PRNGKey(0)
    kx, kp = jax.random.split(key)

    N, dim, H, W = 2, 8, 16, 16
    ffn_expansion_factor = 2   # hidden = 16, 2*hidden = 32  (bias=True)

    x = jax.random.normal(kx, (N, dim, H, W), jnp.float32)
    params = make_params(kp, dim, ffn_expansion_factor)

    # tile_h=8 forces a 2-tile H grid so the halo/cross-tile path is exercised.
    ff = jax.jit(lambda xx, pp: feedforward_pallas(xx, pp, tile_h=8))
    out = jax.block_until_ready(ff(x, params))
    ref = jax.block_until_ready(feedforward_ref(x, params))

    assert out.shape == (N, dim, H, W)
    # Tolerance loosened vs. the f32 reference because the two 1x1-conv
    # matmuls feed the MXU with bf16 operands (f32 accumulation) -- intentional.
    assert jnp.allclose(out, ref, atol=2e-2, rtol=2e-2), (
        float(jnp.max(jnp.abs(out - ref))))
    print("KERNEL_OK")
</pallas_src>

<mosaic_0001>
module attributes {stable_mosaic.version = 11 : i64} {
  func.func @kernel(%arg0: i32, %arg1: i32, %arg2: memref<1x8x16x8xbf16, #tpu.memory_space<vmem>>, %arg3: memref<1x1x16x8xbf16, #tpu.memory_space<vmem>>, %arg4: memref<1x1x16x8xbf16, #tpu.memory_space<vmem>>, %arg5: memref<8x16xbf16, #tpu.memory_space<vmem>>, %arg6: memref<8x16xbf16, #tpu.memory_space<vmem>>, %arg7: memref<1x16xf32, #tpu.memory_space<vmem>>, %arg8: memref<1x16xf32, #tpu.memory_space<vmem>>, %arg9: memref<3x3x16xf32, #tpu.memory_space<vmem>>, %arg10: memref<3x3x16xf32, #tpu.memory_space<vmem>>, %arg11: memref<1x16xf32, #tpu.memory_space<vmem>>, %arg12: memref<1x16xf32, #tpu.memory_space<vmem>>, %arg13: memref<16x8xbf16, #tpu.memory_space<vmem>>, %arg14: memref<1x8xf32, #tpu.memory_space<vmem>>, %arg15: memref<1x8x16x8xf32, #tpu.memory_space<vmem>>) attributes {dimension_semantics = [#tpu.dimension_semantics<parallel>, #tpu.dimension_semantics<parallel>], iteration_bounds = array<i64: 2, 2>, scalar_prefetch = 0 : i64, scratch_operands = 0 : i64, tpu.core_type = #tpu.core_type<tc>, window_params = [{transform_indices = @transform_0, window_bounds = array<i64: 1, 8, 16, 8>}, {transform_indices = @transform_1, window_bounds = array<i64: 1, 1, 16, 8>}, {transform_indices = @transform_2, window_bounds = array<i64: 1, 1, 16, 8>}, {pipeline_mode = #tpu.pipeline_mode<synchronous>, transform_indices = @transform_3, window_bounds = array<i64: 8, 16>}, {pipeline_mode = #tpu.pipeline_mode<synchronous>, transform_indices = @transform_4, window_bounds = array<i64: 8, 16>}, {pipeline_mode = #tpu.pipeline_mode<synchronous>, transform_indices = @transform_5, window_bounds = array<i64: 1, 16>}, {pipeline_mode = #tpu.pipeline_mode<synchronous>, transform_indices = @transform_6, window_bounds = array<i64: 1, 16>}, {pipeline_mode = #tpu.pipeline_mode<synchronous>, transform_indices = @transform_7, window_bounds = array<i64: 3, 3, 16>}, {pipeline_mode = #tpu.pipeline_mode<synchronous>, transform_indices = @transform_8, window_bounds = array<i64: 3, 3, 16>}, {pipeline_mode = #tpu.pipeline_mode<synchronous>, transform_indices = @transform_9, window_bounds = array<i64: 1, 16>}, {pipeline_mode = #tpu.pipeline_mode<synchronous>, transform_indices = @transform_10, window_bounds = array<i64: 1, 16>}, {pipeline_mode = #tpu.pipeline_mode<synchronous>, transform_indices = @transform_11, window_bounds = array<i64: 16, 8>}, {pipeline_mode = #tpu.pipeline_mode<synchronous>, transform_indices = @transform_12, window_bounds = array<i64: 1, 8>}, {transform_indices = @transform_13, window_bounds = array<i64: 1, 8, 16, 8>}]} {
    %c0 = arith.constant 0 : index
    %c0_0 = arith.constant 0 : index
    %c0_1 = arith.constant 0 : index
    %c0_2 = arith.constant 0 : index
    %0 = vector.load %arg3[%c0, %c0_0, %c0_1, %c0_2] : memref<1x1x16x8xbf16, #tpu.memory_space<vmem>>, vector<1x1x16x8xbf16>
    %1 = vector.shape_cast %0 : vector<1x1x16x8xbf16> to vector<1x16x8xbf16>
    %c0_3 = arith.constant 0 : index
    %c0_4 = arith.constant 0 : index
    %c0_5 = arith.constant 0 : index
    %c0_6 = arith.constant 0 : index
    %2 = vector.load %arg2[%c0_3, %c0_4, %c0_5, %c0_6] : memref<1x8x16x8xbf16, #tpu.memory_space<vmem>>, vector<1x8x16x8xbf16>
    %3 = vector.shape_cast %2 : vector<1x8x16x8xbf16> to vector<8x16x8xbf16>
    %c0_7 = arith.constant 0 : index
    %c0_8 = arith.constant 0 : index
    %c0_9 = arith.constant 0 : index
    %c0_10 = arith.constant 0 : index
    %4 = vector.load %arg4[%c0_7, %c0_8, %c0_9, %c0_10] : memref<1x1x16x8xbf16, #tpu.memory_space<vmem>>, vector<1x1x16x8xbf16>
    %5 = vector.shape_cast %4 : vector<1x1x16x8xbf16> to vector<1x16x8xbf16>
    %6 = tpu.concatenate %1, %3, %5 in 0 : vector<1x16x8xbf16>, vector<8x16x8xbf16>, vector<1x16x8xbf16> -> vector<10x16x8xbf16>
    %7 = vector.shape_cast %6 : vector<10x16x8xbf16> to vector<160x8xbf16>
    %8 = tpu.iota {dimensions = array<i32: 0>} : vector<160x1xi32>
    %c16_i32 = arith.constant 16 : i32
    %9 = vector.broadcast %c16_i32 : i32 to vector<160x1xi32>
    %10 = arith.cmpi sge, %8, %9 : vector<160x1xi32>
    %c0_i32 = arith.constant 0 : i32
    %11 = arith.cmpi sgt, %arg1, %c0_i32 : i32
    %12 = vector.broadcast %11 : i1 to vector<160x1xi1>
    %13 = arith.ori %10, %12 : vector<160x1xi1>
    %c144_i32 = arith.constant 144 : i32
    %14 = vector.broadcast %c144_i32 : i32 to vector<160x1xi32>
    %15 = arith.cmpi slt, %8, %14 : vector<160x1xi32>
    %c1_i32 = arith.constant 1 : i32
    %16 = arith.cmpi slt, %arg1, %c1_i32 : i32
    %17 = vector.broadcast %16 : i1 to vector<160x1xi1>
    %18 = arith.ori %15, %17 : vector<160x1xi1>
    %19 = arith.andi %13, %18 : vector<160x1xi1>
    %20 = arith.extui %19 : vector<160x1xi1> to vector<160x1xi32>
    %21 = arith.sitofp %20 : vector<160x1xi32> to vector<160x1xf32>
    %22 = tpu.iota {dimensions = array<i32: 0>} : vector<16x1xi32>
    %c15_i32 = arith.constant 15 : i32
    %23 = vector.broadcast %c15_i32 : i32 to vector<16x1xi32>
    %24 = arith.cmpi slt, %22, %23 : vector<16x1xi32>
    %25 = arith.extui %24 : vector<16x1xi1> to vector<16x1xi32>
    %26 = arith.sitofp %25 : vector<16x1xi32> to vector<16x1xf32>
    %c0_i32_11 = arith.constant 0 : i32
    %27 = vector.broadcast %c0_i32_11 : i32 to vector<16x1xi32>
    %28 = arith.cmpi sgt, %22, %27 : vector<16x1xi32>
    %29 = arith.extui %28 : vector<16x1xi1> to vector<16x1xi32>
    %30 = arith.sitofp %29 : vector<16x1xi32> to vector<16x1xf32>
    %c0_12 = arith.constant 0 : index
    %c0_13 = arith.constant 0 : index
    %c0_14 = arith.constant 0 : index
    %31 = vector.load %arg9[%c0_12, %c0_13, %c0_14] : memref<3x3x16xf32, #tpu.memory_space<vmem>>, vector<3x3x16xf32>
    %c0_15 = arith.constant 0 : index
    %c0_16 = arith.constant 0 : index
    %c0_17 = arith.constant 0 : index
    %32 = vector.load %arg10[%c0_15, %c0_16, %c0_17] : memref<3x3x16xf32, #tpu.memory_space<vmem>>, vector<3x3x16xf32>
    %c0_18 = arith.constant 0 : index
    %c0_19 = arith.constant 0 : index
    %33 = vector.load %arg11[%c0_18, %c0_19] : memref<1x16xf32, #tpu.memory_space<vmem>>, vector<1x16xf32>
    %c0_20 = arith.constant 0 : index
    %c0_21 = arith.constant 0 : index
    %34 = vector.load %arg12[%c0_20, %c0_21] : memref<1x16xf32, #tpu.memory_space<vmem>>, vector<1x16xf32>
    %c0_22 = arith.constant 0 : index
    %c0_23 = arith.constant 0 : index
    %35 = vector.load %arg5[%c0_22, %c0_23] : memref<8x16xbf16, #tpu.memory_space<vmem>>, vector<8x16xbf16>
    %cst = arith.constant dense<0.000000e+00> : vector<160x16xf32>
    %36 = tpu.matmul %7, %35, %cst {dimension_numbers = #tpu.dot_dimension_numbers<[1], [0], [0], [1], [0, 0, 1, 1], [], []>} : vector<160x8xbf16>, vector<8x16xbf16>, vector<160x16xf32> -> vector<160x16xf32>
    %c0_24 = arith.constant 0 : index
    %c0_25 = arith.constant 0 : index
    %37 = vector.load %arg7[%c0_24, %c0_25] : memref<1x16xf32, #tpu.memory_space<vmem>>, vector<1x16xf32>
    %38 = vector.broadcast %37 : vector<1x16xf32> to vector<160x16xf32>
    %39 = arith.addf %36, %38 : vector<160x16xf32>
    %40 = vector.broadcast %21 : vector<160x1xf32> to vector<160x16xf32>
    %41 = arith.mulf %39, %40 : vector<160x16xf32>
    %42 = vector.shape_cast %41 : vector<160x16xf32> to vector<10x16x16xf32>
    %43 = vector.shape_cast %26 : vector<16x1xf32> to vector<1x16x1xf32>
    %44 = vector.broadcast %43 : vector<1x16x1xf32> to vector<10x16x16xf32>
    %45 = arith.mulf %42, %44 : vector<10x16x16xf32>
    %46 = vector.shape_cast %45 : vector<10x16x16xf32> to vector<160x16xf32>
    %47 = vector.shape_cast %30 : vector<16x1xf32> to vector<1x16x1xf32>
    %48 = vector.broadcast %47 : vector<1x16x1xf32> to vector<10x16x16xf32>
    %49 = arith.mulf %42, %48 : vector<10x16x16xf32>
    %50 = vector.shape_cast %49 : vector<10x16x16xf32> to vector<160x16xf32>
    %c1_i32_26 = arith.constant 1 : i32
    %51 = tpu.dynamic_rotate %46 by %c1_i32_26 dim 0 : vector<160x16xf32>, i32 -> vector<160x16xf32>
    %52 = vector.shape_cast %51 : vector<160x16xf32> to vector<10x16x16xf32>
    %c159_i32 = arith.constant 159 : i32
    %53 = tpu.dynamic_rotate %50 by %c159_i32 dim 0 : vector<160x16xf32>, i32 -> vector<160x16xf32>
    %54 = vector.shape_cast %53 : vector<160x16xf32> to vector<10x16x16xf32>
    %55 = vector.extract_strided_slice %52 {offsets = [0, 0, 0], sizes = [8, 16, 16], strides = [1, 1, 1]} : vector<10x16x16xf32> to vector<8x16x16xf32>
    %56 = vector.extract_strided_slice %31 {offsets = [0, 0, 0], sizes = [1, 1, 16], strides = [1, 1, 1]} : vector<3x3x16xf32> to vector<1x1x16xf32>
    %57 = vector.shape_cast %56 : vector<1x1x16xf32> to vector<16xf32>
    %58 = vector.shape_cast %57 : vector<16xf32> to vector<1x1x16xf32>
    %59 = vector.broadcast %58 : vector<1x1x16xf32> to vector<8x16x16xf32>
    %60 = arith.mulf %55, %59 : vector<8x16x16xf32>
    %61 = vector.extract_strided_slice %42 {offsets = [0, 0, 0], sizes = [8, 16, 16], strides = [1, 1, 1]} : vector<10x16x16xf32> to vector<8x16x16xf32>
    %62 = vector.extract_strided_slice %31 {offsets = [0, 1, 0], sizes = [1, 1, 16], strides = [1, 1, 1]} : vector<3x3x16xf32> to vector<1x1x16xf32>
    %63 = vector.shape_cast %62 : vector<1x1x16xf32> to vector<16xf32>
    %64 = vector.shape_cast %63 : vector<16xf32> to vector<1x1x16xf32>
    %65 = vector.broadcast %64 : vector<1x1x16xf32> to vector<8x16x16xf32>
    %66 = arith.mulf %61, %65 : vector<8x16x16xf32>
    %67 = arith.addf %60, %66 : vector<8x16x16xf32>
    %68 = vector.extract_strided_slice %54 {offsets = [0, 0, 0], sizes = [8, 16, 16], strides = [1, 1, 1]} : vector<10x16x16xf32> to vector<8x16x16xf32>
    %69 = vector.extract_strided_slice %31 {offsets = [0, 2, 0], sizes = [1, 1, 16], strides = [1, 1, 1]} : vector<3x3x16xf32> to vector<1x1x16xf32>
    %70 = vector.shape_cast %69 : vector<1x1x16xf32> to vector<16xf32>
    %71 = vector.shape_cast %70 : vector<16xf32> to vector<1x1x16xf32>
    %72 = vector.broadcast %71 : vector<1x1x16xf32> to vector<8x16x16xf32>
    %73 = arith.mulf %68, %72 : vector<8x16x16xf32>
    %74 = arith.addf %67, %73 : vector<8x16x16xf32>
    %75 = vector.extract_strided_slice %52 {offsets = [1, 0, 0], sizes = [8, 16, 16], strides = [1, 1, 1]} : vector<10x16x16xf32> to vector<8x16x16xf32>
    %76 = vector.extract_strided_slice %31 {offsets = [1, 0, 0], sizes = [1, 1, 16], strides = [1, 1, 1]} : vector<3x3x16xf32> to vector<1x1x16xf32>
    %77 = vector.shape_cast %76 : vector<1x1x16xf32> to vector<16xf32>
    %78 = vector.shape_cast %77 : vector<16xf32> to vector<1x1x16xf32>
    %79 = vector.broadcast %78 : vector<1x1x16xf32> to vector<8x16x16xf32>
    %80 = arith.mulf %75, %79 : vector<8x16x16xf32>
    %81 = arith.addf %74, %80 : vector<8x16x16xf32>
    %82 = vector.extract_strided_slice %42 {offsets = [1, 0, 0], sizes = [8, 16, 16], strides = [1, 1, 1]} : vector<10x16x16xf32> to vector<8x16x16xf32>
    %83 = vector.extract_strided_slice %31 {offsets = [1, 1, 0], sizes = [1, 1, 16], strides = [1, 1, 1]} : vector<3x3x16xf32> to vector<1x1x16xf32>
    %84 = vector.shape_cast %83 : vector<1x1x16xf32> to vector<16xf32>
    %85 = vector.shape_cast %84 : vector<16xf32> to vector<1x1x16xf32>
    %86 = vector.broadcast %85 : vector<1x1x16xf32> to vector<8x16x16xf32>
    %87 = arith.mulf %82, %86 : vector<8x16x16xf32>
    %88 = arith.addf %81, %87 : vector<8x16x16xf32>
    %89 = vector.extract_strided_slice %54 {offsets = [1, 0, 0], sizes = [8, 16, 16], strides = [1, 1, 1]} : vector<10x16x16xf32> to vector<8x16x16xf32>
    %90 = vector.extract_strided_slice %31 {offsets = [1, 2, 0], sizes = [1, 1, 16], strides = [1, 1, 1]} : vector<3x3x16xf32> to vector<1x1x16xf32>
    %91 = vector.shape_cast %90 : vector<1x1x16xf32> to vector<16xf32>
    %92 = vector.shape_cast %91 : vector<16xf32> to vector<1x1x16xf32>
    %93 = vector.broadcast %92 : vector<1x1x16xf32> to vector<8x16x16xf32>
    %94 = arith.mulf %89, %93 : vector<8x16x16xf32>
    %95 = arith.addf %88, %94 : vector<8x16x16xf32>
    %96 = vector.extract_strided_slice %52 {offsets = [2, 0, 0], sizes = [8, 16, 16], strides = [1, 1, 1]} : vector<10x16x16xf32> to vector<8x16x16xf32>
    %97 = vector.extract_strided_slice %31 {offsets = [2, 0, 0], sizes = [1, 1, 16], strides = [1, 1, 1]} : vector<3x3x16xf32> to vector<1x1x16xf32>
    %98 = vector.shape_cast %97 : vector<1x1x16xf32> to vector<16xf32>
    %99 = vector.shape_cast %98 : vector<16xf32> to vector<1x1x16xf32>
    %100 = vector.broadcast %99 : vector<1x1x16xf32> to vector<8x16x16xf32>
    %101 = arith.mulf %96, %100 : vector<8x16x16xf32>
    %102 = arith.addf %95, %101 : vector<8x16x16xf32>
    %103 = vector.extract_strided_slice %42 {offsets = [2, 0, 0], sizes = [8, 16, 16], strides = [1, 1, 1]} : vector<10x16x16xf32> to vector<8x16x16xf32>
    %104 = vector.extract_strided_slice %31 {offsets = [2, 1, 0], sizes = [1, 1, 16], strides = [1, 1, 1]} : vector<3x3x16xf32> to vector<1x1x16xf32>
    %105 = vector.shape_cast %104 : vector<1x1x16xf32> to vector<16xf32>
    %106 = vector.shape_cast %105 : vector<16xf32> to vector<1x1x16xf32>
    %107 = vector.broadcast %106 : vector<1x1x16xf32> to vector<8x16x16xf32>
    %108 = arith.mulf %103, %107 : vector<8x16x16xf32>
    %109 = arith.addf %102, %108 : vector<8x16x16xf32>
    %110 = vector.extract_strided_slice %54 {offsets = [2, 0, 0], sizes = [8, 16, 16], strides = [1, 1, 1]} : vector<10x16x16xf32> to vector<8x16x16xf32>
    %111 = vector.extract_strided_slice %31 {offsets = [2, 2, 0], sizes = [1, 1, 16], strides = [1, 1, 1]} : vector<3x3x16xf32> to vector<1x1x16xf32>
    %112 = vector.shape_cast %111 : vector<1x1x16xf32> to vector<16xf32>
    %113 = vector.shape_cast %112 : vector<16xf32> to vector<1x1x16xf32>
    %114 = vector.broadcast %113 : vector<1x1x16xf32> to vector<8x16x16xf32>
    %115 = arith.mulf %110, %114 : vector<8x16x16xf32>
    %116 = arith.addf %109, %115 : vector<8x16x16xf32>
    %117 = vector.shape_cast %33 : vector<1x16xf32> to vector<1x1x16xf32>
    %118 = vector.broadcast %117 : vector<1x1x16xf32> to vector<8x16x16xf32>
    %119 = arith.addf %116, %118 : vector<8x16x16xf32>
    %c0_27 = arith.constant 0 : index
    %c0_28 = arith.constant 0 : index
    %120 = vector.load %arg6[%c0_27, %c0_28] : memref<8x16xbf16, #tpu.memory_space<vmem>>, vector<8x16xbf16>
    %cst_29 = arith.constant dense<0.000000e+00> : vector<160x16xf32>
    %121 = tpu.matmul %7, %120, %cst_29 {dimension_numbers = #tpu.dot_dimension_numbers<[1], [0], [0], [1], [0, 0, 1, 1], [], []>} : vector<160x8xbf16>, vector<8x16xbf16>, vector<160x16xf32> -> vector<160x16xf32>
    %c0_30 = arith.constant 0 : index
    %c0_31 = arith.constant 0 : index
    %122 = vector.load %arg8[%c0_30, %c0_31] : memref<1x16xf32, #tpu.memory_space<vmem>>, vector<1x16xf32>
    %123 = vector.broadcast %122 : vector<1x16xf32> to vector<160x16xf32>
    %124 = arith.addf %121, %123 : vector<160x16xf32>
    %125 = vector.broadcast %21 : vector<160x1xf32> to vector<160x16xf32>
    %126 = arith.mulf %124, %125 : vector<160x16xf32>
    %127 = vector.shape_cast %126 : vector<160x16xf32> to vector<10x16x16xf32>
    %128 = vector.shape_cast %26 : vector<16x1xf32> to vector<1x16x1xf32>
    %129 = vector.broadcast %128 : vector<1x16x1xf32> to vector<10x16x16xf32>
    %130 = arith.mulf %127, %129 : vector<10x16x16xf32>
    %131 = vector.shape_cast %130 : vector<10x16x16xf32> to vector<160x16xf32>
    %132 = vector.shape_cast %30 : vector<16x1xf32> to vector<1x16x1xf32>
    %133 = vector.broadcast %132 : vector<1x16x1xf32> to vector<10x16x16xf32>
    %134 = arith.mulf %127, %133 : vector<10x16x16xf32>
    %135 = vector.shape_cast %134 : vector<10x16x16xf32> to vector<160x16xf32>
    %c1_i32_32 = arith.constant 1 : i32
    %136 = tpu.dynamic_rotate %131 by %c1_i32_32 dim 0 : vector<160x16xf32>, i32 -> vector<160x16xf32>
    %137 = vector.shape_cast %136 : vector<160x16xf32> to vector<10x16x16xf32>
    %c159_i32_33 = arith.constant 159 : i32
    %138 = tpu.dynamic_rotate %135 by %c159_i32_33 dim 0 : vector<160x16xf32>, i32 -> vector<160x16xf32>
    %139 = vector.shape_cast %138 : vector<160x16xf32> to vector<10x16x16xf32>
    %140 = vector.extract_strided_slice %137 {offsets = [0, 0, 0], sizes = [8, 16, 16], strides = [1, 1, 1]} : vector<10x16x16xf32> to vector<8x16x16xf32>
    %141 = vector.extract_strided_slice %32 {offsets = [0, 0, 0], sizes = [1, 1, 16], strides = [1, 1, 1]} : vector<3x3x16xf32> to vector<1x1x16xf32>
    %142 = vector.shape_cast %141 : vector<1x1x16xf32> to vector<16xf32>
    %143 = vector.shape_cast %142 : vector<16xf32> to vector<1x1x16xf32>
    %144 = vector.broadcast %143 : vector<1x1x16xf32> to vector<8x16x16xf32>
    %145 = arith.mulf %140, %144 : vector<8x16x16xf32>
    %146 = vector.extract_strided_slice %127 {offsets = [0, 0, 0], sizes = [8, 16, 16], strides = [1, 1, 1]} : vector<10x16x16xf32> to vector<8x16x16xf32>
    %147 = vector.extract_strided_slice %32 {offsets = [0, 1, 0], sizes = [1, 1, 16], strides = [1, 1, 1]} : vector<3x3x16xf32> to vector<1x1x16xf32>
    %148 = vector.shape_cast %147 : vector<1x1x16xf32> to vector<16xf32>
    %149 = vector.shape_cast %148 : vector<16xf32> to vector<1x1x16xf32>
    %150 = vector.broadcast %149 : vector<1x1x16xf32> to vector<8x16x16xf32>
    %151 = arith.mulf %146, %150 : vector<8x16x16xf32>
    %152 = arith.addf %145, %151 : vector<8x16x16xf32>
    %153 = vector.extract_strided_slice %139 {offsets = [0, 0, 0], sizes = [8, 16, 16], strides = [1, 1, 1]} : vector<10x16x16xf32> to vector<8x16x16xf32>
    %154 = vector.extract_strided_slice %32 {offsets = [0, 2, 0], sizes = [1, 1, 16], strides = [1, 1, 1]} : vector<3x3x16xf32> to vector<1x1x16xf32>
    %155 = vector.shape_cast %154 : vector<1x1x16xf32> to vector<16xf32>
    %156 = vector.shape_cast %155 : vector<16xf32> to vector<1x1x16xf32>
    %157 = vector.broadcast %156 : vector<1x1x16xf32> to vector<8x16x16xf32>
    %158 = arith.mulf %153, %157 : vector<8x16x16xf32>
    %159 = arith.addf %152, %158 : vector<8x16x16xf32>
    %160 = vector.extract_strided_slice %137 {offsets = [1, 0, 0], sizes = [8, 16, 16], strides = [1, 1, 1]} : vector<10x16x16xf32> to vector<8x16x16xf32>
    %161 = vector.extract_strided_slice %32 {offsets = [1, 0, 0], sizes = [1, 1, 16], strides = [1, 1, 1]} : vector<3x3x16xf32> to vector<1x1x16xf32>
    %162 = vector.shape_cast %161 : vector<1x1x16xf32> to vector<16xf32>
    %163 = vector.shape_cast %162 : vector<16xf32> to vector<1x1x16xf32>
    %164 = vector.broadcast %163 : vector<1x1x16xf32> to vector<8x16x16xf32>
    %165 = arith.mulf %160, %164 : vector<8x16x16xf32>
    %166 = arith.addf %159, %165 : vector<8x16x16xf32>
    %167 = vector.extract_strided_slice %127 {offsets = [1, 0, 0], sizes = [8, 16, 16], strides = [1, 1, 1]} : vector<10x16x16xf32> to vector<8x16x16xf32>
    %168 = vector.extract_strided_slice %32 {offsets = [1, 1, 0], sizes = [1, 1, 16], strides = [1, 1, 1]} : vector<3x3x16xf32> to vector<1x1x16xf32>
    %169 = vector.shape_cast %168 : vector<1x1x16xf32> to vector<16xf32>
    %170 = vector.shape_cast %169 : vector<16xf32> to vector<1x1x16xf32>
    %171 = vector.broadcast %170 : vector<1x1x16xf32> to vector<8x16x16xf32>
    %172 = arith.mulf %167, %171 : vector<8x16x16xf32>
    %173 = arith.addf %166, %172 : vector<8x16x16xf32>
    %174 = vector.extract_strided_slice %139 {offsets = [1, 0, 0], sizes = [8, 16, 16], strides = [1, 1, 1]} : vector<10x16x16xf32> to vector<8x16x16xf32>
    %175 = vector.extract_strided_slice %32 {offsets = [1, 2, 0], sizes = [1, 1, 16], strides = [1, 1, 1]} : vector<3x3x16xf32> to vector<1x1x16xf32>
    %176 = vector.shape_cast %175 : vector<1x1x16xf32> to vector<16xf32>
    %177 = vector.shape_cast %176 : vector<16xf32> to vector<1x1x16xf32>
    %178 = vector.broadcast %177 : vector<1x1x16xf32> to vector<8x16x16xf32>
    %179 = arith.mulf %174, %178 : vector<8x16x16xf32>
    %180 = arith.addf %173, %179 : vector<8x16x16xf32>
    %181 = vector.extract_strided_slice %137 {offsets = [2, 0, 0], sizes = [8, 16, 16], strides = [1, 1, 1]} : vector<10x16x16xf32> to vector<8x16x16xf32>
    %182 = vector.extract_strided_slice %32 {offsets = [2, 0, 0], sizes = [1, 1, 16], strides = [1, 1, 1]} : vector<3x3x16xf32> to vector<1x1x16xf32>
    %183 = vector.shape_cast %182 : vector<1x1x16xf32> to vector<16xf32>
    %184 = vector.shape_cast %183 : vector<16xf32> to vector<1x1x16xf32>
    %185 = vector.broadcast %184 : vector<1x1x16xf32> to vector<8x16x16xf32>
    %186 = arith.mulf %181, %185 : vector<8x16x16xf32>
    %187 = arith.addf %180, %186 : vector<8x16x16xf32>
    %188 = vector.extract_strided_slice %127 {offsets = [2, 0, 0], sizes = [8, 16, 16], strides = [1, 1, 1]} : vector<10x16x16xf32> to vector<8x16x16xf32>
    %189 = vector.extract_strided_slice %32 {offsets = [2, 1, 0], sizes = [1, 1, 16], strides = [1, 1, 1]} : vector<3x3x16xf32> to vector<1x1x16xf32>
    %190 = vector.shape_cast %189 : vector<1x1x16xf32> to vector<16xf32>
    %191 = vector.shape_cast %190 : vector<16xf32> to vector<1x1x16xf32>
    %192 = vector.broadcast %191 : vector<1x1x16xf32> to vector<8x16x16xf32>
    %193 = arith.mulf %188, %192 : vector<8x16x16xf32>
    %194 = arith.addf %187, %193 : vector<8x16x16xf32>
    %195 = vector.extract_strided_slice %139 {offsets = [2, 0, 0], sizes = [8, 16, 16], strides = [1, 1, 1]} : vector<10x16x16xf32> to vector<8x16x16xf32>
    %196 = vector.extract_strided_slice %32 {offsets = [2, 2, 0], sizes = [1, 1, 16], strides = [1, 1, 1]} : vector<3x3x16xf32> to vector<1x1x16xf32>
    %197 = vector.shape_cast %196 : vector<1x1x16xf32> to vector<16xf32>
    %198 = vector.shape_cast %197 : vector<16xf32> to vector<1x1x16xf32>
    %199 = vector.broadcast %198 : vector<1x1x16xf32> to vector<8x16x16xf32>
    %200 = arith.mulf %195, %199 : vector<8x16x16xf32>
    %201 = arith.addf %194, %200 : vector<8x16x16xf32>
    %202 = vector.shape_cast %34 : vector<1x16xf32> to vector<1x1x16xf32>
    %203 = vector.broadcast %202 : vector<1x1x16xf32> to vector<8x16x16xf32>
    %204 = arith.addf %201, %203 : vector<8x16x16xf32>
    %cst_34 = arith.constant 5.000000e-01 : f32
    %205 = vector.broadcast %cst_34 : f32 to vector<8x16x16xf32>
    %206 = arith.mulf %205, %119 : vector<8x16x16xf32>
    %cst_35 = arith.constant 0.707106769 : f32
    %207 = vector.broadcast %cst_35 : f32 to vector<8x16x16xf32>
    %208 = arith.mulf %119, %207 : vector<8x16x16xf32>
    %209 = math.erf %208 : vector<8x16x16xf32>
    %cst_36 = arith.constant 1.000000e+00 : f32
    %210 = vector.broadcast %cst_36 : f32 to vector<8x16x16xf32>
    %211 = arith.addf %210, %209 : vector<8x16x16xf32>
    %212 = arith.mulf %206, %211 : vector<8x16x16xf32>
    %213 = arith.mulf %212, %204 : vector<8x16x16xf32>
    %214 = vector.shape_cast %213 : vector<8x16x16xf32> to vector<128x16xf32>
    %215 = arith.truncf %214 : vector<128x16xf32> to vector<128x16xbf16>
    %c0_37 = arith.constant 0 : index
    %c0_38 = arith.constant 0 : index
    %216 = vector.load %arg13[%c0_37, %c0_38] : memref<16x8xbf16, #tpu.memory_space<vmem>>, vector<16x8xbf16>
    %cst_39 = arith.constant dense<0.000000e+00> : vector<128x8xf32>
    %217 = tpu.matmul %215, %216, %cst_39 {dimension_numbers = #tpu.dot_dimension_numbers<[1], [0], [0], [1], [0, 0, 1, 1], [], []>} : vector<128x16xbf16>, vector<16x8xbf16>, vector<128x8xf32> -> vector<128x8xf32>
    %c0_40 = arith.constant 0 : index
    %c0_41 = arith.constant 0 : index
    %218 = vector.load %arg14[%c0_40, %c0_41] : memref<1x8xf32, #tpu.memory_space<vmem>>, vector<1x8xf32>
    %219 = vector.broadcast %218 : vector<1x8xf32> to vector<128x8xf32>
    %220 = arith.addf %217, %219 : vector<128x8xf32>
    %221 = vector.shape_cast %220 : vector<128x8xf32> to vector<8x16x8xf32>
    %c0_42 = arith.constant 0 : index
    %c0_43 = arith.constant 0 : index
    %c0_44 = arith.constant 0 : index
    %c0_45 = arith.constant 0 : index
    %222 = vector.load %arg15[%c0_42, %c0_43, %c0_44, %c0_45] : memref<1x8x16x8xf32, #tpu.memory_space<vmem>>, vector<1x8x16x8xf32>
    %223 = vector.shape_cast %222 : vector<1x8x16x8xf32> to vector<8x16x8xf32>
    %224 = vector.shape_cast %221 : vector<8x16x8xf32> to vector<1x8x16x8xf32>
    tpu.vector_store %arg15[%c0_42, %c0_43, %c0_44, %c0_45], %224 {strides = array<i32>} : memref<1x8x16x8xf32, #tpu.memory_space<vmem>>, vector<1x8x16x8xf32>,
    return
  }
  func.func @transform_0(%arg0: i32, %arg1: i32) -> (i32, i32, i32, i32) {
    %c0_i32 = arith.constant 0 : i32
    %c0_i32_0 = arith.constant 0 : i32
    %c0_i32_1 = arith.constant 0 : i32
    return %arg0, %arg1, %c0_i32, %c0_i32_0 : i32, i32, i32, i32
  }
  func.func @transform_1(%arg0: i32, %arg1: i32) -> (i32, i32, i32, i32) {
    %c8_i32 = arith.constant 8 : i32
    %0 = arith.muli %arg1, %c8_i32 : i32
    %c1_i32 = arith.constant 1 : i32
    %1 = arith.subi %0, %c1_i32 : i32
    %c0_i32 = arith.constant 0 : i32
    %2 = arith.maxsi %1, %c0_i32 : i32
    %c0_i32_0 = arith.constant 0 : i32
    %c0_i32_1 = arith.constant 0 : i32
    %c0_i32_2 = arith.constant 0 : i32
    return %arg0, %2, %c0_i32_0, %c0_i32_1 : i32, i32, i32, i32
  }
  func.func @transform_2(%arg0: i32, %arg1: i32) -> (i32, i32, i32, i32) {
    %c8_i32 = arith.constant 8 : i32
    %0 = arith.muli %arg1, %c8_i32 : i32
    %c8_i32_0 = arith.constant 8 : i32
    %1 = arith.addi %0, %c8_i32_0 : i32
    %c15_i32 = arith.constant 15 : i32
    %2 = arith.minsi %1, %c15_i32 : i32
    %c0_i32 = arith.constant 0 : i32
    %c0_i32_1 = arith.constant 0 : i32
    %c0_i32_2 = arith.constant 0 : i32
    return %arg0, %2, %c0_i32, %c0_i32_1 : i32, i32, i32, i32
  }
  func.func @transform_3(%arg0: i32, %arg1: i32) -> (i32, i32) {
    %c0_i32 = arith.constant 0 : i32
    %c0_i32_0 = arith.constant 0 : i32
    %c0_i32_1 = arith.constant 0 : i32
    return %c0_i32, %c0_i32_0 : i32, i32
  }
  func.func @transform_4(%arg0: i32, %arg1: i32) -> (i32, i32) {
    %c0_i32 = arith.constant 0 : i32
    %c0_i32_0 = arith.constant 0 : i32
    %c0_i32_1 = arith.constant 0 : i32
    return %c0_i32, %c0_i32_0 : i32, i32
  }
  func.func @transform_5(%arg0: i32, %arg1: i32) -> (i32, i32) {
    %c0_i32 = arith.constant 0 : i32
    %c0_i32_0 = arith.constant 0 : i32
    %c0_i32_1 = arith.constant 0 : i32
    return %c0_i32, %c0_i32_0 : i32, i32
  }
  func.func @transform_6(%arg0: i32, %arg1: i32) -> (i32, i32) {
    %c0_i32 = arith.constant 0 : i32
    %c0_i32_0 = arith.constant 0 : i32
    %c0_i32_1 = arith.constant 0 : i32
    return %c0_i32, %c0_i32_0 : i32, i32
  }
  func.func @transform_7(%arg0: i32, %arg1: i32) -> (i32, i32, i32) {
    %c0_i32 = arith.constant 0 : i32
    %c0_i32_0 = arith.constant 0 : i32
    %c0_i32_1 = arith.constant 0 : i32
    %c0_i32_2 = arith.constant 0 : i32
    return %c0_i32, %c0_i32_0, %c0_i32_1 : i32, i32, i32
  }
  func.func @transform_8(%arg0: i32, %arg1: i32) -> (i32, i32, i32) {
    %c0_i32 = arith.constant 0 : i32
    %c0_i32_0 = arith.constant 0 : i32
    %c0_i32_1 = arith.constant 0 : i32
    %c0_i32_2 = arith.constant 0 : i32
    return %c0_i32, %c0_i32_0, %c0_i32_1 : i32, i32, i32
  }
  func.func @transform_9(%arg0: i32, %arg1: i32) -> (i32, i32) {
    %c0_i32 = arith.constant 0 : i32
    %c0_i32_0 = arith.constant 0 : i32
    %c0_i32_1 = arith.constant 0 : i32
    return %c0_i32, %c0_i32_0 : i32, i32
  }
  func.func @transform_10(%arg0: i32, %arg1: i32) -> (i32, i32) {
    %c0_i32 = arith.constant 0 : i32
    %c0_i32_0 = arith.constant 0 : i32
    %c0_i32_1 = arith.constant 0 : i32
    return %c0_i32, %c0_i32_0 : i32, i32
  }
  func.func @transform_11(%arg0: i32, %arg1: i32) -> (i32, i32) {
    %c0_i32 = arith.constant 0 : i32
    %c0_i32_0 = arith.constant 0 : i32
    %c0_i32_1 = arith.constant 0 : i32
    return %c0_i32, %c0_i32_0 : i32, i32
  }
  func.func @transform_12(%arg0: i32, %arg1: i32) -> (i32, i32) {
    %c0_i32 = arith.constant 0 : i32
    %c0_i32_0 = arith.constant 0 : i32
    %c0_i32_1 = arith.constant 0 : i32
    return %c0_i32, %c0_i32_0 : i32, i32
  }
  func.func @transform_13(%arg0: i32, %arg1: i32) -> (i32, i32, i32, i32) {
    %c0_i32 = arith.constant 0 : i32
    %c0_i32_0 = arith.constant 0 : i32
    %c0_i32_1 = arith.constant 0 : i32
    return %arg0, %arg1, %c0_i32, %c0_i32_0 : i32, i32, i32, i32
  }
}

</mosaic_0001>

<llo_original>
// kernel: _lambda_.1
$region0: #{_lambda_.1}
  #allocation0 [shape = 'u32[]', space=smem, size = 0x4, offset = 0x4, fixed_abs, tag = 'smem constant byte address 0x4 - core index']
  #allocation1 [shape = 'u32[72,128]{1,0:T(1,128)}', space=vmem, size = 0x9000, scoped, tag = 'internal scratch']
  %s0 = inlined_call_operand.vmem [shape: bf16[2,16,16,8], index: 0, kind: input, shape index: {}, may-alias: {0,1,2}]
  %s1 = inlined_call_operand.vmem [shape: bf16[2,16,16,8], index: 1, kind: input, shape index: {}, may-alias: {0,1,2}]
  %s2 = inlined_call_operand.vmem [shape: bf16[2,16,16,8], index: 2, kind: input, shape index: {}, may-alias: {0,1,2}]
  %s3 = inlined_call_operand.vmem [shape: bf16[8,16], index: 3, kind: input, shape index: {}]
  %s4 = inlined_call_operand.vmem [shape: bf16[8,16], index: 4, kind: input, shape index: {}]
  %s5 = inlined_call_operand.vmem [shape: f32[1,16], index: 5, kind: input, shape index: {}]
  %s6 = inlined_call_operand.vmem [shape: f32[1,16], index: 6, kind: input, shape index: {}]
  %s7 = inlined_call_operand.vmem [shape: f32[3,3,16], index: 7, kind: input, shape index: {}]
  %s8 = inlined_call_operand.vmem [shape: f32[3,3,16], index: 8, kind: input, shape index: {}]
  %s9 = inlined_call_operand.vmem [shape: f32[1,16], index: 9, kind: input, shape index: {}]
  %s10 = inlined_call_operand.vmem [shape: f32[1,16], index: 10, kind: input, shape index: {}]
  %s11 = inlined_call_operand.vmem [shape: bf16[16,8], index: 11, kind: input, shape index: {}]
  %s12 = inlined_call_operand.vmem [shape: f32[1,8], index: 12, kind: input, shape index: {}]
  %s13 = inlined_call_operand.vmem [shape: f32[2,16,16,8], index: 13, kind: output, shape index: {}]
  %s14 = sld [smem:[#allocation0]]
  $region85: #{_lambda_.1} parent=0
    _
  %s16 = ssub.s32 1, %s14
  %s17 = scalar_select 0, %s16, %s14
  loop: start=0, step=1, limit=6
  $region2: #{_lambda_.1} parent=0 // loop_pre_header
    _
  $region3: #{_lambda_.1} parent=0 // loop_header
    %s19 = sphi 0, %s23
    %p20 = scmp.ge.s32.totalorder %s19, 6
    %s26 = sphi 0, %s38
    %s27 = sphi 0, %s34
    %s28 = sphi 0, %s26
    %s29 = sphi 0, %s27
    %s30 = sphi 0, %s28
    %s31 = sphi 0, %s29
    %s43 = sphi 0, %s45
    %s46 = sphi 0, %s43
    %s47 = sphi 0, %s46
    %s63 = sphi 0, %s47
    %s79 = sphi 0, %s81
    %s82 = sphi 0, %s79
    %s83 = sphi 0, %s82
    %s99 = sphi 0, %s83
    %s115 = sphi 0, %s117
    %s118 = sphi 0, %s115
    %s119 = sphi 0, %s118
    %s135 = sphi 0, %s119
    %s139 = sphi 0, %s139
    %s141 = sphi 0, %s139
    %s142 = sphi 0, %s141
    %s156 = sphi 0, %s142
    %s160 = sphi 0, %s160
    %s162 = sphi 0, %s160
    %s163 = sphi 0, %s162
    %s177 = sphi 0, %s163
    %s181 = sphi 0, %s181
    %s183 = sphi 0, %s181
    %s184 = sphi 0, %s183
    %s198 = sphi 0, %s184
    %s202 = sphi 0, %s202
    %s204 = sphi 0, %s202
    %s205 = sphi 0, %s204
    %s219 = sphi 0, %s205
    %s223 = sphi 0, %s223
    %s225 = sphi 0, %s223
    %s226 = sphi 0, %s225
    %s240 = sphi 0, %s226
    %s244 = sphi 0, %s244
    %s246 = sphi 0, %s244
    %s247 = sphi 0, %s246
    %s261 = sphi 0, %s247
    %s265 = sphi 0, %s265
    %s267 = sphi 0, %s265
    %s268 = sphi 0, %s267
    %s282 = sphi 0, %s268
    %s286 = sphi 0, %s286
    %s288 = sphi 0, %s286
    %s289 = sphi 0, %s288
    %s303 = sphi 0, %s289
    %s307 = sphi 0, %s307
    %s309 = sphi 0, %s307
    %s310 = sphi 0, %s309
    %s324 = sphi 0, %s310
    %s328 = sphi 0, %s328
    %s330 = sphi 0, %s328
    %s331 = sphi 0, %s330
    %s345 = sphi 0, %s331
    %s353 = sphi 0, %s355
    %s356 = sphi 0, %s353
    %s357 = sphi 0, %s356
    %s373 = sphi 0, %s357
  $region4: #{_lambda_.1} parent=0 // loop_header_branch
    %22 = sbr.rel (%p20) target = $region8
  $region5: #{_lambda_.1} parent=0 // loop_body
    %s24 = ssub.s32 %s19, 1
    %s25 = ssub.s32 %s19, 2
    %s32 = sadd.s32 1, %s27
    %p33 = scmp.ge.s32.totalorder %s32, 2
    %s34 = scalar_select %p33, 0, %s32
    %s35 = sadd.s32 1, %s26
    %s36 = scalar_select %p33, %s35, %s26
    %p37 = scmp.ge.s32.totalorder %s36, 2
    %s38 = scalar_select %p37, 0, %s36
    %s39 = ssub.s32 %s26, %s38
    %s40 = ssub.s32 %s27, %s34
    %s41 = sor.u32 %s39, %s40
    %p42 = scmp.eq.s32.totalorder %s41, 0
    %s44 = sadd.s32 %s43, 1
    %s45 = scalar_select %p42, %s43, %s44
    %p48 = pneg %p42
    %p49 = scmp.eq.s32.totalorder %s19, 3
    %p50 = por %p48, %p49
    %p51 = scmp.ne.s32.totalorder %s43, %s46
    %p52 = scmp.eq.s32.totalorder %s19, 0
    %p53 = por %p51, %p52
    %p54 = scmp.ne.s32.totalorder %s43, %s46
    %p55 = scmp.eq.s32.totalorder %s24, 3
    %p56 = por %p54, %p55
    %p57 = scmp.ne.s32.totalorder %s46, %s47
    %p58 = scmp.eq.s32.totalorder %s24, 0
    %p59 = por %p57, %p58
    %p60 = scmp.ne.s32.totalorder %s46, %s47
    %p61 = scmp.eq.s32.totalorder %s25, 3
    %p62 = por %p60, %p61
    %p64 = scmp.ne.s32.totalorder %s47, %s63
    %p65 = scmp.eq.s32.totalorder %s25, 0
    %p66 = por %p64, %p65
    %s67 = smul.u32 %s27, 8
    %s68 = ssub.s32 %s67, 1
    %p69 = scmp.gt.s32.totalorder %s68, 0
    %s70 = scalar_select %p69, %s68, 0
    %s71 = smul.u32 %s34, 8
    %s72 = ssub.s32 %s71, 1
    %p73 = scmp.gt.s32.totalorder %s72, 0
    %s74 = scalar_select %p73, %s72, 0
    %s75 = ssub.s32 %s26, %s38
    %s76 = ssub.s32 %s70, %s74
    %s77 = sor.u32 %s75, %s76
    %p78 = scmp.eq.s32.totalorder %s77, 0
    %s80 = sadd.s32 %s79, 1
    %s81 = scalar_select %p78, %s79, %s80
    %p84 = pneg %p78
    %p85 = scmp.eq.s32.totalorder %s19, 3
    %p86 = por %p84, %p85
    %p87 = scmp.ne.s32.totalorder %s79, %s82
    %p88 = scmp.eq.s32.totalorder %s19, 0
    %p89 = por %p87, %p88
    %p90 = scmp.ne.s32.totalorder %s79, %s82
    %p91 = scmp.eq.s32.totalorder %s24, 3
    %p92 = por %p90, %p91
    %p93 = scmp.ne.s32.totalorder %s82, %s83
    %p94 = scmp.eq.s32.totalorder %s24, 0
    %p95 = por %p93, %p94
    %p96 = scmp.ne.s32.totalorder %s82, %s83
    %p97 = scmp.eq.s32.totalorder %s25, 3
    %p98 = por %p96, %p97
    %p100 = scmp.ne.s32.totalorder %s83, %s99
    %p101 = scmp.eq.s32.totalorder %s25, 0
    %p102 = por %p100, %p101
    %s103 = smul.u32 %s27, 8
    %s104 = sadd.s32 %s103, 8
    %p105 = scmp.lt.s32.totalorder %s104, 15
    %s106 = scalar_select %p105, %s104, 15
    %s107 = smul.u32 %s34, 8
    %s108 = sadd.s32 %s107, 8
    %p109 = scmp.lt.s32.totalorder %s108, 15
    %s110 = scalar_select %p109, %s108, 15
    %s111 = ssub.s32 %s26, %s38
    %s112 = ssub.s32 %s106, %s110
    %s113 = sor.u32 %s111, %s112
    %p114 = scmp.eq.s32.totalorder %s113, 0
    %s116 = sadd.s32 %s115, 1
    %s117 = scalar_select %p114, %s115, %s116
    %p120 = pneg %p114
    %p121 = scmp.eq.s32.totalorder %s19, 3
    %p122 = por %p120, %p121
    %p123 = scmp.ne.s32.totalorder %s115, %s118
    %p124 = scmp.eq.s32.totalorder %s19, 0
    %p125 = por %p123, %p124
    %p126 = scmp.ne.s32.totalorder %s115, %s118
    %p127 = scmp.eq.s32.totalorder %s24, 3
    %p128 = por %p126, %p127
    %p129 = scmp.ne.s32.totalorder %s118, %s119
    %p130 = scmp.eq.s32.totalorder %s24, 0
    %p131 = por %p129, %p130
    %p132 = scmp.ne.s32.totalorder %s118, %s119
    %p133 = scmp.eq.s32.totalorder %s25, 3
    %p134 = por %p132, %p133
    %p136 = scmp.ne.s32.totalorder %s119, %s135
    %p137 = scmp.eq.s32.totalorder %s25, 0
    %p138 = por %p136, %p137
    %s140 = sadd.s32 %s139, 1
    %p143 = scmp.eq.s32.totalorder %s19, 3
    %p144 = scmp.ne.s32.totalorder %s139, %s141
    %p145 = scmp.eq.s32.totalorder %s19, 0
    %p146 = por %p144, %p145
    %p147 = scmp.ne.s32.totalorder %s139, %s141
    %p148 = scmp.eq.s32.totalorder %s24, 3
    %p149 = por %p147, %p148
    %p150 = scmp.ne.s32.totalorder %s141, %s142
    %p151 = scmp.eq.s32.totalorder %s24, 0
    %p152 = por %p150, %p151
    %p153 = scmp.ne.s32.totalorder %s141, %s142
    %p154 = scmp.eq.s32.totalorder %s25, 3
    %p155 = por %p153, %p154
    %p157 = scmp.ne.s32.totalorder %s142, %s156
    %p158 = scmp.eq.s32.totalorder %s25, 0
    %p159 = por %p157, %p158
    %s161 = sadd.s32 %s160, 1
    %p164 = scmp.eq.s32.totalorder %s19, 3
    %p165 = scmp.ne.s32.totalorder %s160, %s162
    %p166 = scmp.eq.s32.totalorder %s19, 0
    %p167 = por %p165, %p166
    %p168 = scmp.ne.s32.totalorder %s160, %s162
    %p169 = scmp.eq.s32.totalorder %s24, 3
    %p170 = por %p168, %p169
    %p171 = scmp.ne.s32.totalorder %s162, %s163
    %p172 = scmp.eq.s32.totalorder %s24, 0
    %p173 = por %p171, %p172
    %p174 = scmp.ne.s32.totalorder %s162, %s163
    %p175 = scmp.eq.s32.totalorder %s25, 3
    %p176 = por %p174, %p175
    %p178 = scmp.ne.s32.totalorder %s163, %s177
    %p179 = scmp.eq.s32.totalorder %s25, 0
    %p180 = por %p178, %p179
    %s182 = sadd.s32 %s181, 1
    %p185 = scmp.eq.s32.totalorder %s19, 3
    %p186 = scmp.ne.s32.totalorder %s181, %s183
    %p187 = scmp.eq.s32.totalorder %s19, 0
    %p188 = por %p186, %p187
    %p189 = scmp.ne.s32.totalorder %s181, %s183
    %p190 = scmp.eq.s32.totalorder %s24, 3
    %p191 = por %p189, %p190
    %p192 = scmp.ne.s32.totalorder %s183, %s184
    %p193 = scmp.eq.s32.totalorder %s24, 0
    %p194 = por %p192, %p193
    %p195 = scmp.ne.s32.totalorder %s183, %s184
    %p196 = scmp.eq.s32.totalorder %s25, 3
    %p197 = por %p195, %p196
    %p199 = scmp.ne.s32.totalorder %s184, %s198
    %p200 = scmp.eq.s32.totalorder %s25, 0
    %p201 = por %p199, %p200
    %s203 = sadd.s32 %s202, 1
    %p206 = scmp.eq.s32.totalorder %s19, 3
    %p207 = scmp.ne.s32.totalorder %s202, %s204
    %p208 = scmp.eq.s32.totalorder %s19, 0
    %p209 = por %p207, %p208
    %p210 = scmp.ne.s32.totalorder %s202, %s204
    %p211 = scmp.eq.s32.totalorder %s24, 3
    %p212 = por %p210, %p211
    %p213 = scmp.ne.s32.totalorder %s204, %s205
    %p214 = scmp.eq.s32.totalorder %s24, 0
    %p215 = por %p213, %p214
    %p216 = scmp.ne.s32.totalorder %s204, %s205
    %p217 = scmp.eq.s32.totalorder %s25, 3
    %p218 = por %p216, %p217
    %p220 = scmp.ne.s32.totalorder %s205, %s219
    %p221 = scmp.eq.s32.totalorder %s25, 0
    %p222 = por %p220, %p221
    %s224 = sadd.s32 %s223, 1
    %p227 = scmp.eq.s32.totalorder %s19, 3
    %p228 = scmp.ne.s32.totalorder %s223, %s225
    %p229 = scmp.eq.s32.totalorder %s19, 0
    %p230 = por %p228, %p229
    %p231 = scmp.ne.s32.totalorder %s223, %s225
    %p232 = scmp.eq.s32.totalorder %s24, 3
    %p233 = por %p231, %p232
    %p234 = scmp.ne.s32.totalorder %s225, %s226
    %p235 = scmp.eq.s32.totalorder %s24, 0
    %p236 = por %p234, %p235
    %p237 = scmp.ne.s32.totalorder %s225, %s226
    %p238 = scmp.eq.s32.totalorder %s25, 3
    %p239 = por %p237, %p238
    %p241 = scmp.ne.s32.totalorder %s226, %s240
    %p242 = scmp.eq.s32.totalorder %s25, 0
    %p243 = por %p241, %p242
    %s245 = sadd.s32 %s244, 1
    %p248 = scmp.eq.s32.totalorder %s19, 3
    %p249 = scmp.ne.s32.totalorder %s244, %s246
    %p250 = scmp.eq.s32.totalorder %s19, 0
    %p251 = por %p249, %p250
    %p252 = scmp.ne.s32.totalorder %s244, %s246
    %p253 = scmp.eq.s32.totalorder %s24, 3
    %p254 = por %p252, %p253
    %p255 = scmp.ne.s32.totalorder %s246, %s247
    %p256 = scmp.eq.s32.totalorder %s24, 0
    %p257 = por %p255, %p256
    %p258 = scmp.ne.s32.totalorder %s246, %s247
    %p259 = scmp.eq.s32.totalorder %s25, 3
    %p260 = por %p258, %p259
    %p262 = scmp.ne.s32.totalorder %s247, %s261
    %p263 = scmp.eq.s32.totalorder %s25, 0
    %p264 = por %p262, %p263
    %s266 = sadd.s32 %s265, 1
    %p269 = scmp.eq.s32.totalorder %s19, 3
    %p270 = scmp.ne.s32.totalorder %s265, %s267
    %p271 = scmp.eq.s32.totalorder %s19, 0
    %p272 = por %p270, %p271
    %p273 = scmp.ne.s32.totalorder %s265, %s267
    %p274 = scmp.eq.s32.totalorder %s24, 3
    %p275 = por %p273, %p274
    %p276 = scmp.ne.s32.totalorder %s267, %s268
    %p277 = scmp.eq.s32.totalorder %s24, 0
    %p278 = por %p276, %p277
    %p279 = scmp.ne.s32.totalorder %s267, %s268
    %p280 = scmp.eq.s32.totalorder %s25, 3
    %p281 = por %p279, %p280
    %p283 = scmp.ne.s32.totalorder %s268, %s282
    %p284 = scmp.eq.s32.totalorder %s25, 0
    %p285 = por %p283, %p284
    %s287 = sadd.s32 %s286, 1
    %p290 = scmp.eq.s32.totalorder %s19, 3
    %p291 = scmp.ne.s32.totalorder %s286, %s288
    %p292 = scmp.eq.s32.totalorder %s19, 0
    %p293 = por %p291, %p292
    %p294 = scmp.ne.s32.totalorder %s286, %s288
    %p295 = scmp.eq.s32.totalorder %s24, 3
    %p296 = por %p294, %p295
    %p297 = scmp.ne.s32.totalorder %s288, %s289
    %p298 = scmp.eq.s32.totalorder %s24, 0
    %p299 = por %p297, %p298
    %p300 = scmp.ne.s32.totalorder %s288, %s289
    %p301 = scmp.eq.s32.totalorder %s25, 3
    %p302 = por %p300, %p301
    %p304 = scmp.ne.s32.totalorder %s289, %s303
    %p305 = scmp.eq.s32.totalorder %s25, 0
    %p306 = por %p304, %p305
    %s308 = sadd.s32 %s307, 1
    %p311 = scmp.eq.s32.totalorder %s19, 3
    %p312 = scmp.ne.s32.totalorder %s307, %s309
    %p313 = scmp.eq.s32.totalorder %s19, 0
    %p314 = por %p312, %p313
    %p315 = scmp.ne.s32.totalorder %s307, %s309
    %p316 = scmp.eq.s32.totalorder %s24, 3
    %p317 = por %p315, %p316
    %p318 = scmp.ne.s32.totalorder %s309, %s310
    %p319 = scmp.eq.s32.totalorder %s24, 0
    %p320 = por %p318, %p319
    %p321 = scmp.ne.s32.totalorder %s309, %s310
    %p322 = scmp.eq.s32.totalorder %s25, 3
    %p323 = por %p321, %p322
    %p325 = scmp.ne.s32.totalorder %s310, %s324
    %p326 = scmp.eq.s32.totalorder %s25, 0
    %p327 = por %p325, %p326
    %s329 = sadd.s32 %s328, 1
    %p332 = scmp.eq.s32.totalorder %s19, 3
    %p333 = scmp.ne.s32.totalorder %s328, %s330
    %p334 = scmp.eq.s32.totalorder %s19, 0
    %p335 = por %p333, %p334
    %p336 = scmp.ne.s32.totalorder %s328, %s330
    %p337 = scmp.eq.s32.totalorder %s24, 3
    %p338 = por %p336, %p337
    %p339 = scmp.ne.s32.totalorder %s330, %s331
    %p340 = scmp.eq.s32.totalorder %s24, 0
    %p341 = por %p339, %p340
    %p342 = scmp.ne.s32.totalorder %s330, %s331
    %p343 = scmp.eq.s32.totalorder %s25, 3
    %p344 = por %p342, %p343
    %p346 = scmp.ne.s32.totalorder %s331, %s345
    %p347 = scmp.eq.s32.totalorder %s25, 0
    %p348 = por %p346, %p347
    %s349 = ssub.s32 %s26, %s38
    %s350 = ssub.s32 %s27, %s34
    %s351 = sor.u32 %s349, %s350
    %p352 = scmp.eq.s32.totalorder %s351, 0
    %s354 = sadd.s32 %s353, 1
    %s355 = scalar_select %p352, %s353, %s354
    %p358 = pneg %p352
    %p359 = scmp.eq.s32.totalorder %s19, 3
    %p360 = por %p358, %p359
    %p361 = scmp.ne.s32.totalorder %s353, %s356
    %p362 = scmp.eq.s32.totalorder %s19, 0
    %p363 = por %p361, %p362
    %p364 = scmp.ne.s32.totalorder %s353, %s356
    %p365 = scmp.eq.s32.totalorder %s24, 3
    %p366 = por %p364, %p365
    %p367 = scmp.ne.s32.totalorder %s356, %s357
    %p368 = scmp.eq.s32.totalorder %s24, 0
    %p369 = por %p367, %p368
    %p370 = scmp.ne.s32.totalorder %s356, %s357
    %p371 = scmp.eq.s32.totalorder %s25, 3
    %p372 = por %p370, %p371
    %p374 = scmp.ne.s32.totalorder %s357, %s373
    %p375 = scmp.eq.s32.totalorder %s25, 0
    %p376 = por %p374, %p375
    %p377 = scmp.le.s32.totalorder 1, %s19
    %p378 = scmp.lt.s32.totalorder %s19, 5
    %p379 = pnand %p377, %p378
    %p380 = pneg %p379
    // Predicated region
    $region9: #{_lambda_.1} parent=5 // pred_check
      _
    $region10: #{_lambda_.1} parent=5 // pred_check_branch
      %382 = sbr.rel (%p379) target = $region12
    $region11: #{_lambda_.1} parent=5 // pred_region
      %s383 = ssub.s32 %s19, 1
      // Predicated region
      $region13: #{_lambda_.1} parent=11 // pred_check
        %p384 = pneg %p152
      $region14: #{_lambda_.1} parent=11 // pred_check_branch
        %386 = sbr.rel (%p384) target = $region16
      $region15: #{_lambda_.1} parent=11 // pred_region
        _
      $region16: #{_lambda_.1} parent=11 // pred_fallthru
        _
      // Predicated region
      $region17: #{_lambda_.1} parent=11 // pred_check
        %p387 = pneg %p173
      $region18: #{_lambda_.1} parent=11 // pred_check_branch
        %389 = sbr.rel (%p387) target = $region20
      $region19: #{_lambda_.1} parent=11 // pred_region
        _
      $region20: #{_lambda_.1} parent=11 // pred_fallthru
        _
      // Predicated region
      $region21: #{_lambda_.1} parent=11 // pred_check
        %p390 = pneg %p194
      $region22: #{_lambda_.1} parent=11 // pred_check_branch
        %392 = sbr.rel (%p390) target = $region24
      $region23: #{_lambda_.1} parent=11 // pred_region
        _
      $region24: #{_lambda_.1} parent=11 // pred_fallthru
        _
      // Predicated region
      $region25: #{_lambda_.1} parent=11 // pred_check
        %p393 = pneg %p215
      $region26: #{_lambda_.1} parent=11 // pred_check_branch
        %395 = sbr.rel (%p393) target = $region28
      $region27: #{_lambda_.1} parent=11 // pred_region
        _
      $region28: #{_lambda_.1} parent=11 // pred_fallthru
        _
      // Predicated region
      $region29: #{_lambda_.1} parent=11 // pred_check
        %p396 = pneg %p236
      $region30: #{_lambda_.1} parent=11 // pred_check_branch
        %398 = sbr.rel (%p396) target = $region32
      $region31: #{_lambda_.1} parent=11 // pred_region
        _
      $region32: #{_lambda_.1} parent=11 // pred_fallthru
        _
      // Predicated region
      $region33: #{_lambda_.1} parent=11 // pred_check
        %p399 = pneg %p257
      $region34: #{_lambda_.1} parent=11 // pred_check_branch
        %401 = sbr.rel (%p399) target = $region36
      $region35: #{_lambda_.1} parent=11 // pred_region
        _
      $region36: #{_lambda_.1} parent=11 // pred_fallthru
        _
      // Predicated region
      $region37: #{_lambda_.1} parent=11 // pred_check
        %p402 = pneg %p278
      $region38: #{_lambda_.1} parent=11 // pred_check_branch
        %404 = sbr.rel (%p402) target = $region40
      $region39: #{_lambda_.1} parent=11 // pred_region
        _
      $region40: #{_lambda_.1} parent=11 // pred_fallthru
        _
      // Predicated region
      $region41: #{_lambda_.1} parent=11 // pred_check
        %p405 = pneg %p299
      $region42: #{_lambda_.1} parent=11 // pred_check_branch
        %407 = sbr.rel (%p405) target = $region44
      $region43: #{_lambda_.1} parent=11 // pred_region
        _
      $region44: #{_lambda_.1} parent=11 // pred_fallthru
        _
      // Predicated region
      $region45: #{_lambda_.1} parent=11 // pred_check
        %p408 = pneg %p320
      $region46: #{_lambda_.1} parent=11 // pred_check_branch
        %410 = sbr.rel (%p408) target = $region48
      $region47: #{_lambda_.1} parent=11 // pred_region
        _
      $region48: #{_lambda_.1} parent=11 // pred_fallthru
        _
      // Predicated region
      $region49: #{_lambda_.1} parent=11 // pred_check
        %p411 = pneg %p341
      $region50: #{_lambda_.1} parent=11 // pred_check_branch
        %413 = sbr.rel (%p411) target = $region52
      $region51: #{_lambda_.1} parent=11 // pred_region
        _
      $region52: #{_lambda_.1} parent=11 // pred_fallthru
        _
    $region12: #{_lambda_.1} parent=5 // pred_fallthru
      _
    %p414 = scmp.lt.s32.totalorder %s19, 4
    // Predicated region
    $region53: #{_lambda_.1} parent=5 // pred_check
      %p415 = pneg %p414
    $region54: #{_lambda_.1} parent=5 // pred_check_branch
      %417 = sbr.rel (%p415) target = $region56
    $region55: #{_lambda_.1} parent=5 // pred_region
      // Predicated region
      $region57: #{_lambda_.1} parent=55 // pred_check
        %p418 = pneg %p53
      $region58: #{_lambda_.1} parent=55 // pred_check_branch
        %420 = sbr.rel (%p418) target = $region60
      $region59: #{_lambda_.1} parent=55 // pred_region
        %s421 = smul.u32 8, %s27
        %p422 = scmp.lt.s32.totalorder %s26, 1
        %s423 = scalar_select %p422, %s26, 1
        %p424 = scmp.lt.s32.totalorder %s421, 15
        %s425 = scalar_select %p424, %s421, 15
        %s426 = smul.addr %s425, 2
        %s427 = smul.addr %s423, 32
        %s428 = sadd.s32 %s426, %s427
        %s429 = smul.addr %s428, 4
        %s430 = scalar_lea.vmem %s0, %s429
        %s431 = smul.u32 8, %s27
      $region60: #{_lambda_.1} parent=55 // pred_fallthru
        _
      // Predicated region
      $region61: #{_lambda_.1} parent=55 // pred_check
        %p432 = pneg %p89
      $region62: #{_lambda_.1} parent=55 // pred_check_branch
        %434 = sbr.rel (%p432) target = $region64
      $region63: #{_lambda_.1} parent=55 // pred_region
        %s435 = smul.u32 %s27, 8
        %s436 = ssub.s32 %s435, 1
        %p437 = scmp.gt.s32.totalorder %s436, 0
        %s438 = scalar_select %p437, %s436, 0
        %p439 = scmp.lt.s32.totalorder %s26, 1
        %s440 = scalar_select %p439, %s26, 1
        %p441 = scmp.lt.s32.totalorder %s438, 15
        %s442 = scalar_select %p441, %s438, 15
        %s443 = smul.addr %s442, 2
        %s444 = smul.addr %s440, 32
        %s445 = sadd.s32 %s443, %s444
        %s446 = smul.addr %s445, 4
        %s447 = scalar_lea.vmem %s1, %s446
        %s448 = smul.u32 %s27, 8
        %s449 = ssub.s32 %s448, 1
        %p450 = scmp.gt.s32.totalorder %s449, 0
        %s451 = scalar_select %p450, %s449, 0
      $region64: #{_lambda_.1} parent=55 // pred_fallthru
        _
      // Predicated region
      $region65: #{_lambda_.1} parent=55 // pred_check
        %p452 = pneg %p125
      $region66: #{_lambda_.1} parent=55 // pred_check_branch
        %454 = sbr.rel (%p452) target = $region68
      $region67: #{_lambda_.1} parent=55 // pred_region
        %s455 = smul.u32 %s27, 8
        %s456 = sadd.s32 %s455, 8
        %p457 = scmp.lt.s32.totalorder %s456, 15
        %s458 = scalar_select %p457, %s456, 15
        %p459 = scmp.lt.s32.totalorder %s26, 1
        %s460 = scalar_select %p459, %s26, 1
        %p461 = scmp.lt.s32.totalorder %s458, 15
        %s462 = scalar_select %p461, %s458, 15
        %s463 = smul.addr %s462, 2
        %s464 = smul.addr %s460, 32
        %s465 = sadd.s32 %s463, %s464
        %s466 = smul.addr %s465, 4
        %s467 = scalar_lea.vmem %s2, %s466
        %s468 = smul.u32 %s27, 8
        %s469 = sadd.s32 %s468, 8
        %p470 = scmp.lt.s32.totalorder %s469, 15
        %s471 = scalar_select %p470, %s469, 15
      $region68: #{_lambda_.1} parent=55 // pred_fallthru
        _
    $region56: #{_lambda_.1} parent=5 // pred_fallthru
      _
    %p472 = scmp.le.s32.totalorder 1, %s19
    %p473 = scmp.lt.s32.totalorder %s19, 5
    %p474 = pnand %p472, %p473
    %p475 = pneg %p474
    // Predicated region
    $region69: #{_lambda_.1} parent=5 // pred_check
      _
    $region70: #{_lambda_.1} parent=5 // pred_check_branch
      %477 = sbr.rel (%p474) target = $region72
    $region71: #{_lambda_.1} parent=5 // pred_region
      %s478 = ssub.s32 %s19, 1
      %s479 = smul.u32 8, %s29
      %p480 = scmp.lt.s32.totalorder %s28, 1
      %s481 = scalar_select %p480, %s28, 1
      %p482 = scmp.lt.s32.totalorder %s479, 15
      %s483 = scalar_select %p482, %s479, 15
      %s484 = smul.addr %s483, 2
      %s485 = smul.addr %s481, 32
      %s486 = sadd.s32 %s484, %s485
      %s487 = smul.addr %s486, 4
      %s488 = scalar_lea.vmem %s0, %s487
      %p489 = pneg %p59
      %p490 = pneg %p56
      %s491 = smul.u32 %s29, 8
      %s492 = ssub.s32 %s491, 1
      %p493 = scmp.gt.s32.totalorder %s492, 0
      %s494 = scalar_select %p493, %s492, 0
      %p495 = scmp.lt.s32.totalorder %s28, 1
      %s496 = scalar_select %p495, %s28, 1
      %p497 = scmp.lt.s32.totalorder %s494, 15
      %s498 = scalar_select %p497, %s494, 15
      %s499 = smul.addr %s498, 2
      %s500 = smul.addr %s496, 32
      %s501 = sadd.s32 %s499, %s500
      %s502 = smul.addr %s501, 4
      %s503 = scalar_lea.vmem %s1, %s502
      %p504 = pneg %p95
      %p505 = pneg %p92
      %s506 = smul.u32 %s29, 8
      %s507 = sadd.s32 %s506, 8
      %p508 = scmp.lt.s32.totalorder %s507, 15
      %s509 = scalar_select %p508, %s507, 15
      %p510 = scmp.lt.s32.totalorder %s28, 1
      %s511 = scalar_select %p510, %s28, 1
      %p512 = scmp.lt.s32.totalorder %s509, 15
      %s513 = scalar_select %p512, %s509, 15
      %s514 = smul.addr %s513, 2
      %s515 = smul.addr %s511, 32
      %s516 = sadd.s32 %s514, %s515
      %s517 = smul.addr %s516, 4
      %s518 = scalar_lea.vmem %s2, %s517
      %p519 = pneg %p131
      %p520 = pneg %p128
      %p521 = pneg %p152
      %p522 = pneg %p149
      %p523 = pneg %p173
      %p524 = pneg %p170
      %p525 = pneg %p194
      %p526 = pneg %p191
      %p527 = pneg %p215
      %p528 = pneg %p212
      %p529 = pneg %p236
      %p530 = pneg %p233
      %p531 = pneg %p257
      %p532 = pneg %p254
      %p533 = pneg %p278
      %p534 = pneg %p275
      %p535 = pneg %p299
      %p536 = pneg %p296
      %p537 = pneg %p320
      %p538 = pneg %p317
      %p539 = pneg %p341
      %p540 = pneg %p338
      %p541 = pneg %p369
      %p542 = pneg %p366
      %s543 = smul.u32 8, %s29
      %p544 = scmp.lt.s32.totalorder %s28, 1
      %s545 = scalar_select %p544, %s28, 1
      %p546 = scmp.lt.s32.totalorder %s543, 15
      %s547 = scalar_select %p546, %s543, 15
      %s548 = smul.addr %s547, 2
      %s549 = smul.addr %s545, 32
      %s550 = sadd.s32 %s548, %s549
      %s551 = smul.addr %s550, 8
      %s552 = scalar_lea.vmem %s13, %s551
      %s553 = smul.u32 8, %s29
      %p554 = scmp.lt.s32.totalorder %s28, 1
      %s555 = scalar_select %p554, %s28, 1
      %p556 = scmp.lt.s32.totalorder %s553, 15
      %s557 = scalar_select %p556, %s553, 15
      %s558 = smul.addr %s557, 2
      %s559 = smul.addr %s555, 32
      %s560 = sadd.s32 %s558, %s559
      %s561 = smul.addr %s560, 4
      %s562 = scalar_lea.vmem %s0, %s561
      %s563 = smul.u32 8, %s29
      %s564 = smul.u32 %s29, 8
      %s565 = ssub.s32 %s564, 1
      %p566 = scmp.gt.s32.totalorder %s565, 0
      %s567 = scalar_select %p566, %s565, 0
      %p568 = scmp.lt.s32.totalorder %s28, 1
      %s569 = scalar_select %p568, %s28, 1
      %p570 = scmp.lt.s32.totalorder %s567, 15
      %s571 = scalar_select %p570, %s567, 15
      %s572 = smul.addr %s571, 2
      %s573 = smul.addr %s569, 32
      %s574 = sadd.s32 %s572, %s573
      %s575 = smul.addr %s574, 4
      %s576 = scalar_lea.vmem %s1, %s575
      %s577 = smul.u32 %s29, 8
      %s578 = ssub.s32 %s577, 1
      %p579 = scmp.gt.s32.totalorder %s578, 0
      %s580 = scalar_select %p579, %s578, 0
      %s581 = smul.u32 %s29, 8
      %s582 = sadd.s32 %s581, 8
      %p583 = scmp.lt.s32.totalorder %s582, 15
      %s584 = scalar_select %p583, %s582, 15
      %p585 = scmp.lt.s32.totalorder %s28, 1
      %s586 = scalar_select %p585, %s28, 1
      %p587 = scmp.lt.s32.totalorder %s584, 15
      %s588 = scalar_select %p587, %s584, 15
      %s589 = smul.addr %s588, 2
      %s590 = smul.addr %s586, 32
      %s591 = sadd.s32 %s589, %s590
      %s592 = smul.addr %s591, 4
      %s593 = scalar_lea.vmem %s2, %s592
      %s594 = smul.u32 %s29, 8
      %s595 = sadd.s32 %s594, 8
      %p596 = scmp.lt.s32.totalorder %s595, 15
      %s597 = scalar_select %p596, %s595, 15
      %s598 = smul.u32 8, %s29
      %p599 = scmp.lt.s32.totalorder %s28, 1
      %s600 = scalar_select %p599, %s28, 1
      %p601 = scmp.lt.s32.totalorder %s598, 15
      %s602 = scalar_select %p601, %s598, 15
      %s603 = smul.addr %s602, 2
      %s604 = smul.addr %s600, 32
      %s605 = sadd.s32 %s603, %s604
      %s606 = smul.addr %s605, 8
      %s607 = scalar_lea.vmem %s13, %s606
      %s608 = smul.u32 8, %s29
      %v610 = vld [vmem:[%s576] sm:$0xf]
      %v611 = vld [vmem:[%s576 + $0x4] sm:$0xf]
      %v612 = vld [vmem:[%s562] sm:$0xf]
      %v613 = vld [vmem:[%s562 + $0x4] sm:$0xf]
      %v614 = vld [vmem:[%s562 + $0x8] sm:$0xf]
      %v615 = vld [vmem:[%s562 + $0xc] sm:$0xf]
      %v616 = vld [vmem:[%s562 + $0x10] sm:$0xf]
      %v617 = vld [vmem:[%s562 + $0x14] sm:$0xf]
      %v618 = vld [vmem:[%s562 + $0x18] sm:$0xf]
      %v619 = vld [vmem:[%s562 + $0x1c] sm:$0xf]
      %v620 = vld [vmem:[%s562 + $0x20] sm:$0xf]
      %v621 = vld [vmem:[%s562 + $0x24] sm:$0xf]
      %v622 = vld [vmem:[%s562 + $0x28] sm:$0xf]
      %v623 = vld [vmem:[%s562 + $0x2c] sm:$0xf]
      %v624 = vld [vmem:[%s562 + $0x30] sm:$0xf]
      %v625 = vld [vmem:[%s562 + $0x34] sm:$0xf]
      %v626 = vld [vmem:[%s562 + $0x38] sm:$0xf]
      %v627 = vld [vmem:[%s562 + $0x3c] sm:$0xf]
      %v628 = vld [vmem:[%s593] sm:$0xf]
      %v629 = vld [vmem:[%s593 + $0x4] sm:$0xf]
      %v630 = vlaneseq
      %v631 = vshrl.u32 %v630, 7
      %v632 = vadd.s32 %v631, 8
      %v633 = vadd.s32 %v631, 16
      %v634 = vadd.s32 %v631, 24
      %v635 = vadd.s32 %v631, 32
      %v636 = vadd.s32 %v631, 40
      %v637 = vadd.s32 %v631, 48
      %v638 = vadd.s32 %v631, 56
      %v639 = vadd.s32 %v631, 64
      %v640 = vadd.s32 %v631, 72
      %v641 = vadd.s32 %v631, 80
      %v642 = vadd.s32 %v631, 88
      %v643 = vadd.s32 %v631, 96
      %v644 = vadd.s32 %v631, 104
      %v645 = vadd.s32 %v631, 112
      %v646 = vadd.s32 %v631, 120
      %v647 = vadd.s32 %v631, 128
      %v648 = vadd.s32 %v631, 136
      %v649 = vadd.s32 %v631, 144
      %v650 = vadd.s32 %v631, 152
      %vm651 = vcmp.ge.s32.totalorder %v631, 16
      %vm652 = vcmp.ge.s32.totalorder %v632, 16
      %vm653 = vcmp.ge.s32.totalorder %v633, 16
      %vm654 = vcmp.ge.s32.totalorder %v634, 16
      %vm655 = vcmp.ge.s32.totalorder %v635, 16
      %vm656 = vcmp.ge.s32.totalorder %v636, 16
      %vm657 = vcmp.ge.s32.totalorder %v637, 16
      %vm658 = vcmp.ge.s32.totalorder %v638, 16
      %vm659 = vcmp.ge.s32.totalorder %v639, 16
      %vm660 = vcmp.ge.s32.totalorder %v640, 16
      %vm661 = vcmp.ge.s32.totalorder %v641, 16
      %vm662 = vcmp.ge.s32.totalorder %v642, 16
      %vm663 = vcmp.ge.s32.totalorder %v643, 16
      %vm664 = vcmp.ge.s32.totalorder %v644, 16
      %vm665 = vcmp.ge.s32.totalorder %v645, 16
      %vm666 = vcmp.ge.s32.totalorder %v646, 16
      %vm667 = vcmp.ge.s32.totalorder %v647, 16
      %vm668 = vcmp.ge.s32.totalorder %v648, 16
      %vm669 = vcmp.ge.s32.totalorder %v649, 16
      %vm670 = vcmp.ge.s32.totalorder %v650, 16
      %p671 = scmp.gt.s32.totalorder %s29, 0
      %s672 = scalar_select %p671, 1, 0
      %v673 = vstv %s672
      %vm674 = vcmp.eq.s32.totalorder %v673, 1
      %vm675 = vmor %vm651, %vm674
      %vm676 = vmor %vm652, %vm674
      %vm677 = vmor %vm653, %vm674
      %vm678 = vmor %vm654, %vm674
      %vm679 = vmor %vm655, %vm674
      %vm680 = vmor %vm656, %vm674
      %vm681 = vmor %vm657, %vm674
      %vm682 = vmor %vm658, %vm674
      %vm683 = vmor %vm659, %vm674
      %vm684 = vmor %vm660, %vm674
      %vm685 = vmor %vm661, %vm674
      %vm686 = vmor %vm662, %vm674
      %vm687 = vmor %vm663, %vm674
      %vm688 = vmor %vm664, %vm674
      %vm689 = vmor %vm665, %vm674
      %vm690 = vmor %vm666, %vm674
      %vm691 = vmor %vm667, %vm674
      %vm692 = vmor %vm668, %vm674
      %vm693 = vmor %vm669, %vm674
      %vm694 = vmor %vm670, %vm674
      %vm695 = vcmp.lt.s32.totalorder %v631, 144
      %vm696 = vcmp.lt.s32.totalorder %v632, 144
      %vm697 = vcmp.lt.s32.totalorder %v633, 144
      %vm698 = vcmp.lt.s32.totalorder %v634, 144
      %vm699 = vcmp.lt.s32.totalorder %v635, 144
      %vm700 = vcmp.lt.s32.totalorder %v636, 144
      %vm701 = vcmp.lt.s32.totalorder %v637, 144
      %vm702 = vcmp.lt.s32.totalorder %v638, 144
      %vm703 = vcmp.lt.s32.totalorder %v639, 144
      %vm704 = vcmp.lt.s32.totalorder %v640, 144
      %vm705 = vcmp.lt.s32.totalorder %v641, 144
      %vm706 = vcmp.lt.s32.totalorder %v642, 144
      %vm707 = vcmp.lt.s32.totalorder %v643, 144
      %vm708 = vcmp.lt.s32.totalorder %v644, 144
      %vm709 = vcmp.lt.s32.totalorder %v645, 144
      %vm710 = vcmp.lt.s32.totalorder %v646, 144
      %vm711 = vcmp.lt.s32.totalorder %v647, 144
      %vm712 = vcmp.lt.s32.totalorder %v648, 144
      %vm713 = vcmp.lt.s32.totalorder %v649, 144
      %vm714 = vcmp.lt.s32.totalorder %v650, 144
      %p715 = scmp.lt.s32.totalorder %s29, 1
      %s716 = scalar_select %p715, 1, 0
      %v717 = vstv %s716
      %vm718 = vcmp.eq.s32.totalorder %v717, 1
      %vm719 = vmor %vm695, %vm718
      %vm720 = vmor %vm696, %vm718
      %vm721 = vmor %vm697, %vm718
      %vm722 = vmor %vm698, %vm718
      %vm723 = vmor %vm699, %vm718
      %vm724 = vmor %vm700, %vm718
      %vm725 = vmor %vm701, %vm718
      %vm726 = vmor %vm702, %vm718
      %vm727 = vmor %vm703, %vm718
      %vm728 = vmor %vm704, %vm718
      %vm729 = vmor %vm705, %vm718
      %vm730 = vmor %vm706, %vm718
      %vm731 = vmor %vm707, %vm718
      %vm732 = vmor %vm708, %vm718
      %vm733 = vmor %vm709, %vm718
      %vm734 = vmor %vm710, %vm718
      %vm735 = vmor %vm711, %vm718
      %vm736 = vmor %vm712, %vm718
      %vm737 = vmor %vm713, %vm718
      %vm738 = vmor %vm714, %vm718
      %vm739 = vmand %vm675, %vm719
      %vm740 = vmand %vm676, %vm720
      %vm741 = vmand %vm677, %vm721
      %vm742 = vmand %vm678, %vm722
      %vm743 = vmand %vm679, %vm723
      %vm744 = vmand %vm680, %vm724
      %vm745 = vmand %vm681, %vm725
      %vm746 = vmand %vm682, %vm726
      %vm747 = vmand %vm683, %vm727
      %vm748 = vmand %vm684, %vm728
      %vm749 = vmand %vm685, %vm729
      %vm750 = vmand %vm686, %vm730
      %vm751 = vmand %vm687, %vm731
      %vm752 = vmand %vm688, %vm732
      %vm753 = vmand %vm689, %vm733
      %vm754 = vmand %vm690, %vm734
      %vm755 = vmand %vm691, %vm735
      %vm756 = vmand %vm692, %vm736
      %vm757 = vmand %vm693, %vm737
      %vm758 = vmand %vm694, %vm738
      %v759 = vsel %vm739, 1, 0
      %v760 = vsel %vm740, 1, 0
      %v761 = vsel %vm741, 1, 0
      %v762 = vsel %vm742, 1, 0
      %v763 = vsel %vm743, 1, 0
      %v764 = vsel %vm744, 1, 0
      %v765 = vsel %vm745, 1, 0
      %v766 = vsel %vm746, 1, 0
      %v767 = vsel %vm747, 1, 0
      %v768 = vsel %vm748, 1, 0
      %v769 = vsel %vm749, 1, 0
      %v770 = vsel %vm750, 1, 0
      %v771 = vsel %vm751, 1, 0
      %v772 = vsel %vm752, 1, 0
      %v773 = vsel %vm753, 1, 0
      %v774 = vsel %vm754, 1, 0
      %v775 = vsel %vm755, 1, 0
      %v776 = vsel %vm756, 1, 0
      %v777 = vsel %vm757, 1, 0
      %v778 = vsel %vm758, 1, 0
      %v779 = vcvt.s32.f32 %v759
      %v780 = vcvt.s32.f32 %v760
      %v781 = vcvt.s32.f32 %v761
      %v782 = vcvt.s32.f32 %v762
      %v783 = vcvt.s32.f32 %v763
      %v784 = vcvt.s32.f32 %v764
      %v785 = vcvt.s32.f32 %v765
      %v786 = vcvt.s32.f32 %v766
      %v787 = vcvt.s32.f32 %v767
      %v788 = vcvt.s32.f32 %v768
      %v789 = vcvt.s32.f32 %v769
      %v790 = vcvt.s32.f32 %v770
      %v791 = vcvt.s32.f32 %v771
      %v792 = vcvt.s32.f32 %v772
      %v793 = vcvt.s32.f32 %v773
      %v794 = vcvt.s32.f32 %v774
      %v795 = vcvt.s32.f32 %v775
      %v796 = vcvt.s32.f32 %v776
      %v797 = vcvt.s32.f32 %v777
      %v798 = vcvt.s32.f32 %v778
      %vm799 = vcmp.lt.s32.totalorder %v631, 15
      %vm800 = vcmp.lt.s32.totalorder %v632, 15
      %v801 = vsel %vm799, 1, 0
      %v802 = vsel %vm800, 1, 0
      %v803 = vcvt.s32.f32 %v801
      %v804 = vcvt.s32.f32 %v802
      %vm805 = vcmp.gt.s32.totalorder %v631, 0
      %vm806 = vcmp.gt.s32.totalorder %v632, 0
      %v807 = vsel %vm805, 1, 0
      %v808 = vsel %vm806, 1, 0
      %v809 = vcvt.s32.f32 %v807
      %v810 = vcvt.s32.f32 %v808
      %v811 = vld [vmem:[%s7] sm:$0x7]
      %v812 = vld [vmem:[%s7 + $0x4] sm:$0x7]
      %v813 = vld [vmem:[%s7 + $0x8] sm:$0x7]
      %v814 = vld [vmem:[%s8] sm:$0x7]
      %v815 = vld [vmem:[%s8 + $0x4] sm:$0x7]
      %v816 = vld [vmem:[%s8 + $0x8] sm:$0x7]
      %v817 = vld [vmem:[%s9] sm:$0x1]
      %v818 = vld [vmem:[%s10] sm:$0x1]
      %v819 = vld [vmem:[%s3] sm:$0xf]
      %v820 = vld [vmem:[%s5] sm:$0x1]
      %v822 = vperm.slane %v820, 0
      %v844 = vunpack.c.l.b16 %v610
      %v845 = vunpack.c.l.b16 %v611
      %v846 = vunpack.c.l.b16 %v612
      %v847 = vunpack.c.l.b16 %v613
      %v848 = vunpack.c.l.b16 %v614
      %v849 = vunpack.c.l.b16 %v615
      %v850 = vunpack.c.l.b16 %v616
      %v851 = vunpack.c.l.b16 %v617
      %v852 = vunpack.c.l.b16 %v618
      %v853 = vunpack.c.l.b16 %v619
      %v854 = vunpack.c.l.b16 %v620
      %v855 = vunpack.c.l.b16 %v621
      %v856 = vunpack.c.l.b16 %v622
      %v857 = vunpack.c.l.b16 %v623
      %v858 = vunpack.c.l.b16 %v624
      %v859 = vunpack.c.l.b16 %v625
      %v860 = vunpack.c.l.b16 %v626
      %v861 = vunpack.c.l.b16 %v627
      %v862 = vunpack.c.l.b16 %v628
      %v863 = vunpack.c.l.b16 %v629
      %v864 = vpack.c.b16 %v845, %v844
      %v865 = vpack.c.b16 %v847, %v846
      %v866 = vpack.c.b16 %v849, %v848
      %v867 = vpack.c.b16 %v851, %v850
      %v868 = vpack.c.b16 %v853, %v852
      %v869 = vpack.c.b16 %v855, %v854
      %v870 = vpack.c.b16 %v857, %v856
      %v871 = vpack.c.b16 %v859, %v858
      %v872 = vpack.c.b16 %v861, %v860
      %v873 = vpack.c.b16 %v863, %v862
      %vm874 = vcmask 64512
      %v876 = vsel %vm874, %v864, 0
      %v879 = vsel %vm874, %v865, 0
      %v882 = vsel %vm874, %v866, 0
      %v885 = vsel %vm874, %v867, 0
      %v888 = vsel %vm874, %v868, 0
      %v891 = vsel %vm874, %v869, 0
      %v894 = vsel %vm874, %v870, 0
      %v897 = vsel %vm874, %v871, 0
      %v900 = vsel %vm874, %v872, 0
      %v903 = vsel %vm874, %v873, 0
      %vm905 = vcmask 1043456
      %v907 = vsel %vm905, %v819, 0
      %909 = vmatpush.bf16.msra.mxu0 0
      %910 = vmatpush.bf16.msra.mxu0 0
      %911 = vmatpush.bf16.msra.mxu0 0
      %912 = vmatpush.bf16.msra.mxu0 0
      %913 = vmatpush.bf16.msra.mxu0 0
      %914 = vmatpush.bf16.msra.mxu0 0
      %915 = vmatpush.bf16.msra.mxu0 0
      %916 = vmatpush.bf16.msra.mxu0 %v907
      %917 = vmatmul.bf16.gmra.mxu0 %v876
      %v918 = vpop.f32.mrf.mxu0
      %v919 = vadd.f32 %v822, %v918
      %v920 = vpop.f32.mrf.mxu0
      %v921 = vadd.f32 %v822, %v920
      %922 = vmatmul.bf16.gmra.mxu0 %v879
      %v923 = vpop.f32.mrf.mxu0
      %v924 = vadd.f32 %v822, %v923
      %v925 = vpop.f32.mrf.mxu0
      %v926 = vadd.f32 %v822, %v925
      %927 = vmatmul.bf16.gmra.mxu0 %v882
      %v928 = vpop.f32.mrf.mxu0
      %v929 = vadd.f32 %v822, %v928
      %v930 = vpop.f32.mrf.mxu0
      %v931 = vadd.f32 %v822, %v930
      %932 = vmatmul.bf16.gmra.mxu0 %v885
      %v933 = vpop.f32.mrf.mxu0
      %v934 = vadd.f32 %v822, %v933
      %v935 = vpop.f32.mrf.mxu0
      %v936 = vadd.f32 %v822, %v935
      %937 = vmatmul.bf16.gmra.mxu0 %v888
      %v938 = vpop.f32.mrf.mxu0
      %v939 = vadd.f32 %v822, %v938
      %v940 = vpop.f32.mrf.mxu0
      %v941 = vadd.f32 %v822, %v940
      %942 = vmatmul.bf16.gmra.mxu0 %v891
      %v943 = vpop.f32.mrf.mxu0
      %v944 = vadd.f32 %v822, %v943
      %v945 = vpop.f32.mrf.mxu0
      %v946 = vadd.f32 %v822, %v945
      %947 = vmatmul.bf16.gmra.mxu0 %v894
      %v948 = vpop.f32.mrf.mxu0
      %v949 = vadd.f32 %v822, %v948
      %v950 = vpop.f32.mrf.mxu0
      %v951 = vadd.f32 %v822, %v950
      %952 = vmatmul.bf16.gmra.mxu0 %v897
      %v953 = vpop.f32.mrf.mxu0
      %v954 = vadd.f32 %v822, %v953
      %v955 = vpop.f32.mrf.mxu0
      %v956 = vadd.f32 %v822, %v955
      %957 = vmatmul.bf16.gmra.mxu0 %v900
      %v958 = vpop.f32.mrf.mxu0
      %v959 = vadd.f32 %v822, %v958
      %v960 = vpop.f32.mrf.mxu0
      %v961 = vadd.f32 %v822, %v960
      %962 = vmatmul.bf16.gmra.mxu0 %v903
      %v963 = vpop.f32.mrf.mxu0
      %v964 = vadd.f32 %v822, %v963
      %v965 = vpop.f32.mrf.mxu0
      %v966 = vadd.f32 %v822, %v965
      %967 = vdwg.mxu0
      %v968 = vmul.f32 %v919, %v779
      %v969 = vmul.f32 %v921, %v780
      %v970 = vmul.f32 %v924, %v781
      %v971 = vmul.f32 %v926, %v782
      %v972 = vmul.f32 %v929, %v783
      %v973 = vmul.f32 %v931, %v784
      %v974 = vmul.f32 %v934, %v785
      %v975 = vmul.f32 %v936, %v786
      %v976 = vmul.f32 %v939, %v787
      %v977 = vmul.f32 %v941, %v788
      %v978 = vmul.f32 %v944, %v789
      %v979 = vmul.f32 %v946, %v790
      %v980 = vmul.f32 %v949, %v791
      %v981 = vmul.f32 %v951, %v792
      %v982 = vmul.f32 %v954, %v793
      %v983 = vmul.f32 %v956, %v794
      %v984 = vmul.f32 %v959, %v795
      %v985 = vmul.f32 %v961, %v796
      %v986 = vmul.f32 %v964, %v797
      %v987 = vmul.f32 %v966, %v798
      %v988 = vmul.f32 %v968, %v803
      %v989 = vmul.f32 %v969, %v804
      %v990 = vmul.f32 %v970, %v803
      %v991 = vmul.f32 %v971, %v804
      %v992 = vmul.f32 %v972, %v803
      %v993 = vmul.f32 %v973, %v804
      %v994 = vmul.f32 %v974, %v803
      %v995 = vmul.f32 %v975, %v804
      %v996 = vmul.f32 %v976, %v803
      %v997 = vmul.f32 %v977, %v804
      %v998 = vmul.f32 %v978, %v803
      %v999 = vmul.f32 %v979, %v804
      %v1000 = vmul.f32 %v980, %v803
      %v1001 = vmul.f32 %v981, %v804
      %v1002 = vmul.f32 %v982, %v803
      %v1003 = vmul.f32 %v983, %v804
      %v1004 = vmul.f32 %v984, %v803
      %v1005 = vmul.f32 %v985, %v804
      %v1006 = vmul.f32 %v986, %v803
      %v1007 = vmul.f32 %v987, %v804
      %v1008 = vmul.f32 %v968, %v809
      %v1009 = vmul.f32 %v969, %v810
      %v1010 = vmul.f32 %v970, %v809
      %v1011 = vmul.f32 %v971, %v810
      %v1012 = vmul.f32 %v972, %v809
      %v1013 = vmul.f32 %v973, %v810
      %v1014 = vmul.f32 %v974, %v809
      %v1015 = vmul.f32 %v975, %v810
      %v1016 = vmul.f32 %v976, %v809
      %v1017 = vmul.f32 %v977, %v810
      %v1018 = vmul.f32 %v978, %v809
      %v1019 = vmul.f32 %v979, %v810
      %v1020 = vmul.f32 %v980, %v809
      %v1021 = vmul.f32 %v981, %v810
      %v1022 = vmul.f32 %v982, %v809
      %v1023 = vmul.f32 %v983, %v810
      %v1024 = vmul.f32 %v984, %v809
      %v1025 = vmul.f32 %v985, %v810
      %v1026 = vmul.f32 %v986, %v809
      %v1027 = vmul.f32 %v987, %v810
      %v1028 = vrot.slane %v988, 7
      %v1029 = vrot.slane %v989, 7
      %v1030 = vrot.slane %v990, 7
      %v1031 = vrot.slane %v991, 7
      %v1032 = vrot.slane %v992, 7
      %v1033 = vrot.slane %v993, 7
      %v1034 = vrot.slane %v994, 7
      %v1035 = vrot.slane %v995, 7
      %v1036 = vrot.slane %v996, 7
      %v1037 = vrot.slane %v997, 7
      %v1038 = vrot.slane %v998, 7
      %v1039 = vrot.slane %v999, 7
      %v1040 = vrot.slane %v1000, 7
      %v1041 = vrot.slane %v1001, 7
      %v1042 = vrot.slane %v1002, 7
      %v1043 = vrot.slane %v1003, 7
      %v1044 = vrot.slane %v1004, 7
      %v1045 = vrot.slane %v1005, 7
      %v1046 = vrot.slane %v1006, 7
      %v1047 = vrot.slane %v1007, 7
      %vm1048 = vcmp.lt.s32.totalorder %v631, 1
      %v1049 = vsel %vm1048, %v1046, %v1047
      %v1050 = vsel %vm1048, %v1045, %v1046
      %v1051 = vsel %vm1048, %v1044, %v1045
      %v1052 = vsel %vm1048, %v1043, %v1044
      %v1053 = vsel %vm1048, %v1042, %v1043
      %v1054 = vsel %vm1048, %v1041, %v1042
      %v1055 = vsel %vm1048, %v1040, %v1041
      %v1056 = vsel %vm1048, %v1039, %v1040
      %v1057 = vsel %vm1048, %v1038, %v1039
      %v1058 = vsel %vm1048, %v1037, %v1038
      %v1059 = vsel %vm1048, %v1036, %v1037
      %v1060 = vsel %vm1048, %v1035, %v1036
      %v1061 = vsel %vm1048, %v1034, %v1035
      %v1062 = vsel %vm1048, %v1033, %v1034
      %v1063 = vsel %vm1048, %v1032, %v1033
      %v1064 = vsel %vm1048, %v1031, %v1032
      %v1065 = vsel %vm1048, %v1030, %v1031
      %v1066 = vsel %vm1048, %v1029, %v1030
      %v1067 = vsel %vm1048, %v1028, %v1029
      %v1068 = vsel %vm1048, %v1047, %v1028
      %v1069 = vrot.slane %v1008, 1
      %v1070 = vrot.slane %v1009, 1
      %v1071 = vrot.slane %v1010, 1
      %v1072 = vrot.slane %v1011, 1
      %v1073 = vrot.slane %v1012, 1
      %v1074 = vrot.slane %v1013, 1
      %v1075 = vrot.slane %v1014, 1
      %v1076 = vrot.slane %v1015, 1
      %v1077 = vrot.slane %v1016, 1
      %v1078 = vrot.slane %v1017, 1
      %v1079 = vrot.slane %v1018, 1
      %v1080 = vrot.slane %v1019, 1
      %v1081 = vrot.slane %v1020, 1
      %v1082 = vrot.slane %v1021, 1
      %v1083 = vrot.slane %v1022, 1
      %v1084 = vrot.slane %v1023, 1
      %v1085 = vrot.slane %v1024, 1
      %v1086 = vrot.slane %v1025, 1
      %v1087 = vrot.slane %v1026, 1
      %v1088 = vrot.slane %v1027, 1
      %vm1089 = vcmp.lt.s32.totalorder %v631, 7
      %v1090 = vsel %vm1089, %v1087, %v1088
      %v1091 = vsel %vm1089, %v1086, %v1087
      %v1092 = vsel %vm1089, %v1085, %v1086
      %v1093 = vsel %vm1089, %v1084, %v1085
      %v1094 = vsel %vm1089, %v1083, %v1084
      %v1095 = vsel %vm1089, %v1082, %v1083
      %v1096 = vsel %vm1089, %v1081, %v1082
      %v1097 = vsel %vm1089, %v1080, %v1081
      %v1098 = vsel %vm1089, %v1079, %v1080
      %v1099 = vsel %vm1089, %v1078, %v1079
      %v1100 = vsel %vm1089, %v1077, %v1078
      %v1101 = vsel %vm1089, %v1076, %v1077
      %v1102 = vsel %vm1089, %v1075, %v1076
      %v1103 = vsel %vm1089, %v1074, %v1075
      %v1104 = vsel %vm1089, %v1073, %v1074
      %v1105 = vsel %vm1089, %v1072, %v1073
      %v1106 = vsel %vm1089, %v1071, %v1072
      %v1107 = vsel %vm1089, %v1070, %v1071
      %v1108 = vsel %vm1089, %v1069, %v1070
      %v1109 = vsel %vm1089, %v1088, %v1069
      %v1110 = vperm.slane %v811, 0
      %v1111 = vmul.f32 %v1068, %v1110
      %v1112 = vmul.f32 %v1067, %v1110
      %v1113 = vmul.f32 %v1066, %v1110
      %v1114 = vmul.f32 %v1065, %v1110
      %v1115 = vmul.f32 %v1064, %v1110
      %v1116 = vmul.f32 %v1063, %v1110
      %v1117 = vmul.f32 %v1062, %v1110
      %v1118 = vmul.f32 %v1061, %v1110
      %v1119 = vmul.f32 %v1060, %v1110
      %v1120 = vmul.f32 %v1059, %v1110
      %v1121 = vmul.f32 %v1058, %v1110
      %v1122 = vmul.f32 %v1057, %v1110
      %v1123 = vmul.f32 %v1056, %v1110
      %v1124 = vmul.f32 %v1055, %v1110
      %v1125 = vmul.f32 %v1054, %v1110
      %v1126 = vmul.f32 %v1053, %v1110
      %v1127 = vperm.slane %v811, 1
      %v1128 = vmul.f32 %v968, %v1127
      %v1129 = vmul.f32 %v969, %v1127
      %v1130 = vmul.f32 %v970, %v1127
      %v1131 = vmul.f32 %v971, %v1127
      %v1132 = vmul.f32 %v972, %v1127
      %v1133 = vmul.f32 %v973, %v1127
      %v1134 = vmul.f32 %v974, %v1127
      %v1135 = vmul.f32 %v975, %v1127
      %v1136 = vmul.f32 %v976, %v1127
      %v1137 = vmul.f32 %v977, %v1127
      %v1138 = vmul.f32 %v978, %v1127
      %v1139 = vmul.f32 %v979, %v1127
      %v1140 = vmul.f32 %v980, %v1127
      %v1141 = vmul.f32 %v981, %v1127
      %v1142 = vmul.f32 %v982, %v1127
      %v1143 = vmul.f32 %v983, %v1127
      %v1144 = vadd.f32 %v1111, %v1128
      %v1145 = vadd.f32 %v1112, %v1129
      %v1146 = vadd.f32 %v1113, %v1130
      %v1147 = vadd.f32 %v1114, %v1131
      %v1148 = vadd.f32 %v1115, %v1132
      %v1149 = vadd.f32 %v1116, %v1133
      %v1150 = vadd.f32 %v1117, %v1134
      %v1151 = vadd.f32 %v1118, %v1135
      %v1152 = vadd.f32 %v1119, %v1136
      %v1153 = vadd.f32 %v1120, %v1137
      %v1154 = vadd.f32 %v1121, %v1138
      %v1155 = vadd.f32 %v1122, %v1139
      %v1156 = vadd.f32 %v1123, %v1140
      %v1157 = vadd.f32 %v1124, %v1141
      %v1158 = vadd.f32 %v1125, %v1142
      %v1159 = vadd.f32 %v1126, %v1143
      %v1160 = vperm.slane %v811, 2
      %v1161 = vmul.f32 %v1108, %v1160
      %v1162 = vmul.f32 %v1107, %v1160
      %v1163 = vmul.f32 %v1106, %v1160
      %v1164 = vmul.f32 %v1105, %v1160
      %v1165 = vmul.f32 %v1104, %v1160
      %v1166 = vmul.f32 %v1103, %v1160
      %v1167 = vmul.f32 %v1102, %v1160
      %v1168 = vmul.f32 %v1101, %v1160
      %v1169 = vmul.f32 %v1100, %v1160
      %v1170 = vmul.f32 %v1099, %v1160
      %v1171 = vmul.f32 %v1098, %v1160
      %v1172 = vmul.f32 %v1097, %v1160
      %v1173 = vmul.f32 %v1096, %v1160
      %v1174 = vmul.f32 %v1095, %v1160
      %v1175 = vmul.f32 %v1094, %v1160
      %v1176 = vmul.f32 %v1093, %v1160
      %v1177 = vadd.f32 %v1144, %v1161
      %v1178 = vadd.f32 %v1145, %v1162
      %v1179 = vadd.f32 %v1146, %v1163
      %v1180 = vadd.f32 %v1147, %v1164
      %v1181 = vadd.f32 %v1148, %v1165
      %v1182 = vadd.f32 %v1149, %v1166
      %v1183 = vadd.f32 %v1150, %v1167
      %v1184 = vadd.f32 %v1151, %v1168
      %v1185 = vadd.f32 %v1152, %v1169
      %v1186 = vadd.f32 %v1153, %v1170
      %v1187 = vadd.f32 %v1154, %v1171
      %v1188 = vadd.f32 %v1155, %v1172
      %v1189 = vadd.f32 %v1156, %v1173
      %v1190 = vadd.f32 %v1157, %v1174
      %v1191 = vadd.f32 %v1158, %v1175
      %v1192 = vadd.f32 %v1159, %v1176
      %v1193 = vperm.slane %v812, 0
      %v1194 = vmul.f32 %v1066, %v1193
      %v1195 = vmul.f32 %v1065, %v1193
      %v1196 = vmul.f32 %v1064, %v1193
      %v1197 = vmul.f32 %v1063, %v1193
      %v1198 = vmul.f32 %v1062, %v1193
      %v1199 = vmul.f32 %v1061, %v1193
      %v1200 = vmul.f32 %v1060, %v1193
      %v1201 = vmul.f32 %v1059, %v1193
      %v1202 = vmul.f32 %v1058, %v1193
      %v1203 = vmul.f32 %v1057, %v1193
      %v1204 = vmul.f32 %v1056, %v1193
      %v1205 = vmul.f32 %v1055, %v1193
      %v1206 = vmul.f32 %v1054, %v1193
      %v1207 = vmul.f32 %v1053, %v1193
      %v1208 = vmul.f32 %v1052, %v1193
      %v1209 = vmul.f32 %v1051, %v1193
      %v1210 = vadd.f32 %v1177, %v1194
      %v1211 = vadd.f32 %v1178, %v1195
      %v1212 = vadd.f32 %v1179, %v1196
      %v1213 = vadd.f32 %v1180, %v1197
      %v1214 = vadd.f32 %v1181, %v1198
      %v1215 = vadd.f32 %v1182, %v1199
      %v1216 = vadd.f32 %v1183, %v1200
      %v1217 = vadd.f32 %v1184, %v1201
      %v1218 = vadd.f32 %v1185, %v1202
      %v1219 = vadd.f32 %v1186, %v1203
      %v1220 = vadd.f32 %v1187, %v1204
      %v1221 = vadd.f32 %v1188, %v1205
      %v1222 = vadd.f32 %v1189, %v1206
      %v1223 = vadd.f32 %v1190, %v1207
      %v1224 = vadd.f32 %v1191, %v1208
      %v1225 = vadd.f32 %v1192, %v1209
      %v1226 = vperm.slane %v812, 1
      %v1227 = vmul.f32 %v970, %v1226
      %v1228 = vmul.f32 %v971, %v1226
      %v1229 = vmul.f32 %v972, %v1226
      %v1230 = vmul.f32 %v973, %v1226
      %v1231 = vmul.f32 %v974, %v1226
      %v1232 = vmul.f32 %v975, %v1226
      %v1233 = vmul.f32 %v976, %v1226
      %v1234 = vmul.f32 %v977, %v1226
      %v1235 = vmul.f32 %v978, %v1226
      %v1236 = vmul.f32 %v979, %v1226
      %v1237 = vmul.f32 %v980, %v1226
      %v1238 = vmul.f32 %v981, %v1226
      %v1239 = vmul.f32 %v982, %v1226
      %v1240 = vmul.f32 %v983, %v1226
      %v1241 = vmul.f32 %v984, %v1226
      %v1242 = vmul.f32 %v985, %v1226
      %v1243 = vadd.f32 %v1210, %v1227
      %v1244 = vadd.f32 %v1211, %v1228
      %v1245 = vadd.f32 %v1212, %v1229
      %v1246 = vadd.f32 %v1213, %v1230
      %v1247 = vadd.f32 %v1214, %v1231
      %v1248 = vadd.f32 %v1215, %v1232
      %v1249 = vadd.f32 %v1216, %v1233
      %v1250 = vadd.f32 %v1217, %v1234
      %v1251 = vadd.f32 %v1218, %v1235
      %v1252 = vadd.f32 %v1219, %v1236
      %v1253 = vadd.f32 %v1220, %v1237
      %v1254 = vadd.f32 %v1221, %v1238
      %v1255 = vadd.f32 %v1222, %v1239
      %v1256 = vadd.f32 %v1223, %v1240
      %v1257 = vadd.f32 %v1224, %v1241
      %v1258 = vadd.f32 %v1225, %v1242
      %v1259 = vperm.slane %v812, 2
      %v1260 = vmul.f32 %v1106, %v1259
      %v1261 = vmul.f32 %v1105, %v1259
      %v1262 = vmul.f32 %v1104, %v1259
      %v1263 = vmul.f32 %v1103, %v1259
      %v1264 = vmul.f32 %v1102, %v1259
      %v1265 = vmul.f32 %v1101, %v1259
      %v1266 = vmul.f32 %v1100, %v1259
      %v1267 = vmul.f32 %v1099, %v1259
      %v1268 = vmul.f32 %v1098, %v1259
      %v1269 = vmul.f32 %v1097, %v1259
      %v1270 = vmul.f32 %v1096, %v1259
      %v1271 = vmul.f32 %v1095, %v1259
      %v1272 = vmul.f32 %v1094, %v1259
      %v1273 = vmul.f32 %v1093, %v1259
      %v1274 = vmul.f32 %v1092, %v1259
      %v1275 = vmul.f32 %v1091, %v1259
      %v1276 = vadd.f32 %v1243, %v1260
      %v1277 = vadd.f32 %v1244, %v1261
      %v1278 = vadd.f32 %v1245, %v1262
      %v1279 = vadd.f32 %v1246, %v1263
      %v1280 = vadd.f32 %v1247, %v1264
      %v1281 = vadd.f32 %v1248, %v1265
      %v1282 = vadd.f32 %v1249, %v1266
      %v1283 = vadd.f32 %v1250, %v1267
      %v1284 = vadd.f32 %v1251, %v1268
      %v1285 = vadd.f32 %v1252, %v1269
      %v1286 = vadd.f32 %v1253, %v1270
      %v1287 = vadd.f32 %v1254, %v1271
      %v1288 = vadd.f32 %v1255, %v1272
      %v1289 = vadd.f32 %v1256, %v1273
      %v1290 = vadd.f32 %v1257, %v1274
      %v1291 = vadd.f32 %v1258, %v1275
      %v1292 = vperm.slane %v813, 0
      %v1293 = vmul.f32 %v1064, %v1292
      %v1294 = vmul.f32 %v1063, %v1292
      %v1295 = vmul.f32 %v1062, %v1292
      %v1296 = vmul.f32 %v1061, %v1292
      %v1297 = vmul.f32 %v1060, %v1292
      %v1298 = vmul.f32 %v1059, %v1292
      %v1299 = vmul.f32 %v1058, %v1292
      %v1300 = vmul.f32 %v1057, %v1292
      %v1301 = vmul.f32 %v1056, %v1292
      %v1302 = vmul.f32 %v1055, %v1292
      %v1303 = vmul.f32 %v1054, %v1292
      %v1304 = vmul.f32 %v1053, %v1292
      %v1305 = vmul.f32 %v1052, %v1292
      %v1306 = vmul.f32 %v1051, %v1292
      %v1307 = vmul.f32 %v1050, %v1292
      %v1308 = vmul.f32 %v1049, %v1292
      %v1309 = vadd.f32 %v1276, %v1293
      %v1310 = vadd.f32 %v1277, %v1294
      %v1311 = vadd.f32 %v1278, %v1295
      %v1312 = vadd.f32 %v1279, %v1296
      %v1313 = vadd.f32 %v1280, %v1297
      %v1314 = vadd.f32 %v1281, %v1298
      %v1315 = vadd.f32 %v1282, %v1299
      %v1316 = vadd.f32 %v1283, %v1300
      %v1317 = vadd.f32 %v1284, %v1301
      %v1318 = vadd.f32 %v1285, %v1302
      %v1319 = vadd.f32 %v1286, %v1303
      %v1320 = vadd.f32 %v1287, %v1304
      %v1321 = vadd.f32 %v1288, %v1305
      %v1322 = vadd.f32 %v1289, %v1306
      %v1323 = vadd.f32 %v1290, %v1307
      %v1324 = vadd.f32 %v1291, %v1308
      %v1325 = vperm.slane %v813, 1
      %v1326 = vmul.f32 %v972, %v1325
      %v1327 = vmul.f32 %v973, %v1325
      %v1328 = vmul.f32 %v974, %v1325
      %v1329 = vmul.f32 %v975, %v1325
      %v1330 = vmul.f32 %v976, %v1325
      %v1331 = vmul.f32 %v977, %v1325
      %v1332 = vmul.f32 %v978, %v1325
      %v1333 = vmul.f32 %v979, %v1325
      %v1334 = vmul.f32 %v980, %v1325
      %v1335 = vmul.f32 %v981, %v1325
      %v1336 = vmul.f32 %v982, %v1325
      %v1337 = vmul.f32 %v983, %v1325
      %v1338 = vmul.f32 %v984, %v1325
      %v1339 = vmul.f32 %v985, %v1325
      %v1340 = vmul.f32 %v986, %v1325
      %v1341 = vmul.f32 %v987, %v1325
      %v1342 = vadd.f32 %v1309, %v1326
      %v1343 = vadd.f32 %v1310, %v1327
      %v1344 = vadd.f32 %v1311, %v1328
      %v1345 = vadd.f32 %v1312, %v1329
      %v1346 = vadd.f32 %v1313, %v1330
      %v1347 = vadd.f32 %v1314, %v1331
      %v1348 = vadd.f32 %v1315, %v1332
      %v1349 = vadd.f32 %v1316, %v1333
      %v1350 = vadd.f32 %v1317, %v1334
      %v1351 = vadd.f32 %v1318, %v1335
      %v1352 = vadd.f32 %v1319, %v1336
      %v1353 = vadd.f32 %v1320, %v1337
      %v1354 = vadd.f32 %v1321, %v1338
      %v1355 = vadd.f32 %v1322, %v1339
      %v1356 = vadd.f32 %v1323, %v1340
      %v1357 = vadd.f32 %v1324, %v1341
      %v1358 = vperm.slane %v813, 2
      %v1359 = vmul.f32 %v1104, %v1358
      %v1360 = vmul.f32 %v1103, %v1358
      %v1361 = vmul.f32 %v1102, %v1358
      %v1362 = vmul.f32 %v1101, %v1358
      %v1363 = vmul.f32 %v1100, %v1358
      %v1364 = vmul.f32 %v1099, %v1358
      %v1365 = vmul.f32 %v1098, %v1358
      %v1366 = vmul.f32 %v1097, %v1358
      %v1367 = vmul.f32 %v1096, %v1358
      %v1368 = vmul.f32 %v1095, %v1358
      %v1369 = vmul.f32 %v1094, %v1358
      %v1370 = vmul.f32 %v1093, %v1358
      %v1371 = vmul.f32 %v1092, %v1358
      %v1372 = vmul.f32 %v1091, %v1358
      %v1373 = vmul.f32 %v1090, %v1358
      %v1374 = vmul.f32 %v1109, %v1358
      %v1375 = vadd.f32 %v1342, %v1359
      %v1376 = vadd.f32 %v1343, %v1360
      %v1377 = vadd.f32 %v1344, %v1361
      %v1378 = vadd.f32 %v1345, %v1362
      %v1379 = vadd.f32 %v1346, %v1363
      %v1380 = vadd.f32 %v1347, %v1364
      %v1381 = vadd.f32 %v1348, %v1365
      %v1382 = vadd.f32 %v1349, %v1366
      %v1383 = vadd.f32 %v1350, %v1367
      %v1384 = vadd.f32 %v1351, %v1368
      %v1385 = vadd.f32 %v1352, %v1369
      %v1386 = vadd.f32 %v1353, %v1370
      %v1387 = vadd.f32 %v1354, %v1371
      %v1388 = vadd.f32 %v1355, %v1372
      %v1389 = vadd.f32 %v1356, %v1373
      %v1390 = vadd.f32 %v1357, %v1374
      %v1392 = vperm.slane %v817, 0
      %v1394 = vadd.f32 %v1375, %v1392
      %v1395 = vadd.f32 %v1376, %v1392
      %v1396 = vadd.f32 %v1377, %v1392
      %v1397 = vadd.f32 %v1378, %v1392
      %v1398 = vadd.f32 %v1379, %v1392
      %v1399 = vadd.f32 %v1380, %v1392
      %v1400 = vadd.f32 %v1381, %v1392
      %v1401 = vadd.f32 %v1382, %v1392
      %v1402 = vadd.f32 %v1383, %v1392
      %v1403 = vadd.f32 %v1384, %v1392
      %v1404 = vadd.f32 %v1385, %v1392
      %v1405 = vadd.f32 %v1386, %v1392
      %v1406 = vadd.f32 %v1387, %v1392
      %v1407 = vadd.f32 %v1388, %v1392
      %v1408 = vadd.f32 %v1389, %v1392
      %v1409 = vadd.f32 %v1390, %v1392
      %v1410 = vld [vmem:[%s4] sm:$0xf]
      %v1411 = vld [vmem:[%s6] sm:$0x1]
      %v1413 = vperm.slane %v1411, 0
      %v1416 = vsel %vm905, %v1410, 0
      %1418 = vmatpush.bf16.msra.mxu0 0
      %1419 = vmatpush.bf16.msra.mxu0 0
      %1420 = vmatpush.bf16.msra.mxu0 0
      %1421 = vmatpush.bf16.msra.mxu0 0
      %1422 = vmatpush.bf16.msra.mxu0 0
      %1423 = vmatpush.bf16.msra.mxu0 0
      %1424 = vmatpush.bf16.msra.mxu0 0
      %1425 = vmatpush.bf16.msra.mxu0 %v1416
      %1426 = vmatmul.bf16.gmra.mxu0 %v876
      %v1427 = vpop.f32.mrf.mxu0
      %v1428 = vadd.f32 %v1413, %v1427
      %v1429 = vpop.f32.mrf.mxu0
      %v1430 = vadd.f32 %v1413, %v1429
      %1431 = vmatmul.bf16.gmra.mxu0 %v879
      %v1432 = vpop.f32.mrf.mxu0
      %v1433 = vadd.f32 %v1413, %v1432
      %v1434 = vpop.f32.mrf.mxu0
      %v1435 = vadd.f32 %v1413, %v1434
      %1436 = vmatmul.bf16.gmra.mxu0 %v882
      %v1437 = vpop.f32.mrf.mxu0
      %v1438 = vadd.f32 %v1413, %v1437
      %v1439 = vpop.f32.mrf.mxu0
      %v1440 = vadd.f32 %v1413, %v1439
      %1441 = vmatmul.bf16.gmra.mxu0 %v885
      %v1442 = vpop.f32.mrf.mxu0
      %v1443 = vadd.f32 %v1413, %v1442
      %v1444 = vpop.f32.mrf.mxu0
      %v1445 = vadd.f32 %v1413, %v1444
      %1446 = vmatmul.bf16.gmra.mxu0 %v888
      %v1447 = vpop.f32.mrf.mxu0
      %v1448 = vadd.f32 %v1413, %v1447
      %v1449 = vpop.f32.mrf.mxu0
      %v1450 = vadd.f32 %v1413, %v1449
      %1451 = vmatmul.bf16.gmra.mxu0 %v891
      %v1452 = vpop.f32.mrf.mxu0
      %v1453 = vadd.f32 %v1413, %v1452
      %v1454 = vpop.f32.mrf.mxu0
      %v1455 = vadd.f32 %v1413, %v1454
      %1456 = vmatmul.bf16.gmra.mxu0 %v894
      %v1457 = vpop.f32.mrf.mxu0
      %v1458 = vadd.f32 %v1413, %v1457
      %v1459 = vpop.f32.mrf.mxu0
      %v1460 = vadd.f32 %v1413, %v1459
      %1461 = vmatmul.bf16.gmra.mxu0 %v897
      %v1462 = vpop.f32.mrf.mxu0
      %v1463 = vadd.f32 %v1413, %v1462
      %v1464 = vpop.f32.mrf.mxu0
      %v1465 = vadd.f32 %v1413, %v1464
      %1466 = vmatmul.bf16.gmra.mxu0 %v900
      %v1467 = vpop.f32.mrf.mxu0
      %v1468 = vadd.f32 %v1413, %v1467
      %v1469 = vpop.f32.mrf.mxu0
      %v1470 = vadd.f32 %v1413, %v1469
      %1471 = vmatmul.bf16.gmra.mxu0 %v903
      %v1472 = vpop.f32.mrf.mxu0
      %v1473 = vadd.f32 %v1413, %v1472
      %v1474 = vpop.f32.mrf.mxu0
      %v1475 = vadd.f32 %v1413, %v1474
      %1476 = vdwg.mxu0
      %v1477 = vmul.f32 %v1428, %v779
      %v1478 = vmul.f32 %v1430, %v780
      %v1479 = vmul.f32 %v1433, %v781
      %v1480 = vmul.f32 %v1435, %v782
      %v1481 = vmul.f32 %v1438, %v783
      %v1482 = vmul.f32 %v1440, %v784
      %v1483 = vmul.f32 %v1443, %v785
      %v1484 = vmul.f32 %v1445, %v786
      %v1485 = vmul.f32 %v1448, %v787
      %v1486 = vmul.f32 %v1450, %v788
      %v1487 = vmul.f32 %v1453, %v789
      %v1488 = vmul.f32 %v1455, %v790
      %v1489 = vmul.f32 %v1458, %v791
      %v1490 = vmul.f32 %v1460, %v792
      %v1491 = vmul.f32 %v1463, %v793
      %v1492 = vmul.f32 %v1465, %v794
      %v1493 = vmul.f32 %v1468, %v795
      %v1494 = vmul.f32 %v1470, %v796
      %v1495 = vmul.f32 %v1473, %v797
      %v1496 = vmul.f32 %v1475, %v798
      %v1497 = vmul.f32 %v1477, %v803
      %v1498 = vmul.f32 %v1478, %v804
      %v1499 = vmul.f32 %v1479, %v803
      %v1500 = vmul.f32 %v1480, %v804
      %v1501 = vmul.f32 %v1481, %v803
      %v1502 = vmul.f32 %v1482, %v804
      %v1503 = vmul.f32 %v1483, %v803
      %v1504 = vmul.f32 %v1484, %v804
      %v1505 = vmul.f32 %v1485, %v803
      %v1506 = vmul.f32 %v1486, %v804
      %v1507 = vmul.f32 %v1487, %v803
      %v1508 = vmul.f32 %v1488, %v804
      %v1509 = vmul.f32 %v1489, %v803
      %v1510 = vmul.f32 %v1490, %v804
      %v1511 = vmul.f32 %v1491, %v803
      %v1512 = vmul.f32 %v1492, %v804
      %v1513 = vmul.f32 %v1493, %v803
      %v1514 = vmul.f32 %v1494, %v804
      %v1515 = vmul.f32 %v1495, %v803
      %v1516 = vmul.f32 %v1496, %v804
      %v1517 = vmul.f32 %v1477, %v809
      %v1518 = vmul.f32 %v1478, %v810
      %v1519 = vmul.f32 %v1479, %v809
      %v1520 = vmul.f32 %v1480, %v810
      %v1521 = vmul.f32 %v1481, %v809
      %v1522 = vmul.f32 %v1482, %v810
      %v1523 = vmul.f32 %v1483, %v809
      %v1524 = vmul.f32 %v1484, %v810
      %v1525 = vmul.f32 %v1485, %v809
      %v1526 = vmul.f32 %v1486, %v810
      %v1527 = vmul.f32 %v1487, %v809
      %v1528 = vmul.f32 %v1488, %v810
      %v1529 = vmul.f32 %v1489, %v809
      %v1530 = vmul.f32 %v1490, %v810
      %v1531 = vmul.f32 %v1491, %v809
      %v1532 = vmul.f32 %v1492, %v810
      %v1533 = vmul.f32 %v1493, %v809
      %v1534 = vmul.f32 %v1494, %v810
      %v1535 = vmul.f32 %v1495, %v809
      %v1536 = vmul.f32 %v1496, %v810
      %v1537 = vrot.slane %v1497, 7
      %v1538 = vrot.slane %v1498, 7
      %v1539 = vrot.slane %v1499, 7
      %v1540 = vrot.slane %v1500, 7
      %v1541 = vrot.slane %v1501, 7
      %v1542 = vrot.slane %v1502, 7
      %v1543 = vrot.slane %v1503, 7
      %v1544 = vrot.slane %v1504, 7
      %v1545 = vrot.slane %v1505, 7
      %v1546 = vrot.slane %v1506, 7
      %v1547 = vrot.slane %v1507, 7
      %v1548 = vrot.slane %v1508, 7
      %v1549 = vrot.slane %v1509, 7
      %v1550 = vrot.slane %v1510, 7
      %v1551 = vrot.slane %v1511, 7
      %v1552 = vrot.slane %v1512, 7
      %v1553 = vrot.slane %v1513, 7
      %v1554 = vrot.slane %v1514, 7
      %v1555 = vrot.slane %v1515, 7
      %v1556 = vrot.slane %v1516, 7
      %v1557 = vsel %vm1048, %v1555, %v1556
      %v1558 = vsel %vm1048, %v1554, %v1555
      %v1559 = vsel %vm1048, %v1553, %v1554
      %v1560 = vsel %vm1048, %v1552, %v1553
      %v1561 = vsel %vm1048, %v1551, %v1552
      %v1562 = vsel %vm1048, %v1550, %v1551
      %v1563 = vsel %vm1048, %v1549, %v1550
      %v1564 = vsel %vm1048, %v1548, %v1549
      %v1565 = vsel %vm1048, %v1547, %v1548
      %v1566 = vsel %vm1048, %v1546, %v1547
      %v1567 = vsel %vm1048, %v1545, %v1546
      %v1568 = vsel %vm1048, %v1544, %v1545
      %v1569 = vsel %vm1048, %v1543, %v1544
      %v1570 = vsel %vm1048, %v1542, %v1543
      %v1571 = vsel %vm1048, %v1541, %v1542
      %v1572 = vsel %vm1048, %v1540, %v1541
      %v1573 = vsel %vm1048, %v1539, %v1540
      %v1574 = vsel %vm1048, %v1538, %v1539
      %v1575 = vsel %vm1048, %v1537, %v1538
      %v1576 = vsel %vm1048, %v1556, %v1537
      %v1577 = vrot.slane %v1517, 1
      %v1578 = vrot.slane %v1518, 1
      %v1579 = vrot.slane %v1519, 1
      %v1580 = vrot.slane %v1520, 1
      %v1581 = vrot.slane %v1521, 1
      %v1582 = vrot.slane %v1522, 1
      %v1583 = vrot.slane %v1523, 1
      %v1584 = vrot.slane %v1524, 1
      %v1585 = vrot.slane %v1525, 1
      %v1586 = vrot.slane %v1526, 1
      %v1587 = vrot.slane %v1527, 1
      %v1588 = vrot.slane %v1528, 1
      %v1589 = vrot.slane %v1529, 1
      %v1590 = vrot.slane %v1530, 1
      %v1591 = vrot.slane %v1531, 1
      %v1592 = vrot.slane %v1532, 1
      %v1593 = vrot.slane %v1533, 1
      %v1594 = vrot.slane %v1534, 1
      %v1595 = vrot.slane %v1535, 1
      %v1596 = vrot.slane %v1536, 1
      %v1597 = vsel %vm1089, %v1595, %v1596
      %v1598 = vsel %vm1089, %v1594, %v1595
      %v1599 = vsel %vm1089, %v1593, %v1594
      %v1600 = vsel %vm1089, %v1592, %v1593
      %v1601 = vsel %vm1089, %v1591, %v1592
      %v1602 = vsel %vm1089, %v1590, %v1591
      %v1603 = vsel %vm1089, %v1589, %v1590
      %v1604 = vsel %vm1089, %v1588, %v1589
      %v1605 = vsel %vm1089, %v1587, %v1588
      %v1606 = vsel %vm1089, %v1586, %v1587
      %v1607 = vsel %vm1089, %v1585, %v1586
      %v1608 = vsel %vm1089, %v1584, %v1585
      %v1609 = vsel %vm1089, %v1583, %v1584
      %v1610 = vsel %vm1089, %v1582, %v1583
      %v1611 = vsel %vm1089, %v1581, %v1582
      %v1612 = vsel %vm1089, %v1580, %v1581
      %v1613 = vsel %vm1089, %v1579, %v1580
      %v1614 = vsel %vm1089, %v1578, %v1579
      %v1615 = vsel %vm1089, %v1577, %v1578
      %v1616 = vsel %vm1089, %v1596, %v1577
      %v1617 = vperm.slane %v814, 0
      %v1618 = vmul.f32 %v1576, %v1617
      %v1619 = vmul.f32 %v1575, %v1617
      %v1620 = vmul.f32 %v1574, %v1617
      %v1621 = vmul.f32 %v1573, %v1617
      %v1622 = vmul.f32 %v1572, %v1617
      %v1623 = vmul.f32 %v1571, %v1617
      %v1624 = vmul.f32 %v1570, %v1617
      %v1625 = vmul.f32 %v1569, %v1617
      %v1626 = vmul.f32 %v1568, %v1617
      %v1627 = vmul.f32 %v1567, %v1617
      %v1628 = vmul.f32 %v1566, %v1617
      %v1629 = vmul.f32 %v1565, %v1617
      %v1630 = vmul.f32 %v1564, %v1617
      %v1631 = vmul.f32 %v1563, %v1617
      %v1632 = vmul.f32 %v1562, %v1617
      %v1633 = vmul.f32 %v1561, %v1617
      %v1634 = vperm.slane %v814, 1
      %v1635 = vmul.f32 %v1477, %v1634
      %v1636 = vmul.f32 %v1478, %v1634
      %v1637 = vmul.f32 %v1479, %v1634
      %v1638 = vmul.f32 %v1480, %v1634
      %v1639 = vmul.f32 %v1481, %v1634
      %v1640 = vmul.f32 %v1482, %v1634
      %v1641 = vmul.f32 %v1483, %v1634
      %v1642 = vmul.f32 %v1484, %v1634
      %v1643 = vmul.f32 %v1485, %v1634
      %v1644 = vmul.f32 %v1486, %v1634
      %v1645 = vmul.f32 %v1487, %v1634
      %v1646 = vmul.f32 %v1488, %v1634
      %v1647 = vmul.f32 %v1489, %v1634
      %v1648 = vmul.f32 %v1490, %v1634
      %v1649 = vmul.f32 %v1491, %v1634
      %v1650 = vmul.f32 %v1492, %v1634
      %v1651 = vadd.f32 %v1618, %v1635
      %v1652 = vadd.f32 %v1619, %v1636
      %v1653 = vadd.f32 %v1620, %v1637
      %v1654 = vadd.f32 %v1621, %v1638
      %v1655 = vadd.f32 %v1622, %v1639
      %v1656 = vadd.f32 %v1623, %v1640
      %v1657 = vadd.f32 %v1624, %v1641
      %v1658 = vadd.f32 %v1625, %v1642
      %v1659 = vadd.f32 %v1626, %v1643
      %v1660 = vadd.f32 %v1627, %v1644
      %v1661 = vadd.f32 %v1628, %v1645
      %v1662 = vadd.f32 %v1629, %v1646
      %v1663 = vadd.f32 %v1630, %v1647
      %v1664 = vadd.f32 %v1631, %v1648
      %v1665 = vadd.f32 %v1632, %v1649
      %v1666 = vadd.f32 %v1633, %v1650
      %v1667 = vperm.slane %v814, 2
      %v1668 = vmul.f32 %v1615, %v1667
      %v1669 = vmul.f32 %v1614, %v1667
      %v1670 = vmul.f32 %v1613, %v1667
      %v1671 = vmul.f32 %v1612, %v1667
      %v1672 = vmul.f32 %v1611, %v1667
      %v1673 = vmul.f32 %v1610, %v1667
      %v1674 = vmul.f32 %v1609, %v1667
      %v1675 = vmul.f32 %v1608, %v1667
      %v1676 = vmul.f32 %v1607, %v1667
      %v1677 = vmul.f32 %v1606, %v1667
      %v1678 = vmul.f32 %v1605, %v1667
      %v1679 = vmul.f32 %v1604, %v1667
      %v1680 = vmul.f32 %v1603, %v1667
      %v1681 = vmul.f32 %v1602, %v1667
      %v1682 = vmul.f32 %v1601, %v1667
      %v1683 = vmul.f32 %v1600, %v1667
      %v1684 = vadd.f32 %v1651, %v1668
      %v1685 = vadd.f32 %v1652, %v1669
      %v1686 = vadd.f32 %v1653, %v1670
      %v1687 = vadd.f32 %v1654, %v1671
      %v1688 = vadd.f32 %v1655, %v1672
      %v1689 = vadd.f32 %v1656, %v1673
      %v1690 = vadd.f32 %v1657, %v1674
      %v1691 = vadd.f32 %v1658, %v1675
      %v1692 = vadd.f32 %v1659, %v1676
      %v1693 = vadd.f32 %v1660, %v1677
      %v1694 = vadd.f32 %v1661, %v1678
      %v1695 = vadd.f32 %v1662, %v1679
      %v1696 = vadd.f32 %v1663, %v1680
      %v1697 = vadd.f32 %v1664, %v1681
      %v1698 = vadd.f32 %v1665, %v1682
      %v1699 = vadd.f32 %v1666, %v1683
      %v1700 = vperm.slane %v815, 0
      %v1701 = vmul.f32 %v1574, %v1700
      %v1702 = vmul.f32 %v1573, %v1700
      %v1703 = vmul.f32 %v1572, %v1700
      %v1704 = vmul.f32 %v1571, %v1700
      %v1705 = vmul.f32 %v1570, %v1700
      %v1706 = vmul.f32 %v1569, %v1700
      %v1707 = vmul.f32 %v1568, %v1700
      %v1708 = vmul.f32 %v1567, %v1700
      %v1709 = vmul.f32 %v1566, %v1700
      %v1710 = vmul.f32 %v1565, %v1700
      %v1711 = vmul.f32 %v1564, %v1700
      %v1712 = vmul.f32 %v1563, %v1700
      %v1713 = vmul.f32 %v1562, %v1700
      %v1714 = vmul.f32 %v1561, %v1700
      %v1715 = vmul.f32 %v1560, %v1700
      %v1716 = vmul.f32 %v1559, %v1700
      %v1717 = vadd.f32 %v1684, %v1701
      %v1718 = vadd.f32 %v1685, %v1702
      %v1719 = vadd.f32 %v1686, %v1703
      %v1720 = vadd.f32 %v1687, %v1704
      %v1721 = vadd.f32 %v1688, %v1705
      %v1722 = vadd.f32 %v1689, %v1706
      %v1723 = vadd.f32 %v1690, %v1707
      %v1724 = vadd.f32 %v1691, %v1708
      %v1725 = vadd.f32 %v1692, %v1709
      %v1726 = vadd.f32 %v1693, %v1710
      %v1727 = vadd.f32 %v1694, %v1711
      %v1728 = vadd.f32 %v1695, %v1712
      %v1729 = vadd.f32 %v1696, %v1713
      %v1730 = vadd.f32 %v1697, %v1714
      %v1731 = vadd.f32 %v1698, %v1715
      %v1732 = vadd.f32 %v1699, %v1716
      %v1733 = vperm.slane %v815, 1
      %v1734 = vmul.f32 %v1479, %v1733
      %v1735 = vmul.f32 %v1480, %v1733
      %v1736 = vmul.f32 %v1481, %v1733
      %v1737 = vmul.f32 %v1482, %v1733
      %v1738 = vmul.f32 %v1483, %v1733
      %v1739 = vmul.f32 %v1484, %v1733
      %v1740 = vmul.f32 %v1485, %v1733
      %v1741 = vmul.f32 %v1486, %v1733
      %v1742 = vmul.f32 %v1487, %v1733
      %v1743 = vmul.f32 %v1488, %v1733
      %v1744 = vmul.f32 %v1489, %v1733
      %v1745 = vmul.f32 %v1490, %v1733
      %v1746 = vmul.f32 %v1491, %v1733
      %v1747 = vmul.f32 %v1492, %v1733
      %v1748 = vmul.f32 %v1493, %v1733
      %v1749 = vmul.f32 %v1494, %v1733
      %v1750 = vadd.f32 %v1717, %v1734
      %v1751 = vadd.f32 %v1718, %v1735
      %v1752 = vadd.f32 %v1719, %v1736
      %v1753 = vadd.f32 %v1720, %v1737
      %v1754 = vadd.f32 %v1721, %v1738
      %v1755 = vadd.f32 %v1722, %v1739
      %v1756 = vadd.f32 %v1723, %v1740
      %v1757 = vadd.f32 %v1724, %v1741
      %v1758 = vadd.f32 %v1725, %v1742
      %v1759 = vadd.f32 %v1726, %v1743
      %v1760 = vadd.f32 %v1727, %v1744
      %v1761 = vadd.f32 %v1728, %v1745
      %v1762 = vadd.f32 %v1729, %v1746
      %v1763 = vadd.f32 %v1730, %v1747
      %v1764 = vadd.f32 %v1731, %v1748
      %v1765 = vadd.f32 %v1732, %v1749
      %v1766 = vperm.slane %v815, 2
      %v1767 = vmul.f32 %v1613, %v1766
      %v1768 = vmul.f32 %v1612, %v1766
      %v1769 = vmul.f32 %v1611, %v1766
      %v1770 = vmul.f32 %v1610, %v1766
      %v1771 = vmul.f32 %v1609, %v1766
      %v1772 = vmul.f32 %v1608, %v1766
      %v1773 = vmul.f32 %v1607, %v1766
      %v1774 = vmul.f32 %v1606, %v1766
      %v1775 = vmul.f32 %v1605, %v1766
      %v1776 = vmul.f32 %v1604, %v1766
      %v1777 = vmul.f32 %v1603, %v1766
      %v1778 = vmul.f32 %v1602, %v1766
      %v1779 = vmul.f32 %v1601, %v1766
      %v1780 = vmul.f32 %v1600, %v1766
      %v1781 = vmul.f32 %v1599, %v1766
      %v1782 = vmul.f32 %v1598, %v1766
      %v1783 = vadd.f32 %v1750, %v1767
      %v1784 = vadd.f32 %v1751, %v1768
      %v1785 = vadd.f32 %v1752, %v1769
      %v1786 = vadd.f32 %v1753, %v1770
      %v1787 = vadd.f32 %v1754, %v1771
      %v1788 = vadd.f32 %v1755, %v1772
      %v1789 = vadd.f32 %v1756, %v1773
      %v1790 = vadd.f32 %v1757, %v1774
      %v1791 = vadd.f32 %v1758, %v1775
      %v1792 = vadd.f32 %v1759, %v1776
      %v1793 = vadd.f32 %v1760, %v1777
      %v1794 = vadd.f32 %v1761, %v1778
      %v1795 = vadd.f32 %v1762, %v1779
      %v1796 = vadd.f32 %v1763, %v1780
      %v1797 = vadd.f32 %v1764, %v1781
      %v1798 = vadd.f32 %v1765, %v1782
      %v1799 = vperm.slane %v816, 0
      %v1800 = vmul.f32 %v1572, %v1799
      %v1801 = vmul.f32 %v1571, %v1799
      %v1802 = vmul.f32 %v1570, %v1799
      %v1803 = vmul.f32 %v1569, %v1799
      %v1804 = vmul.f32 %v1568, %v1799
      %v1805 = vmul.f32 %v1567, %v1799
      %v1806 = vmul.f32 %v1566, %v1799
      %v1807 = vmul.f32 %v1565, %v1799
      %v1808 = vmul.f32 %v1564, %v1799
      %v1809 = vmul.f32 %v1563, %v1799
      %v1810 = vmul.f32 %v1562, %v1799
      %v1811 = vmul.f32 %v1561, %v1799
      %v1812 = vmul.f32 %v1560, %v1799
      %v1813 = vmul.f32 %v1559, %v1799
      %v1814 = vmul.f32 %v1558, %v1799
      %v1815 = vmul.f32 %v1557, %v1799
      %v1816 = vadd.f32 %v1783, %v1800
      %v1817 = vadd.f32 %v1784, %v1801
      %v1818 = vadd.f32 %v1785, %v1802
      %v1819 = vadd.f32 %v1786, %v1803
      %v1820 = vadd.f32 %v1787, %v1804
      %v1821 = vadd.f32 %v1788, %v1805
      %v1822 = vadd.f32 %v1789, %v1806
      %v1823 = vadd.f32 %v1790, %v1807
      %v1824 = vadd.f32 %v1791, %v1808
      %v1825 = vadd.f32 %v1792, %v1809
      %v1826 = vadd.f32 %v1793, %v1810
      %v1827 = vadd.f32 %v1794, %v1811
      %v1828 = vadd.f32 %v1795, %v1812
      %v1829 = vadd.f32 %v1796, %v1813
      %v1830 = vadd.f32 %v1797, %v1814
      %v1831 = vadd.f32 %v1798, %v1815
      %v1832 = vperm.slane %v816, 1
      %v1833 = vmul.f32 %v1481, %v1832
      %v1834 = vmul.f32 %v1482, %v1832
      %v1835 = vmul.f32 %v1483, %v1832
      %v1836 = vmul.f32 %v1484, %v1832
      %v1837 = vmul.f32 %v1485, %v1832
      %v1838 = vmul.f32 %v1486, %v1832
      %v1839 = vmul.f32 %v1487, %v1832
      %v1840 = vmul.f32 %v1488, %v1832
      %v1841 = vmul.f32 %v1489, %v1832
      %v1842 = vmul.f32 %v1490, %v1832
      %v1843 = vmul.f32 %v1491, %v1832
      %v1844 = vmul.f32 %v1492, %v1832
      %v1845 = vmul.f32 %v1493, %v1832
      %v1846 = vmul.f32 %v1494, %v1832
      %v1847 = vmul.f32 %v1495, %v1832
      %v1848 = vmul.f32 %v1496, %v1832
      %v1849 = vadd.f32 %v1816, %v1833
      %v1850 = vadd.f32 %v1817, %v1834
      %v1851 = vadd.f32 %v1818, %v1835
      %v1852 = vadd.f32 %v1819, %v1836
      %v1853 = vadd.f32 %v1820, %v1837
      %v1854 = vadd.f32 %v1821, %v1838
      %v1855 = vadd.f32 %v1822, %v1839
      %v1856 = vadd.f32 %v1823, %v1840
      %v1857 = vadd.f32 %v1824, %v1841
      %v1858 = vadd.f32 %v1825, %v1842
      %v1859 = vadd.f32 %v1826, %v1843
      %v1860 = vadd.f32 %v1827, %v1844
      %v1861 = vadd.f32 %v1828, %v1845
      %v1862 = vadd.f32 %v1829, %v1846
      %v1863 = vadd.f32 %v1830, %v1847
      %v1864 = vadd.f32 %v1831, %v1848
      %v1865 = vperm.slane %v816, 2
      %v1866 = vmul.f32 %v1611, %v1865
      %v1867 = vmul.f32 %v1610, %v1865
      %v1868 = vmul.f32 %v1609, %v1865
      %v1869 = vmul.f32 %v1608, %v1865
      %v1870 = vmul.f32 %v1607, %v1865
      %v1871 = vmul.f32 %v1606, %v1865
      %v1872 = vmul.f32 %v1605, %v1865
      %v1873 = vmul.f32 %v1604, %v1865
      %v1874 = vmul.f32 %v1603, %v1865
      %v1875 = vmul.f32 %v1602, %v1865
      %v1876 = vmul.f32 %v1601, %v1865
      %v1877 = vmul.f32 %v1600, %v1865
      %v1878 = vmul.f32 %v1599, %v1865
      %v1879 = vmul.f32 %v1598, %v1865
      %v1880 = vmul.f32 %v1597, %v1865
      %v1881 = vmul.f32 %v1616, %v1865
      %v1882 = vadd.f32 %v1849, %v1866
      %v1883 = vadd.f32 %v1850, %v1867
      %v1884 = vadd.f32 %v1851, %v1868
      %v1885 = vadd.f32 %v1852, %v1869
      %v1886 = vadd.f32 %v1853, %v1870
      %v1887 = vadd.f32 %v1854, %v1871
      %v1888 = vadd.f32 %v1855, %v1872
      %v1889 = vadd.f32 %v1856, %v1873
      %v1890 = vadd.f32 %v1857, %v1874
      %v1891 = vadd.f32 %v1858, %v1875
      %v1892 = vadd.f32 %v1859, %v1876
      %v1893 = vadd.f32 %v1860, %v1877
      %v1894 = vadd.f32 %v1861, %v1878
      %v1895 = vadd.f32 %v1862, %v1879
      %v1896 = vadd.f32 %v1863, %v1880
      %v1897 = vadd.f32 %v1864, %v1881
      %v1899 = vperm.slane %v818, 0
      %v1901 = vadd.f32 %v1882, %v1899
      %v1902 = vadd.f32 %v1883, %v1899
      %v1903 = vadd.f32 %v1884, %v1899
      %v1904 = vadd.f32 %v1885, %v1899
      %v1905 = vadd.f32 %v1886, %v1899
      %v1906 = vadd.f32 %v1887, %v1899
      %v1907 = vadd.f32 %v1888, %v1899
      %v1908 = vadd.f32 %v1889, %v1899
      %v1909 = vadd.f32 %v1890, %v1899
      %v1910 = vadd.f32 %v1891, %v1899
      %v1911 = vadd.f32 %v1892, %v1899
      %v1912 = vadd.f32 %v1893, %v1899
      %v1913 = vadd.f32 %v1894, %v1899
      %v1914 = vadd.f32 %v1895, %v1899
      %v1915 = vadd.f32 %v1896, %v1899
      %v1916 = vadd.f32 %v1897, %v1899
      %v1917 = vmul.f32 %v1394, 0.5
      %v1918 = vmul.f32 %v1395, 0.5
      %v1919 = vmul.f32 %v1396, 0.5
      %v1920 = vmul.f32 %v1397, 0.5
      %v1921 = vmul.f32 %v1398, 0.5
      %v1922 = vmul.f32 %v1399, 0.5
      %v1923 = vmul.f32 %v1400, 0.5
      %v1924 = vmul.f32 %v1401, 0.5
      %v1925 = vmul.f32 %v1402, 0.5
      %v1926 = vmul.f32 %v1403, 0.5
      %v1927 = vmul.f32 %v1404, 0.5
      %v1928 = vmul.f32 %v1405, 0.5
      %v1929 = vmul.f32 %v1406, 0.5
      %v1930 = vmul.f32 %v1407, 0.5
      %v1931 = vmul.f32 %v1408, 0.5
      %v1932 = vmul.f32 %v1409, 0.5
      %v1933 = vmul.f32 %v1394, 0.70710677
      %v1934 = vmul.f32 %v1395, 0.70710677
      %v1935 = vmul.f32 %v1396, 0.70710677
      %v1936 = vmul.f32 %v1397, 0.70710677
      %v1937 = vmul.f32 %v1398, 0.70710677
      %v1938 = vmul.f32 %v1399, 0.70710677
      %v1939 = vmul.f32 %v1400, 0.70710677
      %v1940 = vmul.f32 %v1401, 0.70710677
      %v1941 = vmul.f32 %v1402, 0.70710677
      %v1942 = vmul.f32 %v1403, 0.70710677
      %v1943 = vmul.f32 %v1404, 0.70710677
      %v1944 = vmul.f32 %v1405, 0.70710677
      %v1945 = vmul.f32 %v1406, 0.70710677
      %v1946 = vmul.f32 %v1407, 0.70710677
      %v1947 = vmul.f32 %v1408, 0.70710677
      %v1948 = vmul.f32 %v1409, 0.70710677
      %v1949 = vmul.f32 %v1933, %v1933
      %v1950 = vmin.f32 16.0, %v1949
      %v1951 = vmul.f32 %v1950, 2.1237322e-06
      %v1952 = vadd.f32 %v1951, 0.00028619796
      %v1953 = vmul.f32 %v1950, %v1952
      %v1954 = vadd.f32 %v1953, 0.0036580483
      %v1955 = vmul.f32 %v1950, %v1954
      %v1956 = vadd.f32 %v1955, 0.05243302
      %v1957 = vmul.f32 %v1950, %v1956
      %v1958 = vadd.f32 %v1957, 0.18741608
      %v1959 = vmul.f32 %v1950, %v1958
      %v1960 = vadd.f32 %v1959, 1.1283791
      %v1961 = vmul.f32 %v1933, %v1960
      %v1962 = vmul.f32 %v1950, 3.8918573e-05
      %v1963 = vadd.f32 %v1962, 0.001143296
      %v1964 = vmul.f32 %v1950, %v1963
      %v1965 = vadd.f32 %v1964, 0.014752088
      %v1966 = vmul.f32 %v1950, %v1965
      %v1967 = vadd.f32 %v1966, 0.112945676
      %v1968 = vmul.f32 %v1950, %v1967
      %v1969 = vadd.f32 %v1968, 0.4994258
      %v1970 = vmul.f32 %v1950, %v1969
      %v1971 = vadd.f32 %v1970, 1.0
      %v1972 = vrcp.pop %v1971
      %v1973 = vmul.f32 %v1971, %v1972
      %v1974 = vsub.f32 1.0, %v1973
      %v1975 = vmul.f32 %v1972, %v1974
      %v1976 = vadd.f32 %v1972, %v1975
      %vm1977 = vweird.f32 %v1971
      %vm1978 = vweird.f32 %v1972
      %vm1979 = vmor %vm1977, %vm1978
      %v1980 = vsel %vm1979, %v1972, %v1976
      %v1981 = vand.u32 2147483647, %v1971
      %vm1982 = vcmp.eq.f32.partialorder %v1981, 8.507059e+37
      %v1983 = vand.u32 %v1971, 2147483648
      %v1984 = vor.u32 1.1754944e-38, %v1983
      %v1985 = vsel %vm1982, %v1984, %v1980
      %v1986 = vmul.f32 %v1961, %v1985
      %v1987 = vmin.f32 %v1986, 1.0
      %v1988 = vmax.f32 %v1987, -1.0
      %v1989 = vmul.f32 %v1934, %v1934
      %v1990 = vmin.f32 16.0, %v1989
      %v1991 = vmul.f32 %v1990, 2.1237322e-06
      %v1992 = vadd.f32 %v1991, 0.00028619796
      %v1993 = vmul.f32 %v1990, %v1992
      %v1994 = vadd.f32 %v1993, 0.0036580483
      %v1995 = vmul.f32 %v1990, %v1994
      %v1996 = vadd.f32 %v1995, 0.05243302
      %v1997 = vmul.f32 %v1990, %v1996
      %v1998 = vadd.f32 %v1997, 0.18741608
      %v1999 = vmul.f32 %v1990, %v1998
      %v2000 = vadd.f32 %v1999, 1.1283791
      %v2001 = vmul.f32 %v1934, %v2000
      %v2002 = vmul.f32 %v1990, 3.8918573e-05
      %v2003 = vadd.f32 %v2002, 0.001143296
      %v2004 = vmul.f32 %v1990, %v2003
      %v2005 = vadd.f32 %v2004, 0.014752088
      %v2006 = vmul.f32 %v1990, %v2005
      %v2007 = vadd.f32 %v2006, 0.112945676
      %v2008 = vmul.f32 %v1990, %v2007
      %v2009 = vadd.f32 %v2008, 0.4994258
      %v2010 = vmul.f32 %v1990, %v2009
      %v2011 = vadd.f32 %v2010, 1.0
      %v2012 = vrcp.pop %v2011
      %v2013 = vmul.f32 %v2011, %v2012
      %v2014 = vsub.f32 1.0, %v2013
      %v2015 = vmul.f32 %v2012, %v2014
      %v2016 = vadd.f32 %v2012, %v2015
      %vm2017 = vweird.f32 %v2011
      %vm2018 = vweird.f32 %v2012
      %vm2019 = vmor %vm2017, %vm2018
      %v2020 = vsel %vm2019, %v2012, %v2016
      %v2021 = vand.u32 2147483647, %v2011
      %vm2022 = vcmp.eq.f32.partialorder %v2021, 8.507059e+37
      %v2023 = vand.u32 %v2011, 2147483648
      %v2024 = vor.u32 1.1754944e-38, %v2023
      %v2025 = vsel %vm2022, %v2024, %v2020
      %v2026 = vmul.f32 %v2001, %v2025
      %v2027 = vmin.f32 %v2026, 1.0
      %v2028 = vmax.f32 %v2027, -1.0
      %v2029 = vmul.f32 %v1935, %v1935
      %v2030 = vmin.f32 16.0, %v2029
      %v2031 = vmul.f32 %v2030, 2.1237322e-06
      %v2032 = vadd.f32 %v2031, 0.00028619796
      %v2033 = vmul.f32 %v2030, %v2032
      %v2034 = vadd.f32 %v2033, 0.0036580483
      %v2035 = vmul.f32 %v2030, %v2034
      %v2036 = vadd.f32 %v2035, 0.05243302
      %v2037 = vmul.f32 %v2030, %v2036
      %v2038 = vadd.f32 %v2037, 0.18741608
      %v2039 = vmul.f32 %v2030, %v2038
      %v2040 = vadd.f32 %v2039, 1.1283791
      %v2041 = vmul.f32 %v1935, %v2040
      %v2042 = vmul.f32 %v2030, 3.8918573e-05
      %v2043 = vadd.f32 %v2042, 0.001143296
      %v2044 = vmul.f32 %v2030, %v2043
      %v2045 = vadd.f32 %v2044, 0.014752088
      %v2046 = vmul.f32 %v2030, %v2045
      %v2047 = vadd.f32 %v2046, 0.112945676
      %v2048 = vmul.f32 %v2030, %v2047
      %v2049 = vadd.f32 %v2048, 0.4994258
      %v2050 = vmul.f32 %v2030, %v2049
      %v2051 = vadd.f32 %v2050, 1.0
      %v2052 = vrcp.pop %v2051
      %v2053 = vmul.f32 %v2051, %v2052
      %v2054 = vsub.f32 1.0, %v2053
      %v2055 = vmul.f32 %v2052, %v2054
      %v2056 = vadd.f32 %v2052, %v2055
      %vm2057 = vweird.f32 %v2051
      %vm2058 = vweird.f32 %v2052
      %vm2059 = vmor %vm2057, %vm2058
      %v2060 = vsel %vm2059, %v2052, %v2056
      %v2061 = vand.u32 2147483647, %v2051
      %vm2062 = vcmp.eq.f32.partialorder %v2061, 8.507059e+37
      %v2063 = vand.u32 %v2051, 2147483648
      %v2064 = vor.u32 1.1754944e-38, %v2063
      %v2065 = vsel %vm2062, %v2064, %v2060
      %v2066 = vmul.f32 %v2041, %v2065
      %v2067 = vmin.f32 %v2066, 1.0
      %v2068 = vmax.f32 %v2067, -1.0
      %v2069 = vmul.f32 %v1936, %v1936
      %v2070 = vmin.f32 16.0, %v2069
      %v2071 = vmul.f32 %v2070, 2.1237322e-06
      %v2072 = vadd.f32 %v2071, 0.00028619796
      %v2073 = vmul.f32 %v2070, %v2072
      %v2074 = vadd.f32 %v2073, 0.0036580483
      %v2075 = vmul.f32 %v2070, %v2074
      %v2076 = vadd.f32 %v2075, 0.05243302
      %v2077 = vmul.f32 %v2070, %v2076
      %v2078 = vadd.f32 %v2077, 0.18741608
      %v2079 = vmul.f32 %v2070, %v2078
      %v2080 = vadd.f32 %v2079, 1.1283791
      %v2081 = vmul.f32 %v1936, %v2080
      %v2082 = vmul.f32 %v2070, 3.8918573e-05
      %v2083 = vadd.f32 %v2082, 0.001143296
      %v2084 = vmul.f32 %v2070, %v2083
      %v2085 = vadd.f32 %v2084, 0.014752088
      %v2086 = vmul.f32 %v2070, %v2085
      %v2087 = vadd.f32 %v2086, 0.112945676
      %v2088 = vmul.f32 %v2070, %v2087
      %v2089 = vadd.f32 %v2088, 0.4994258
      %v2090 = vmul.f32 %v2070, %v2089
      %v2091 = vadd.f32 %v2090, 1.0
      %v2092 = vrcp.pop %v2091
      %v2093 = vmul.f32 %v2091, %v2092
      %v2094 = vsub.f32 1.0, %v2093
      %v2095 = vmul.f32 %v2092, %v2094
      %v2096 = vadd.f32 %v2092, %v2095
      %vm2097 = vweird.f32 %v2091
      %vm2098 = vweird.f32 %v2092
      %vm2099 = vmor %vm2097, %vm2098
      %v2100 = vsel %vm2099, %v2092, %v2096
      %v2101 = vand.u32 2147483647, %v2091
      %vm2102 = vcmp.eq.f32.partialorder %v2101, 8.507059e+37
      %v2103 = vand.u32 %v2091, 2147483648
      %v2104 = vor.u32 1.1754944e-38, %v2103
      %v2105 = vsel %vm2102, %v2104, %v2100
      %v2106 = vmul.f32 %v2081, %v2105
      %v2107 = vmin.f32 %v2106, 1.0
      %v2108 = vmax.f32 %v2107, -1.0
      %v2109 = vmul.f32 %v1937, %v1937
      %v2110 = vmin.f32 16.0, %v2109
      %v2111 = vmul.f32 %v2110, 2.1237322e-06
      %v2112 = vadd.f32 %v2111, 0.00028619796
      %v2113 = vmul.f32 %v2110, %v2112
      %v2114 = vadd.f32 %v2113, 0.0036580483
      %v2115 = vmul.f32 %v2110, %v2114
      %v2116 = vadd.f32 %v2115, 0.05243302
      %v2117 = vmul.f32 %v2110, %v2116
      %v2118 = vadd.f32 %v2117, 0.18741608
      %v2119 = vmul.f32 %v2110, %v2118
      %v2120 = vadd.f32 %v2119, 1.1283791
      %v2121 = vmul.f32 %v1937, %v2120
      %v2122 = vmul.f32 %v2110, 3.8918573e-05
      %v2123 = vadd.f32 %v2122, 0.001143296
      %v2124 = vmul.f32 %v2110, %v2123
      %v2125 = vadd.f32 %v2124, 0.014752088
      %v2126 = vmul.f32 %v2110, %v2125
      %v2127 = vadd.f32 %v2126, 0.112945676
      %v2128 = vmul.f32 %v2110, %v2127
      %v2129 = vadd.f32 %v2128, 0.4994258
      %v2130 = vmul.f32 %v2110, %v2129
      %v2131 = vadd.f32 %v2130, 1.0
      %v2132 = vrcp.pop %v2131
      %v2133 = vmul.f32 %v2131, %v2132
      %v2134 = vsub.f32 1.0, %v2133
      %v2135 = vmul.f32 %v2132, %v2134
      %v2136 = vadd.f32 %v2132, %v2135
      %vm2137 = vweird.f32 %v2131
      %vm2138 = vweird.f32 %v2132
      %vm2139 = vmor %vm2137, %vm2138
      %v2140 = vsel %vm2139, %v2132, %v2136
      %v2141 = vand.u32 2147483647, %v2131
      %vm2142 = vcmp.eq.f32.partialorder %v2141, 8.507059e+37
      %v2143 = vand.u32 %v2131, 2147483648
      %v2144 = vor.u32 1.1754944e-38, %v2143
      %v2145 = vsel %vm2142, %v2144, %v2140
      %v2146 = vmul.f32 %v2121, %v2145
      %v2147 = vmin.f32 %v2146, 1.0
      %v2148 = vmax.f32 %v2147, -1.0
      %v2149 = vmul.f32 %v1938, %v1938
      %v2150 = vmin.f32 16.0, %v2149
      %v2151 = vmul.f32 %v2150, 2.1237322e-06
      %v2152 = vadd.f32 %v2151, 0.00028619796
      %v2153 = vmul.f32 %v2150, %v2152
      %v2154 = vadd.f32 %v2153, 0.0036580483
      %v2155 = vmul.f32 %v2150, %v2154
      %v2156 = vadd.f32 %v2155, 0.05243302
      %v2157 = vmul.f32 %v2150, %v2156
      %v2158 = vadd.f32 %v2157, 0.18741608
      %v2159 = vmul.f32 %v2150, %v2158
      %v2160 = vadd.f32 %v2159, 1.1283791
      %v2161 = vmul.f32 %v1938, %v2160
      %v2162 = vmul.f32 %v2150, 3.8918573e-05
      %v2163 = vadd.f32 %v2162, 0.001143296
      %v2164 = vmul.f32 %v2150, %v2163
      %v2165 = vadd.f32 %v2164, 0.014752088
      %v2166 = vmul.f32 %v2150, %v2165
      %v2167 = vadd.f32 %v2166, 0.112945676
      %v2168 = vmul.f32 %v2150, %v2167
      %v2169 = vadd.f32 %v2168, 0.4994258
      %v2170 = vmul.f32 %v2150, %v2169
      %v2171 = vadd.f32 %v2170, 1.0
      %v2172 = vrcp.pop %v2171
      %v2173 = vmul.f32 %v2171, %v2172
      %v2174 = vsub.f32 1.0, %v2173
      %v2175 = vmul.f32 %v2172, %v2174
      %v2176 = vadd.f32 %v2172, %v2175
      %vm2177 = vweird.f32 %v2171
      %vm2178 = vweird.f32 %v2172
      %vm2179 = vmor %vm2177, %vm2178
      %v2180 = vsel %vm2179, %v2172, %v2176
      %v2181 = vand.u32 2147483647, %v2171
      %vm2182 = vcmp.eq.f32.partialorder %v2181, 8.507059e+37
      %v2183 = vand.u32 %v2171, 2147483648
      %v2184 = vor.u32 1.1754944e-38, %v2183
      %v2185 = vsel %vm2182, %v2184, %v2180
      %v2186 = vmul.f32 %v2161, %v2185
      %v2187 = vmin.f32 %v2186, 1.0
      %v2188 = vmax.f32 %v2187, -1.0
      %v2189 = vmul.f32 %v1939, %v1939
      %v2190 = vmin.f32 16.0, %v2189
      %v2191 = vmul.f32 %v2190, 2.1237322e-06
      %v2192 = vadd.f32 %v2191, 0.00028619796
      %v2193 = vmul.f32 %v2190, %v2192
      %v2194 = vadd.f32 %v2193, 0.0036580483
      %v2195 = vmul.f32 %v2190, %v2194
      %v2196 = vadd.f32 %v2195, 0.05243302
      %v2197 = vmul.f32 %v2190, %v2196
      %v2198 = vadd.f32 %v2197, 0.18741608
      %v2199 = vmul.f32 %v2190, %v2198
      %v2200 = vadd.f32 %v2199, 1.1283791
      %v2201 = vmul.f32 %v1939, %v2200
      %v2202 = vmul.f32 %v2190, 3.8918573e-05
      %v2203 = vadd.f32 %v2202, 0.001143296
      %v2204 = vmul.f32 %v2190, %v2203
      %v2205 = vadd.f32 %v2204, 0.014752088
      %v2206 = vmul.f32 %v2190, %v2205
      %v2207 = vadd.f32 %v2206, 0.112945676
      %v2208 = vmul.f32 %v2190, %v2207
      %v2209 = vadd.f32 %v2208, 0.4994258
      %v2210 = vmul.f32 %v2190, %v2209
      %v2211 = vadd.f32 %v2210, 1.0
      %v2212 = vrcp.pop %v2211
      %v2213 = vmul.f32 %v2211, %v2212
      %v2214 = vsub.f32 1.0, %v2213
      %v2215 = vmul.f32 %v2212, %v2214
      %v2216 = vadd.f32 %v2212, %v2215
      %vm2217 = vweird.f32 %v2211
      %vm2218 = vweird.f32 %v2212
      %vm2219 = vmor %vm2217, %vm2218
      %v2220 = vsel %vm2219, %v2212, %v2216
      %v2221 = vand.u32 2147483647, %v2211
      %vm2222 = vcmp.eq.f32.partialorder %v2221, 8.507059e+37
      %v2223 = vand.u32 %v2211, 2147483648
      %v2224 = vor.u32 1.1754944e-38, %v2223
      %v2225 = vsel %vm2222, %v2224, %v2220
      %v2226 = vmul.f32 %v2201, %v2225
      %v2227 = vmin.f32 %v2226, 1.0
      %v2228 = vmax.f32 %v2227, -1.0
      %v2229 = vmul.f32 %v1940, %v1940
      %v2230 = vmin.f32 16.0, %v2229
      %v2231 = vmul.f32 %v2230, 2.1237322e-06
      %v2232 = vadd.f32 %v2231, 0.00028619796
      %v2233 = vmul.f32 %v2230, %v2232
      %v2234 = vadd.f32 %v2233, 0.0036580483
      %v2235 = vmul.f32 %v2230, %v2234
      %v2236 = vadd.f32 %v2235, 0.05243302
      %v2237 = vmul.f32 %v2230, %v2236
      %v2238 = vadd.f32 %v2237, 0.18741608
      %v2239 = vmul.f32 %v2230, %v2238
      %v2240 = vadd.f32 %v2239, 1.1283791
      %v2241 = vmul.f32 %v1940, %v2240
      %v2242 = vmul.f32 %v2230, 3.8918573e-05
      %v2243 = vadd.f32 %v2242, 0.001143296
      %v2244 = vmul.f32 %v2230, %v2243
      %v2245 = vadd.f32 %v2244, 0.014752088
      %v2246 = vmul.f32 %v2230, %v2245
      %v2247 = vadd.f32 %v2246, 0.112945676
      %v2248 = vmul.f32 %v2230, %v2247
      %v2249 = vadd.f32 %v2248, 0.4994258
      %v2250 = vmul.f32 %v2230, %v2249
      %v2251 = vadd.f32 %v2250, 1.0
      %v2252 = vrcp.pop %v2251
      %v2253 = vmul.f32 %v2251, %v2252
      %v2254 = vsub.f32 1.0, %v2253
      %v2255 = vmul.f32 %v2252, %v2254
      %v2256 = vadd.f32 %v2252, %v2255
      %vm2257 = vweird.f32 %v2251
      %vm2258 = vweird.f32 %v2252
      %vm2259 = vmor %vm2257, %vm2258
      %v2260 = vsel %vm2259, %v2252, %v2256
      %v2261 = vand.u32 2147483647, %v2251
      %vm2262 = vcmp.eq.f32.partialorder %v2261, 8.507059e+37
      %v2263 = vand.u32 %v2251, 2147483648
      %v2264 = vor.u32 1.1754944e-38, %v2263
      %v2265 = vsel %vm2262, %v2264, %v2260
      %v2266 = vmul.f32 %v2241, %v2265
      %v2267 = vmin.f32 %v2266, 1.0
      %v2268 = vmax.f32 %v2267, -1.0
      %v2269 = vmul.f32 %v1941, %v1941
      %v2270 = vmin.f32 16.0, %v2269
      %v2271 = vmul.f32 %v2270, 2.1237322e-06
      %v2272 = vadd.f32 %v2271, 0.00028619796
      %v2273 = vmul.f32 %v2270, %v2272
      %v2274 = vadd.f32 %v2273, 0.0036580483
      %v2275 = vmul.f32 %v2270, %v2274
      %v2276 = vadd.f32 %v2275, 0.05243302
      %v2277 = vmul.f32 %v2270, %v2276
      %v2278 = vadd.f32 %v2277, 0.18741608
      %v2279 = vmul.f32 %v2270, %v2278
      %v2280 = vadd.f32 %v2279, 1.1283791
      %v2281 = vmul.f32 %v1941, %v2280
      %v2282 = vmul.f32 %v2270, 3.8918573e-05
      %v2283 = vadd.f32 %v2282, 0.001143296
      %v2284 = vmul.f32 %v2270, %v2283
      %v2285 = vadd.f32 %v2284, 0.014752088
      %v2286 = vmul.f32 %v2270, %v2285
      %v2287 = vadd.f32 %v2286, 0.112945676
      %v2288 = vmul.f32 %v2270, %v2287
      %v2289 = vadd.f32 %v2288, 0.4994258
      %v2290 = vmul.f32 %v2270, %v2289
      %v2291 = vadd.f32 %v2290, 1.0
      %v2292 = vrcp.pop %v2291
      %v2293 = vmul.f32 %v2291, %v2292
      %v2294 = vsub.f32 1.0, %v2293
      %v2295 = vmul.f32 %v2292, %v2294
      %v2296 = vadd.f32 %v2292, %v2295
      %vm2297 = vweird.f32 %v2291
      %vm2298 = vweird.f32 %v2292
      %vm2299 = vmor %vm2297, %vm2298
      %v2300 = vsel %vm2299, %v2292, %v2296
      %v2301 = vand.u32 2147483647, %v2291
      %vm2302 = vcmp.eq.f32.partialorder %v2301, 8.507059e+37
      %v2303 = vand.u32 %v2291, 2147483648
      %v2304 = vor.u32 1.1754944e-38, %v2303
      %v2305 = vsel %vm2302, %v2304, %v2300
      %v2306 = vmul.f32 %v2281, %v2305
      %v2307 = vmin.f32 %v2306, 1.0
      %v2308 = vmax.f32 %v2307, -1.0
      %v2309 = vmul.f32 %v1942, %v1942
      %v2310 = vmin.f32 16.0, %v2309
      %v2311 = vmul.f32 %v2310, 2.1237322e-06
      %v2312 = vadd.f32 %v2311, 0.00028619796
      %v2313 = vmul.f32 %v2310, %v2312
      %v2314 = vadd.f32 %v2313, 0.0036580483
      %v2315 = vmul.f32 %v2310, %v2314
      %v2316 = vadd.f32 %v2315, 0.05243302
      %v2317 = vmul.f32 %v2310, %v2316
      %v2318 = vadd.f32 %v2317, 0.18741608
      %v2319 = vmul.f32 %v2310, %v2318
      %v2320 = vadd.f32 %v2319, 1.1283791
      %v2321 = vmul.f32 %v1942, %v2320
      %v2322 = vmul.f32 %v2310, 3.8918573e-05
      %v2323 = vadd.f32 %v2322, 0.001143296
      %v2324 = vmul.f32 %v2310, %v2323
      %v2325 = vadd.f32 %v2324, 0.014752088
      %v2326 = vmul.f32 %v2310, %v2325
      %v2327 = vadd.f32 %v2326, 0.112945676
      %v2328 = vmul.f32 %v2310, %v2327
      %v2329 = vadd.f32 %v2328, 0.4994258
      %v2330 = vmul.f32 %v2310, %v2329
      %v2331 = vadd.f32 %v2330, 1.0
      %v2332 = vrcp.pop %v2331
      %v2333 = vmul.f32 %v2331, %v2332
      %v2334 = vsub.f32 1.0, %v2333
      %v2335 = vmul.f32 %v2332, %v2334
      %v2336 = vadd.f32 %v2332, %v2335
      %vm2337 = vweird.f32 %v2331
      %vm2338 = vweird.f32 %v2332
      %vm2339 = vmor %vm2337, %vm2338
      %v2340 = vsel %vm2339, %v2332, %v2336
      %v2341 = vand.u32 2147483647, %v2331
      %vm2342 = vcmp.eq.f32.partialorder %v2341, 8.507059e+37
      %v2343 = vand.u32 %v2331, 2147483648
      %v2344 = vor.u32 1.1754944e-38, %v2343
      %v2345 = vsel %vm2342, %v2344, %v2340
      %v2346 = vmul.f32 %v2321, %v2345
      %v2347 = vmin.f32 %v2346, 1.0
      %v2348 = vmax.f32 %v2347, -1.0
      %v2349 = vmul.f32 %v1943, %v1943
      %v2350 = vmin.f32 16.0, %v2349
      %v2351 = vmul.f32 %v2350, 2.1237322e-06
      %v2352 = vadd.f32 %v2351, 0.00028619796
      %v2353 = vmul.f32 %v2350, %v2352
      %v2354 = vadd.f32 %v2353, 0.0036580483
      %v2355 = vmul.f32 %v2350, %v2354
      %v2356 = vadd.f32 %v2355, 0.05243302
      %v2357 = vmul.f32 %v2350, %v2356
      %v2358 = vadd.f32 %v2357, 0.18741608
      %v2359 = vmul.f32 %v2350, %v2358
      %v2360 = vadd.f32 %v2359, 1.1283791
      %v2361 = vmul.f32 %v1943, %v2360
      %v2362 = vmul.f32 %v2350, 3.8918573e-05
      %v2363 = vadd.f32 %v2362, 0.001143296
      %v2364 = vmul.f32 %v2350, %v2363
      %v2365 = vadd.f32 %v2364, 0.014752088
      %v2366 = vmul.f32 %v2350, %v2365
      %v2367 = vadd.f32 %v2366, 0.112945676
      %v2368 = vmul.f32 %v2350, %v2367
      %v2369 = vadd.f32 %v2368, 0.4994258
      %v2370 = vmul.f32 %v2350, %v2369
      %v2371 = vadd.f32 %v2370, 1.0
      %v2372 = vrcp.pop %v2371
      %v2373 = vmul.f32 %v2371, %v2372
      %v2374 = vsub.f32 1.0, %v2373
      %v2375 = vmul.f32 %v2372, %v2374
      %v2376 = vadd.f32 %v2372, %v2375
      %vm2377 = vweird.f32 %v2371
      %vm2378 = vweird.f32 %v2372
      %vm2379 = vmor %vm2377, %vm2378
      %v2380 = vsel %vm2379, %v2372, %v2376
      %v2381 = vand.u32 2147483647, %v2371
      %vm2382 = vcmp.eq.f32.partialorder %v2381, 8.507059e+37
      %v2383 = vand.u32 %v2371, 2147483648
      %v2384 = vor.u32 1.1754944e-38, %v2383
      %v2385 = vsel %vm2382, %v2384, %v2380
      %v2386 = vmul.f32 %v2361, %v2385
      %v2387 = vmin.f32 %v2386, 1.0
      %v2388 = vmax.f32 %v2387, -1.0
      %v2389 = vmul.f32 %v1944, %v1944
      %v2390 = vmin.f32 16.0, %v2389
      %v2391 = vmul.f32 %v2390, 2.1237322e-06
      %v2392 = vadd.f32 %v2391, 0.00028619796
      %v2393 = vmul.f32 %v2390, %v2392
      %v2394 = vadd.f32 %v2393, 0.0036580483
      %v2395 = vmul.f32 %v2390, %v2394
      %v2396 = vadd.f32 %v2395, 0.05243302
      %v2397 = vmul.f32 %v2390, %v2396
      %v2398 = vadd.f32 %v2397, 0.18741608
      %v2399 = vmul.f32 %v2390, %v2398
      %v2400 = vadd.f32 %v2399, 1.1283791
      %v2401 = vmul.f32 %v1944, %v2400
      %v2402 = vmul.f32 %v2390, 3.8918573e-05
      %v2403 = vadd.f32 %v2402, 0.001143296
      %v2404 = vmul.f32 %v2390, %v2403
      %v2405 = vadd.f32 %v2404, 0.014752088
      %v2406 = vmul.f32 %v2390, %v2405
      %v2407 = vadd.f32 %v2406, 0.112945676
      %v2408 = vmul.f32 %v2390, %v2407
      %v2409 = vadd.f32 %v2408, 0.4994258
      %v2410 = vmul.f32 %v2390, %v2409
      %v2411 = vadd.f32 %v2410, 1.0
      %v2412 = vrcp.pop %v2411
      %v2413 = vmul.f32 %v2411, %v2412
      %v2414 = vsub.f32 1.0, %v2413
      %v2415 = vmul.f32 %v2412, %v2414
      %v2416 = vadd.f32 %v2412, %v2415
      %vm2417 = vweird.f32 %v2411
      %vm2418 = vweird.f32 %v2412
      %vm2419 = vmor %vm2417, %vm2418
      %v2420 = vsel %vm2419, %v2412, %v2416
      %v2421 = vand.u32 2147483647, %v2411
      %vm2422 = vcmp.eq.f32.partialorder %v2421, 8.507059e+37
      %v2423 = vand.u32 %v2411, 2147483648
      %v2424 = vor.u32 1.1754944e-38, %v2423
      %v2425 = vsel %vm2422, %v2424, %v2420
      %v2426 = vmul.f32 %v2401, %v2425
      %v2427 = vmin.f32 %v2426, 1.0
      %v2428 = vmax.f32 %v2427, -1.0
      %v2429 = vmul.f32 %v1945, %v1945
      %v2430 = vmin.f32 16.0, %v2429
      %v2431 = vmul.f32 %v2430, 2.1237322e-06
      %v2432 = vadd.f32 %v2431, 0.00028619796
      %v2433 = vmul.f32 %v2430, %v2432
      %v2434 = vadd.f32 %v2433, 0.0036580483
      %v2435 = vmul.f32 %v2430, %v2434
      %v2436 = vadd.f32 %v2435, 0.05243302
      %v2437 = vmul.f32 %v2430, %v2436
      %v2438 = vadd.f32 %v2437, 0.18741608
      %v2439 = vmul.f32 %v2430, %v2438
      %v2440 = vadd.f32 %v2439, 1.1283791
      %v2441 = vmul.f32 %v1945, %v2440
      %v2442 = vmul.f32 %v2430, 3.8918573e-05
      %v2443 = vadd.f32 %v2442, 0.001143296
      %v2444 = vmul.f32 %v2430, %v2443
      %v2445 = vadd.f32 %v2444, 0.014752088
      %v2446 = vmul.f32 %v2430, %v2445
      %v2447 = vadd.f32 %v2446, 0.112945676
      %v2448 = vmul.f32 %v2430, %v2447
      %v2449 = vadd.f32 %v2448, 0.4994258
      %v2450 = vmul.f32 %v2430, %v2449
      %v2451 = vadd.f32 %v2450, 1.0
      %v2452 = vrcp.pop %v2451
      %v2453 = vmul.f32 %v2451, %v2452
      %v2454 = vsub.f32 1.0, %v2453
      %v2455 = vmul.f32 %v2452, %v2454
      %v2456 = vadd.f32 %v2452, %v2455
      %vm2457 = vweird.f32 %v2451
      %vm2458 = vweird.f32 %v2452
      %vm2459 = vmor %vm2457, %vm2458
      %v2460 = vsel %vm2459, %v2452, %v2456
      %v2461 = vand.u32 2147483647, %v2451
      %vm2462 = vcmp.eq.f32.partialorder %v2461, 8.507059e+37
      %v2463 = vand.u32 %v2451, 2147483648
      %v2464 = vor.u32 1.1754944e-38, %v2463
      %v2465 = vsel %vm2462, %v2464, %v2460
      %v2466 = vmul.f32 %v2441, %v2465
      %v2467 = vmin.f32 %v2466, 1.0
      %v2468 = vmax.f32 %v2467, -1.0
      %v2469 = vmul.f32 %v1946, %v1946
      %v2470 = vmin.f32 16.0, %v2469
      %v2471 = vmul.f32 %v2470, 2.1237322e-06
      %v2472 = vadd.f32 %v2471, 0.00028619796
      %v2473 = vmul.f32 %v2470, %v2472
      %v2474 = vadd.f32 %v2473, 0.0036580483
      %v2475 = vmul.f32 %v2470, %v2474
      %v2476 = vadd.f32 %v2475, 0.05243302
      %v2477 = vmul.f32 %v2470, %v2476
      %v2478 = vadd.f32 %v2477, 0.18741608
      %v2479 = vmul.f32 %v2470, %v2478
      %v2480 = vadd.f32 %v2479, 1.1283791
      %v2481 = vmul.f32 %v1946, %v2480
      %v2482 = vmul.f32 %v2470, 3.8918573e-05
      %v2483 = vadd.f32 %v2482, 0.001143296
      %v2484 = vmul.f32 %v2470, %v2483
      %v2485 = vadd.f32 %v2484, 0.014752088
      %v2486 = vmul.f32 %v2470, %v2485
      %v2487 = vadd.f32 %v2486, 0.112945676
      %v2488 = vmul.f32 %v2470, %v2487
      %v2489 = vadd.f32 %v2488, 0.4994258
      %v2490 = vmul.f32 %v2470, %v2489
      %v2491 = vadd.f32 %v2490, 1.0
      %v2492 = vrcp.pop %v2491
      %v2493 = vmul.f32 %v2491, %v2492
      %v2494 = vsub.f32 1.0, %v2493
      %v2495 = vmul.f32 %v2492, %v2494
      %v2496 = vadd.f32 %v2492, %v2495
      %vm2497 = vweird.f32 %v2491
      %vm2498 = vweird.f32 %v2492
      %vm2499 = vmor %vm2497, %vm2498
      %v2500 = vsel %vm2499, %v2492, %v2496
      %v2501 = vand.u32 2147483647, %v2491
      %vm2502 = vcmp.eq.f32.partialorder %v2501, 8.507059e+37
      %v2503 = vand.u32 %v2491, 2147483648
      %v2504 = vor.u32 1.1754944e-38, %v2503
      %v2505 = vsel %vm2502, %v2504, %v2500
      %v2506 = vmul.f32 %v2481, %v2505
      %v2507 = vmin.f32 %v2506, 1.0
      %v2508 = vmax.f32 %v2507, -1.0
      %v2509 = vmul.f32 %v1947, %v1947
      %v2510 = vmin.f32 16.0, %v2509
      %v2511 = vmul.f32 %v2510, 2.1237322e-06
      %v2512 = vadd.f32 %v2511, 0.00028619796
      %v2513 = vmul.f32 %v2510, %v2512
      %v2514 = vadd.f32 %v2513, 0.0036580483
      %v2515 = vmul.f32 %v2510, %v2514
      %v2516 = vadd.f32 %v2515, 0.05243302
      %v2517 = vmul.f32 %v2510, %v2516
      %v2518 = vadd.f32 %v2517, 0.18741608
      %v2519 = vmul.f32 %v2510, %v2518
      %v2520 = vadd.f32 %v2519, 1.1283791
      %v2521 = vmul.f32 %v1947, %v2520
      %v2522 = vmul.f32 %v2510, 3.8918573e-05
      %v2523 = vadd.f32 %v2522, 0.001143296
      %v2524 = vmul.f32 %v2510, %v2523
      %v2525 = vadd.f32 %v2524, 0.014752088
      %v2526 = vmul.f32 %v2510, %v2525
      %v2527 = vadd.f32 %v2526, 0.112945676
      %v2528 = vmul.f32 %v2510, %v2527
      %v2529 = vadd.f32 %v2528, 0.4994258
      %v2530 = vmul.f32 %v2510, %v2529
      %v2531 = vadd.f32 %v2530, 1.0
      %v2532 = vrcp.pop %v2531
      %v2533 = vmul.f32 %v2531, %v2532
      %v2534 = vsub.f32 1.0, %v2533
      %v2535 = vmul.f32 %v2532, %v2534
      %v2536 = vadd.f32 %v2532, %v2535
      %vm2537 = vweird.f32 %v2531
      %vm2538 = vweird.f32 %v2532
      %vm2539 = vmor %vm2537, %vm2538
      %v2540 = vsel %vm2539, %v2532, %v2536
      %v2541 = vand.u32 2147483647, %v2531
      %vm2542 = vcmp.eq.f32.partialorder %v2541, 8.507059e+37
      %v2543 = vand.u32 %v2531, 2147483648
      %v2544 = vor.u32 1.1754944e-38, %v2543
      %v2545 = vsel %vm2542, %v2544, %v2540
      %v2546 = vmul.f32 %v2521, %v2545
      %v2547 = vmin.f32 %v2546, 1.0
      %v2548 = vmax.f32 %v2547, -1.0
      %v2549 = vmul.f32 %v1948, %v1948
      %v2550 = vmin.f32 16.0, %v2549
      %v2551 = vmul.f32 %v2550, 2.1237322e-06
      %v2552 = vadd.f32 %v2551, 0.00028619796
      %v2553 = vmul.f32 %v2550, %v2552
      %v2554 = vadd.f32 %v2553, 0.0036580483
      %v2555 = vmul.f32 %v2550, %v2554
      %v2556 = vadd.f32 %v2555, 0.05243302
      %v2557 = vmul.f32 %v2550, %v2556
      %v2558 = vadd.f32 %v2557, 0.18741608
      %v2559 = vmul.f32 %v2550, %v2558
      %v2560 = vadd.f32 %v2559, 1.1283791
      %v2561 = vmul.f32 %v1948, %v2560
      %v2562 = vmul.f32 %v2550, 3.8918573e-05
      %v2563 = vadd.f32 %v2562, 0.001143296
      %v2564 = vmul.f32 %v2550, %v2563
      %v2565 = vadd.f32 %v2564, 0.014752088
      %v2566 = vmul.f32 %v2550, %v2565
      %v2567 = vadd.f32 %v2566, 0.112945676
      %v2568 = vmul.f32 %v2550, %v2567
      %v2569 = vadd.f32 %v2568, 0.4994258
      %v2570 = vmul.f32 %v2550, %v2569
      %v2571 = vadd.f32 %v2570, 1.0
      %v2572 = vrcp.pop %v2571
      %v2573 = vmul.f32 %v2571, %v2572
      %v2574 = vsub.f32 1.0, %v2573
      %v2575 = vmul.f32 %v2572, %v2574
      %v2576 = vadd.f32 %v2572, %v2575
      %vm2577 = vweird.f32 %v2571
      %vm2578 = vweird.f32 %v2572
      %vm2579 = vmor %vm2577, %vm2578
      %v2580 = vsel %vm2579, %v2572, %v2576
      %v2581 = vand.u32 2147483647, %v2571
      %vm2582 = vcmp.eq.f32.partialorder %v2581, 8.507059e+37
      %v2583 = vand.u32 %v2571, 2147483648
      %v2584 = vor.u32 1.1754944e-38, %v2583
      %v2585 = vsel %vm2582, %v2584, %v2580
      %v2586 = vmul.f32 %v2561, %v2585
      %v2587 = vmin.f32 %v2586, 1.0
      %v2588 = vmax.f32 %v2587, -1.0
      %v2589 = vadd.f32 %v1988, 1.0
      %v2590 = vadd.f32 %v2028, 1.0
      %v2591 = vadd.f32 %v2068, 1.0
      %v2592 = vadd.f32 %v2108, 1.0
      %v2593 = vadd.f32 %v2148, 1.0
      %v2594 = vadd.f32 %v2188, 1.0
      %v2595 = vadd.f32 %v2228, 1.0
      %v2596 = vadd.f32 %v2268, 1.0
      %v2597 = vadd.f32 %v2308, 1.0
      %v2598 = vadd.f32 %v2348, 1.0
      %v2599 = vadd.f32 %v2388, 1.0
      %v2600 = vadd.f32 %v2428, 1.0
      %v2601 = vadd.f32 %v2468, 1.0
      %v2602 = vadd.f32 %v2508, 1.0
      %v2603 = vadd.f32 %v2548, 1.0
      %v2604 = vadd.f32 %v2588, 1.0
      %v2605 = vmul.f32 %v1917, %v2589
      %v2606 = vmul.f32 %v1918, %v2590
      %v2607 = vmul.f32 %v1919, %v2591
      %v2608 = vmul.f32 %v1920, %v2592
      %v2609 = vmul.f32 %v1921, %v2593
      %v2610 = vmul.f32 %v1922, %v2594
      %v2611 = vmul.f32 %v1923, %v2595
      %v2612 = vmul.f32 %v1924, %v2596
      %v2613 = vmul.f32 %v1925, %v2597
      %v2614 = vmul.f32 %v1926, %v2598
      %v2615 = vmul.f32 %v1927, %v2599
      %v2616 = vmul.f32 %v1928, %v2600
      %v2617 = vmul.f32 %v1929, %v2601
      %v2618 = vmul.f32 %v1930, %v2602
      %v2619 = vmul.f32 %v1931, %v2603
      %v2620 = vmul.f32 %v1932, %v2604
      %v2621 = vmul.f32 %v2605, %v1901
      %v2622 = vmul.f32 %v2606, %v1902
      %v2623 = vmul.f32 %v2607, %v1903
      %v2624 = vmul.f32 %v2608, %v1904
      %v2625 = vmul.f32 %v2609, %v1905
      %v2626 = vmul.f32 %v2610, %v1906
      %v2627 = vmul.f32 %v2611, %v1907
      %v2628 = vmul.f32 %v2612, %v1908
      %v2629 = vmul.f32 %v2613, %v1909
      %v2630 = vmul.f32 %v2614, %v1910
      %v2631 = vmul.f32 %v2615, %v1911
      %v2632 = vmul.f32 %v2616, %v1912
      %v2633 = vmul.f32 %v2617, %v1913
      %v2634 = vmul.f32 %v2618, %v1914
      %v2635 = vmul.f32 %v2619, %v1915
      %v2636 = vmul.f32 %v2620, %v1916
      %v2637 = vpack.c.bf16 %v2622, %v2621
      %v2638 = vpack.c.bf16 %v2624, %v2623
      %v2639 = vpack.c.bf16 %v2626, %v2625
      %v2640 = vpack.c.bf16 %v2628, %v2627
      %v2641 = vpack.c.bf16 %v2630, %v2629
      %v2642 = vpack.c.bf16 %v2632, %v2631
      %v2643 = vpack.c.bf16 %v2634, %v2633
      %v2644 = vpack.c.bf16 %v2636, %v2635
      %v2645 = vld [vmem:[%s11] sm:$0xf]
      %v2646 = vld [vmem:[%s11 + $0x4] sm:$0xf]
      %v2647 = vld [vmem:[%s12] sm:$0x1]
      %v2649 = vperm.slane %v2647, 0
      %v2653 = vunpack.c.l.b16 %v2645
      %v2654 = vunpack.c.l.b16 %v2646
      %v2655 = vpack.c.b16 %v2654, %v2653
      %vm2657 = vcmask 130048
      %v2659 = vsel %vm2657, %v2637, 0
      %v2662 = vsel %vm2657, %v2638, 0
      %v2665 = vsel %vm2657, %v2639, 0
      %v2668 = vsel %vm2657, %v2640, 0
      %v2671 = vsel %vm2657, %v2641, 0
      %v2674 = vsel %vm2657, %v2642, 0
      %v2677 = vsel %vm2657, %v2643, 0
      %v2680 = vsel %vm2657, %v2644, 0
      %2682 = vmatpush.bf16.msra.mxu0 0
      %2683 = vmatpush.bf16.msra.mxu0 0
      %2684 = vmatpush.bf16.msra.mxu0 0
      %2685 = vmatpush.bf16.msra.mxu0 0
      %2686 = vmatpush.bf16.msra.mxu0 0
      %2687 = vmatpush.bf16.msra.mxu0 0
      %2688 = vmatpush.bf16.msra.mxu0 0
      %2689 = vmatpush.bf16.msra.mxu0 %v2655
      %2690 = vmatmul.bf16.gmra.mxu0 %v2659
      %v2691 = vpop.f32.mrf.mxu0
      %v2692 = vadd.f32 %v2649, %v2691
      %v2693 = vpop.f32.mrf.mxu0
      %v2694 = vadd.f32 %v2649, %v2693
      %2695 = vmatmul.bf16.gmra.mxu0 %v2662
      %v2696 = vpop.f32.mrf.mxu0
      %v2697 = vadd.f32 %v2649, %v2696
      %v2698 = vpop.f32.mrf.mxu0
      %v2699 = vadd.f32 %v2649, %v2698
      %2700 = vmatmul.bf16.gmra.mxu0 %v2665
      %v2701 = vpop.f32.mrf.mxu0
      %v2702 = vadd.f32 %v2649, %v2701
      %v2703 = vpop.f32.mrf.mxu0
      %v2704 = vadd.f32 %v2649, %v2703
      %2705 = vmatmul.bf16.gmra.mxu0 %v2668
      %v2706 = vpop.f32.mrf.mxu0
      %v2707 = vadd.f32 %v2649, %v2706
      %v2708 = vpop.f32.mrf.mxu0
      %v2709 = vadd.f32 %v2649, %v2708
      %2710 = vmatmul.bf16.gmra.mxu0 %v2671
      %v2711 = vpop.f32.mrf.mxu0
      %v2712 = vadd.f32 %v2649, %v2711
      %v2713 = vpop.f32.mrf.mxu0
      %v2714 = vadd.f32 %v2649, %v2713
      %2715 = vmatmul.bf16.gmra.mxu0 %v2674
      %v2716 = vpop.f32.mrf.mxu0
      %v2717 = vadd.f32 %v2649, %v2716
      %v2718 = vpop.f32.mrf.mxu0
      %v2719 = vadd.f32 %v2649, %v2718
      %2720 = vmatmul.bf16.gmra.mxu0 %v2677
      %v2721 = vpop.f32.mrf.mxu0
      %v2722 = vadd.f32 %v2649, %v2721
      %v2723 = vpop.f32.mrf.mxu0
      %v2724 = vadd.f32 %v2649, %v2723
      %2725 = vmatmul.bf16.gmra.mxu0 %v2680
      %v2726 = vpop.f32.mrf.mxu0
      %v2727 = vadd.f32 %v2649, %v2726
      %v2728 = vpop.f32.mrf.mxu0
      %v2729 = vadd.f32 %v2649, %v2728
      %2730 = vdwg.mxu0
      %2731 = vst.msk [vmem:[%s607] sm:$0xff] %vm874, %v2692
      %2732 = vst.msk [vmem:[%s607 + $0x8] sm:$0xff] %vm874, %v2694
      %2733 = vst.msk [vmem:[%s607 + $0x10] sm:$0xff] %vm874, %v2697
      %2734 = vst.msk [vmem:[%s607 + $0x18] sm:$0xff] %vm874, %v2699
      %2735 = vst.msk [vmem:[%s607 + $0x20] sm:$0xff] %vm874, %v2702
      %2736 = vst.msk [vmem:[%s607 + $0x28] sm:$0xff] %vm874, %v2704
      %2737 = vst.msk [vmem:[%s607 + $0x30] sm:$0xff] %vm874, %v2707
      %2738 = vst.msk [vmem:[%s607 + $0x38] sm:$0xff] %vm874, %v2709
      %2739 = vst.msk [vmem:[%s607 + $0x40] sm:$0xff] %vm874, %v2712
      %2740 = vst.msk [vmem:[%s607 + $0x48] sm:$0xff] %vm874, %v2714
      %2741 = vst.msk [vmem:[%s607 + $0x50] sm:$0xff] %vm874, %v2717
      %2742 = vst.msk [vmem:[%s607 + $0x58] sm:$0xff] %vm874, %v2719
      %2743 = vst.msk [vmem:[%s607 + $0x60] sm:$0xff] %vm874, %v2722
      %2744 = vst.msk [vmem:[%s607 + $0x68] sm:$0xff] %vm874, %v2724
      %2745 = vst.msk [vmem:[%s607 + $0x70] sm:$0xff] %vm874, %v2727
      %2746 = vst.msk [vmem:[%s607 + $0x78] sm:$0xff] %vm874, %v2729
      %s2747 = smul.u32 8, %s29
      %p2748 = scmp.lt.s32.totalorder %s28, 1
      %s2749 = scalar_select %p2748, %s28, 1
      %p2750 = scmp.lt.s32.totalorder %s2747, 15
      %s2751 = scalar_select %p2750, %s2747, 15
      %s2752 = smul.addr %s2751, 2
      %s2753 = smul.addr %s2749, 32
      %s2754 = sadd.s32 %s2752, %s2753
      %s2755 = smul.addr %s2754, 8
      %s2756 = scalar_lea.vmem %s13, %s2755
      // Predicated region
      $region73: #{_lambda_.1} parent=71 // pred_check
        %p2757 = pneg %p366
      $region74: #{_lambda_.1} parent=71 // pred_check_branch
        %2759 = sbr.rel (%p2757) target = $region76
      $region75: #{_lambda_.1} parent=71 // pred_region
        %s2760 = smul.u32 8, %s29
      $region76: #{_lambda_.1} parent=71 // pred_fallthru
        _
    $region72: #{_lambda_.1} parent=5 // pred_fallthru
      _
    %p2761 = scmp.le.s32.totalorder 2, %s19
    // Predicated region
    $region77: #{_lambda_.1} parent=5 // pred_check
      %p2762 = pneg %p2761
    $region78: #{_lambda_.1} parent=5 // pred_check_branch
      %2764 = sbr.rel (%p2762) target = $region80
    $region79: #{_lambda_.1} parent=5 // pred_region
      %s2765 = ssub.s32 %s19, 2
      // Predicated region
      $region81: #{_lambda_.1} parent=79 // pred_check
        %p2766 = pneg %p372
      $region82: #{_lambda_.1} parent=79 // pred_check_branch
        %2768 = sbr.rel (%p2766) target = $region84
      $region83: #{_lambda_.1} parent=79 // pred_region
        %s2769 = smul.u32 8, %s31
        %p2770 = scmp.lt.s32.totalorder %s30, 1
        %s2771 = scalar_select %p2770, %s30, 1
        %p2772 = scmp.lt.s32.totalorder %s2769, 15
        %s2773 = scalar_select %p2772, %s2769, 15
        %s2774 = smul.addr %s2773, 2
        %s2775 = smul.addr %s2771, 32
        %s2776 = sadd.s32 %s2774, %s2775
        %s2777 = smul.addr %s2776, 8
        %s2778 = scalar_lea.vmem %s13, %s2777
      $region84: #{_lambda_.1} parent=79 // pred_fallthru
        _
    $region80: #{_lambda_.1} parent=5 // pred_fallthru
      _
  $region6: #{_lambda_.1} parent=0 // loop_footer
    %s23 = sadd.s32 1, %s19
  $region7: #{_lambda_.1} parent=0 // loop_footer_branch
    %18 = sbr.rel target = $region3
  $region8: #{_lambda_.1} parent=0 // loop_exit
    _

</llo_original>
